<compile_context>
chip_gen: v7x
topology: tpu7x:2x2x1
jax: 0.10.0
libtpu: 0.0.40
codegen_flags: <defaults>
</compile_context>

<pallas_src>
import math
from functools import partial

import jax
import jax.numpy as jnp
from jax.experimental import pallas as pl
from jax.experimental.pallas import tpu as pltpu

NEG_INF = float(jnp.finfo(jnp.float32).min)


def _round_up(x, m):
    return ((x + m - 1) // m) * m


# --------------------------- tiled linear (MXU) -------------------------------

def _linear_kernel(x_ref, w_ref, b_ref, o_ref, acc_ref):
    @pl.when(pl.program_id(2) == 0)
    def _():
        acc_ref[...] = jnp.zeros_like(acc_ref)

    acc_ref[...] += jnp.dot(
        x_ref[...], w_ref[...], preferred_element_type=jnp.float32
    )

    @pl.when(pl.program_id(2) == pl.num_programs(2) - 1)
    def _():
        o_ref[...] = (acc_ref[...] + b_ref[...]).astype(o_ref.dtype)


def linear(x2d, w, b, *, out_dtype=jnp.float32, tm=256, tn=256, tk=512):
    """y = x @ w + b. bf16 operands, f32 accumulation, tiled + pipelined."""
    m_dim, k_dim = x2d.shape
    n_dim = w.shape[1]
    tm = min(tm, _round_up(m_dim, 8))
    tn = min(tn, _round_up(n_dim, 128))
    tk = min(tk, _round_up(k_dim, 128))
    mp, kp, np_ = _round_up(m_dim, tm), _round_up(k_dim, tk), _round_up(n_dim, tn)

    xp = x2d.astype(jnp.bfloat16)
    wp = w.astype(jnp.bfloat16)
    bp = b.astype(jnp.float32).reshape(1, n_dim)
    if (mp, kp) != (m_dim, k_dim):
        xp = jnp.pad(xp, ((0, mp - m_dim), (0, kp - k_dim)))
    if (kp, np_) != (k_dim, n_dim):
        wp = jnp.pad(wp, ((0, kp - k_dim), (0, np_ - n_dim)))
    if np_ != n_dim:
        bp = jnp.pad(bp, ((0, 0), (0, np_ - n_dim)))

    out = pl.pallas_call(
        _linear_kernel,
        out_shape=jax.ShapeDtypeStruct((mp, np_), out_dtype),
        grid=(mp // tm, np_ // tn, kp // tk),
        in_specs=[
            pl.BlockSpec((tm, tk), lambda i, j, k: (i, k)),
            pl.BlockSpec((tk, tn), lambda i, j, k: (k, j)),
            pl.BlockSpec((1, tn), lambda i, j, k: (0, j)),
        ],
        out_specs=pl.BlockSpec((tm, tn), lambda i, j, k: (i, j)),
        scratch_shapes=[pltpu.VMEM((tm, tn), jnp.float32)],
        compiler_params=pltpu.CompilerParams(
            dimension_semantics=("parallel", "parallel", "arbitrary"),
            vmem_limit_bytes=64 * 1024 * 1024,  # v7x-safe budget
        ),
    )(xp, wp, bp)
    if (mp, np_) != (m_dim, n_dim):
        out = out[:m_dim, :n_dim]
    return out


# --------------------------- attention kernels --------------------------------

def _attn_core(q_ref, k_ref, v_ref, bias_ref, *, scale):
    q = q_ref[0]                                      # (H, Tq, Dh) bf16
    k = k_ref[0]                                      # (H, Tk, Dh) bf16
    v = v_ref[0]                                      # (H, Tk, Dh) bf16
    s = jnp.einsum("hqd,hkd->hqk", q, k, preferred_element_type=jnp.float32)
    s = s * scale + bias_ref[0][None]                 # bias (Tq,Tk) bcast over heads
    m = jnp.max(s, axis=-1, keepdims=True)
    e = jnp.exp(s - m)
    denom = jnp.sum(e, axis=-1, keepdims=True)
    p = e * pl.reciprocal(denom, approx=True)
    ctx = jnp.einsum("hqk,hkd->hqd", p.astype(v.dtype), v,
                     preferred_element_type=jnp.float32)
    return ctx, p


def _attn_kernel(q_ref, k_ref, v_ref, bias_ref, ctx_ref, *, scale):
    ctx, _ = _attn_core(q_ref, k_ref, v_ref, bias_ref, scale=scale)
    ctx_ref[0] = ctx


def _attn_prob_kernel(q_ref, k_ref, v_ref, bias_ref, ctx_ref, prob_ref, *, scale):
    ctx, p = _attn_core(q_ref, k_ref, v_ref, bias_ref, scale=scale)
    ctx_ref[0] = ctx
    prob_ref[0] = p


def attention(q, k, v, bias, scale, *, return_probs=False):
    """q,k,v: (B, H, T, Dh) bf16; bias: additive (B, Tq, Tk) f32."""
    b, h, tq, dh = q.shape
    tk = k.shape[2]
    q_spec = pl.BlockSpec((1, h, tq, dh), lambda i: (i, 0, 0, 0))
    kv_spec = pl.BlockSpec((1, h, tk, dh), lambda i: (i, 0, 0, 0))
    bias_spec = pl.BlockSpec((1, tq, tk), lambda i: (i, 0, 0))
    ctx_spec = pl.BlockSpec((1, h, tq, dh), lambda i: (i, 0, 0, 0))

    if return_probs:
        kernel = partial(_attn_prob_kernel, scale=scale)
        out_shape = (
            jax.ShapeDtypeStruct((b, h, tq, dh), jnp.float32),
            jax.ShapeDtypeStruct((b, h, tq, tk), jnp.float32),
        )
        out_specs = (ctx_spec, pl.BlockSpec((1, h, tq, tk), lambda i: (i, 0, 0, 0)))
    else:
        kernel = partial(_attn_kernel, scale=scale)
        out_shape = jax.ShapeDtypeStruct((b, h, tq, dh), jnp.float32)
        out_specs = ctx_spec

    return pl.pallas_call(
        kernel,
        out_shape=out_shape,
        grid=(b,),
        in_specs=[q_spec, kv_spec, kv_spec, bias_spec],
        out_specs=out_specs,
        compiler_params=pltpu.CompilerParams(dimension_semantics=("parallel",)),
    )(q, k, v, bias)


# --------------------------- cross entropy ------------------------------------

def _ce_kernel(logits_ref, labels_ref, o_ref, nll_acc, cnt_acc):
    i = pl.program_id(0)

    @pl.when(i == 0)
    def _():
        nll_acc[...] = jnp.zeros_like(nll_acc)
        cnt_acc[...] = jnp.zeros_like(cnt_acc)

    logits = logits_ref[...].astype(jnp.float32)           # (tm, V)
    labels = labels_ref[...]                                # (tm, 1) int32
    m = jnp.max(logits, axis=-1, keepdims=True)
    lse = jnp.log(jnp.sum(jnp.exp(logits - m), axis=-1, keepdims=True)) + m
    col = jax.lax.broadcasted_iota(jnp.int32, logits.shape, 1)
    onehot = (col == labels).astype(jnp.float32)
    picked = jnp.sum(onehot * logits, axis=-1, keepdims=True)
    valid = (labels != -100).astype(jnp.float32)            # ignore_index=-100
    nll_acc[...] += jnp.reshape(jnp.sum((lse - picked) * valid), (1, 1))
    cnt_acc[...] += jnp.reshape(jnp.sum(valid), (1, 1))

    @pl.when(i == pl.num_programs(0) - 1)
    def _():
        o_ref[...] = nll_acc[...] / cnt_acc[...]


def cross_entropy_loss(logits2d, labels1d, *, tm=256):
    n, v = logits2d.shape
    tm = min(tm, _round_up(n, 8))
    n_pad = _round_up(n, tm)
    logits_p = logits2d
    labels_p = labels1d.reshape(n, 1).astype(jnp.int32)
    if n_pad != n:
        logits_p = jnp.pad(logits_p, ((0, n_pad - n), (0, 0)))
        labels_p = jnp.pad(labels_p, ((0, n_pad - n), (0, 0)), constant_values=-100)
    out = pl.pallas_call(
        _ce_kernel,
        out_shape=jax.ShapeDtypeStruct((1, 1), jnp.float32),
        grid=(n_pad // tm,),
        in_specs=[
            pl.BlockSpec((tm, v), lambda i: (i, 0)),
            pl.BlockSpec((tm, 1), lambda i: (i, 0)),
        ],
        out_specs=pl.BlockSpec((1, 1), lambda i: (0, 0)),
        scratch_shapes=[pltpu.VMEM((1, 1), jnp.float32),
                        pltpu.VMEM((1, 1), jnp.float32)],
        compiler_params=pltpu.CompilerParams(dimension_semantics=("arbitrary",)),
    )(logits_p, labels_p)
    return out[0, 0]


# --------------------------- coverage loss ------------------------------------

def _coverage_kernel(attn_ref, loss_ref, cov_out_ref, cov_acc, loss_acc):
    l = pl.program_id(0)

    @pl.when(l == 0)
    def _():
        cov_acc[...] = jnp.zeros_like(cov_acc)
        loss_acc[...] = jnp.zeros_like(loss_acc)

    layer_attention = attn_ref[0]                    # (B, H, T, S)
    attn = jnp.mean(layer_attention, axis=1)         # .mean(dim=1) -> (B, T, S)
    cov = cov_acc[...]                               # (B, B, T, S)
    # torch.min(coverage_vector, attn).sum(dim=-1).mean()
    # (coverage_vector held in its post-broadcast (B,B,T,S) form; layer-0 term is
    #  identically 0 either way since coverage starts at zeros and attn >= 0).
    overlap = jnp.minimum(cov, attn[None, :, :, :])
    bb, _, tt, _ = cov.shape
    loss_acc[...] += jnp.reshape(jnp.sum(overlap) / (bb * bb * tt), (1, 1))
    # coverage_vector = coverage_vector + attn.unsqueeze(1)
    # (reproduces the PyTorch broadcast (B,1,S)+(B,1,T,S) -> (B,B,T,S))
    cov_acc[...] = cov + attn[:, None, :, :]

    @pl.when(l == pl.num_programs(0) - 1)
    def _():
        loss_ref[...] = loss_acc[...]
        cov_out_ref[...] = cov_acc[...]


def coverage_loss(cross_stack):
    l, b, h, t, s = cross_stack.shape
    loss, cov = pl.pallas_call(
        _coverage_kernel,
        out_shape=(
            jax.ShapeDtypeStruct((1, 1), jnp.float32),
            jax.ShapeDtypeStruct((b, b, t, s), jnp.float32),
        ),
        grid=(l,),
        in_specs=[pl.BlockSpec((1, b, h, t, s), lambda i: (i, 0, 0, 0, 0))],
        out_specs=(
            pl.BlockSpec((1, 1), lambda i: (0, 0)),
            pl.BlockSpec((b, b, t, s), lambda i: (0, 0, 0, 0)),
        ),
        scratch_shapes=[pltpu.VMEM((b, b, t, s), jnp.float32),
                        pltpu.VMEM((1, 1), jnp.float32)],
        compiler_params=pltpu.CompilerParams(dimension_semantics=("arbitrary",)),
    )(cross_stack.astype(jnp.float32))
    return loss[0, 0], cov


# --------------------------- plain-JAX glue ------------------------------------

def layer_norm(x, g, b, eps=1e-5):
    mu = jnp.mean(x, axis=-1, keepdims=True)
    var = jnp.mean((x - mu) ** 2, axis=-1, keepdims=True)
    return (x - mu) / jnp.sqrt(var + eps) * g + b


def mha_self(x, p, bias, batch, heads, head_dim):
    d = heads * head_dim
    t = x.shape[1]
    qkv = linear(x.reshape(batch * t, d), p["qkv_w"], p["qkv_b"],
                 out_dtype=jnp.bfloat16)
    qkv = qkv.reshape(batch, t, 3, heads, head_dim).transpose(2, 0, 3, 1, 4)
    ctx = attention(qkv[0], qkv[1], qkv[2], bias, 1.0 / math.sqrt(head_dim))
    ctx = ctx.transpose(0, 2, 1, 3).reshape(batch * t, d)
    return linear(ctx, p["o_w"], p["o_b"]).reshape(batch, t, d)


def mha_cross(x_q, x_kv, p, bias, batch, heads, head_dim):
    d = heads * head_dim
    tq, tk = x_q.shape[1], x_kv.shape[1]
    q = linear(x_q.reshape(batch * tq, d), p["q_w"], p["q_b"],
               out_dtype=jnp.bfloat16)
    q = q.reshape(batch, tq, heads, head_dim).transpose(0, 2, 1, 3)
    kv = linear(x_kv.reshape(batch * tk, d), p["kv_w"], p["kv_b"],
                out_dtype=jnp.bfloat16)
    kv = kv.reshape(batch, tk, 2, heads, head_dim).transpose(2, 0, 3, 1, 4)
    ctx, prob = attention(q, kv[0], kv[1], bias, 1.0 / math.sqrt(head_dim),
                          return_probs=True)
    ctx = ctx.transpose(0, 2, 1, 3).reshape(batch * tq, d)
    out = linear(ctx, p["o_w"], p["o_b"]).reshape(batch, tq, d)
    return out, prob                                  # prob: (B, H, Tq, Tk)


def encoder(params, input_ids, attention_mask, cfg):
    b, s = input_ids.shape
    d, h = cfg["d_model"], cfg["heads"]
    dh = d // h
    x = jnp.take(params["shared"], input_ids, axis=0)
    pos = jnp.take(params["pos_enc"], jnp.arange(s) + 2, axis=0)
    x = x + pos[None]
    x = layer_norm(x, params["enc_ln_emb"]["g"], params["enc_ln_emb"]["b"])
    # pad bias hoisted out of the layer loop; (B, S, S), no head replication.
    pad_bias = (1.0 - attention_mask.astype(jnp.float32))[:, None, :] * NEG_INF
    bias_bqk = jnp.broadcast_to(pad_bias, (b, s, s))
    for lp in params["enc_layers"]:
        residual = x
        a = mha_self(x, lp["self_attn"], bias_bqk, b, h, dh)
        x = layer_norm(residual + a, lp["self_ln"]["g"], lp["self_ln"]["b"])
        residual = x
        f = linear(x.reshape(b * s, d), lp["fc1_w"], lp["fc1_b"])
        f = jax.nn.gelu(f, approximate=False)
        f = linear(f, lp["fc2_w"], lp["fc2_b"]).reshape(b, s, d)
        x = layer_norm(residual + f, lp["final_ln"]["g"], lp["final_ln"]["b"])
    return x


def decoder(params, decoder_input_ids, decoder_attention_mask, enc_out,
            enc_attention_mask, cfg):
    b, t = decoder_input_ids.shape
    s = enc_out.shape[1]
    d, h = cfg["d_model"], cfg["heads"]
    dh = d // h
    x = jnp.take(params["shared"], decoder_input_ids, axis=0)
    pos = jnp.take(params["pos_dec"], jnp.arange(t) + 2, axis=0)
    x = x + pos[None]
    x = layer_norm(x, params["dec_ln_emb"]["g"], params["dec_ln_emb"]["b"])
    # biases hoisted out of the layer loop; jnp.minimum avoids NEG_INF + NEG_INF.
    ii = jnp.arange(t)[:, None]
    jj = jnp.arange(t)[None, :]
    causal = jnp.where(jj > ii, NEG_INF, 0.0).astype(jnp.float32)
    dec_pad = (1.0 - decoder_attention_mask.astype(jnp.float32))[:, None, :] * NEG_INF
    self_bias = jnp.minimum(causal[None], dec_pad)                   # (B,T,T)
    cross_bias = jnp.broadcast_to(
        (1.0 - enc_attention_mask.astype(jnp.float32))[:, None, :] * NEG_INF,
        (b, t, s),
    )
    cross_attentions = []
    for lp in params["dec_layers"]:
        residual = x
        a = mha_self(x, lp["self_attn"], self_bias, b, h, dh)
        x = layer_norm(residual + a, lp["self_ln"]["g"], lp["self_ln"]["b"])
        residual = x
        a, prob = mha_cross(x, enc_out, lp["cross_attn"], cross_bias, b, h, dh)
        cross_attentions.append(prob)                                # (B,H,T,S)
        x = layer_norm(residual + a, lp["cross_ln"]["g"], lp["cross_ln"]["b"])
        residual = x
        f = linear(x.reshape(b * t, d), lp["fc1_w"], lp["fc1_b"])
        f = jax.nn.gelu(f, approximate=False)
        f = linear(f, lp["fc2_w"], lp["fc2_b"]).reshape(b, t, d)
        x = layer_norm(residual + f, lp["final_ln"]["g"], lp["final_ln"]["b"])
    return x, cross_attentions


def enhanced_bart_forward(params, input_ids, attention_mask=None,
                          decoder_input_ids=None, decoder_attention_mask=None,
                          labels=None, use_coverage=True, lambda_coverage=1.0,
                          cfg=None):
    b, s = input_ids.shape
    if attention_mask is None:
        attention_mask = jnp.ones((b, s), jnp.int32)
    t = decoder_input_ids.shape[1]
    if decoder_attention_mask is None:
        decoder_attention_mask = jnp.ones((b, t), jnp.int32)

    enc_out = encoder(params, input_ids, attention_mask, cfg)
    dec_out, cross_attentions = decoder(
        params, decoder_input_ids, decoder_attention_mask, enc_out,
        attention_mask, cfg,
    )
    d, v = cfg["d_model"], cfg["vocab"]
    # tied LM head: pre-transposed shared weights (no per-forward .T).
    logits = linear(
        dec_out.reshape(b * t, d), params["shared_T"], params["final_logits_bias"]
    ).reshape(b, t, v)

    loss = None
    if labels is not None:
        loss = cross_entropy_loss(logits.reshape(b * t, v), labels.reshape(b * t))

    cov_loss = jnp.float32(0.0)
    coverage_vector = None
    if use_coverage:
        cross_stack = jnp.stack(cross_attentions, axis=0)   # (L, B, H, T, S)
        cov_loss, coverage_vector = coverage_loss(cross_stack)
        if loss is not None:
            loss = loss + lambda_coverage * cov_loss

    return dict(
        loss=loss,
        logits=logits,
        cross_attentions=tuple(cross_attentions),
        encoder_last_hidden_state=enc_out,
        coverage_loss=cov_loss,
        coverage_vector=coverage_vector,
    )


# --------------------------- parameter init ------------------------------------

def init_params(key, cfg):
    v, d, f = cfg["vocab"], cfg["d_model"], cfg["ffn"]
    max_pos = cfg["max_pos"]
    keys = iter(jax.random.split(key, 512))

    def nrm(shape, scale=0.02):
        return (scale * jax.random.normal(next(keys), shape)).astype(jnp.float32)

    def zeros(shape):
        return jnp.zeros(shape, jnp.float32)

    def ones(shape):
        return jnp.ones(shape, jnp.float32)

    def attn_self_p():
        return dict(
            qkv_w=jnp.concatenate([nrm((d, d)), nrm((d, d)), nrm((d, d))], axis=1),
            qkv_b=zeros((3 * d,)),
            o_w=nrm((d, d)), o_b=zeros((d,)))

    def attn_cross_p():
        return dict(
            q_w=nrm((d, d)), q_b=zeros((d,)),
            kv_w=jnp.concatenate([nrm((d, d)), nrm((d, d))], axis=1),
            kv_b=zeros((2 * d,)),
            o_w=nrm((d, d)), o_b=zeros((d,)))

    def ln_p():
        return dict(g=ones((d,)), b=zeros((d,)))

    enc_layers = [
        dict(self_attn=attn_self_p(), self_ln=ln_p(),
             fc1_w=nrm((d, f)), fc1_b=zeros((f,)),
             fc2_w=nrm((f, d)), fc2_b=zeros((d,)),
             final_ln=ln_p())
        for _ in range(cfg["enc_layers"])
    ]
    dec_layers = [
        dict(self_attn=attn_self_p(), self_ln=ln_p(),
             cross_attn=attn_cross_p(), cross_ln=ln_p(),
             fc1_w=nrm((d, f)), fc1_b=zeros((f,)),
             fc2_w=nrm((f, d)), fc2_b=zeros((d,)),
             final_ln=ln_p())
        for _ in range(cfg["dec_layers"])
    ]
    shared = nrm((v, d))
    return dict(
        shared=shared,
        shared_T=shared.T,            # tied LM head, transposed once at init
        pos_enc=nrm((max_pos + 2, d)),
        pos_dec=nrm((max_pos + 2, d)),
        enc_ln_emb=ln_p(),
        dec_ln_emb=ln_p(),
        enc_layers=enc_layers,
        dec_layers=dec_layers,
        final_logits_bias=zeros((v,)),
        # nn.Linear(1, d_model): defined in __init__ but never used in forward.
        coverage_projection_w=nrm((1, d)),
        coverage_projection_b=zeros((d,)),
    )


# --------------------------- main ----------------------------------------------

if __name__ == "__main__":
    cfg = dict(vocab=128, d_model=32, heads=4, ffn=64,
               enc_layers=2, dec_layers=2, max_pos=64)
    params = init_params(jax.random.PRNGKey(0), cfg)

    k1, k2, k3 = jax.random.split(jax.random.PRNGKey(0), 3)
    B, S, T = 2, 8, 8
    input_ids = jax.random.randint(k1, (B, S), 0, cfg["vocab"], dtype=jnp.int32)
    decoder_input_ids = jax.random.randint(k2, (B, T), 0, cfg["vocab"], dtype=jnp.int32)
    labels = jax.random.randint(k3, (B, T), 0, cfg["vocab"], dtype=jnp.int32)
    attention_mask = jnp.ones((B, S), jnp.int32)
    decoder_attention_mask = jnp.ones((B, T), jnp.int32)

    fwd = jax.jit(partial(enhanced_bart_forward, cfg=cfg,
                          use_coverage=True, lambda_coverage=1.0))
    out = fwd(
        params, input_ids,
        attention_mask=attention_mask,
        decoder_input_ids=decoder_input_ids,
        decoder_attention_mask=decoder_attention_mask,
        labels=labels,
    )
    jax.block_until_ready(out["loss"])
    assert bool(jnp.isfinite(out["loss"])), "loss is not finite"
    print("KERNEL_OK")
</pallas_src>

<mosaic_0001>
module attributes {stable_mosaic.version = 11 : i64} {
  func.func @_linear_kernel(%arg0: i32, %arg1: i32, %arg2: i32, %arg3: memref<16x128xbf16, #tpu.memory_space<vmem>>, %arg4: memref<128x128xbf16, #tpu.memory_space<vmem>>, %arg5: memref<1x128xf32, #tpu.memory_space<vmem>>, %arg6: memref<16x128xbf16, #tpu.memory_space<vmem>>, %arg7: memref<16x128xf32, #tpu.memory_space<vmem>>) attributes {dimension_semantics = [#tpu.dimension_semantics<parallel>, #tpu.dimension_semantics<parallel>, #tpu.dimension_semantics<arbitrary>], iteration_bounds = array<i64: 1, 1, 1>, scalar_prefetch = 0 : i64, scratch_operands = 1 : i64, tpu.core_type = #tpu.core_type<tc>, window_params = [{transform_indices = @transform_0, window_bounds = array<i64: 16, 128>}, {transform_indices = @transform_1, window_bounds = array<i64: 128, 128>}, {transform_indices = @transform_2, window_bounds = array<i64: 1, 128>}, {transform_indices = @transform_3, window_bounds = array<i64: 16, 128>}]} {
    %c0_i32 = arith.constant 0 : i32
    %0 = arith.cmpi eq, %arg2, %c0_i32 : i32
    %1 = arith.extui %0 : i1 to i32
    %c0_i32_0 = arith.constant 0 : i32
    %2 = arith.cmpi ne, %1, %c0_i32_0 : i32
    scf.if %2 {
      %cst_10 = arith.constant 0.000000e+00 : f32
      %12 = vector.broadcast %cst_10 : f32 to vector<16x128xf32>
      %c0_11 = arith.constant 0 : index
      %c0_12 = arith.constant 0 : index
      %13 = vector.load %arg7[%c0_11, %c0_12] : memref<16x128xf32, #tpu.memory_space<vmem>>, vector<16x128xf32>
      tpu.vector_store %arg7[%c0_11, %c0_12], %12 {strides = array<i32>} : memref<16x128xf32, #tpu.memory_space<vmem>>, vector<16x128xf32>,
    } else {
    }
    %c0 = arith.constant 0 : index
    %c0_1 = arith.constant 0 : index
    %3 = vector.load %arg7[%c0, %c0_1] : memref<16x128xf32, #tpu.memory_space<vmem>>, vector<16x128xf32>
    %c0_2 = arith.constant 0 : index
    %c0_3 = arith.constant 0 : index
    %4 = vector.load %arg3[%c0_2, %c0_3] : memref<16x128xbf16, #tpu.memory_space<vmem>>, vector<16x128xbf16>
    %c0_4 = arith.constant 0 : index
    %c0_5 = arith.constant 0 : index
    %5 = vector.load %arg4[%c0_4, %c0_5] : memref<128x128xbf16, #tpu.memory_space<vmem>>, vector<128x128xbf16>
    %cst = arith.constant dense<0.000000e+00> : vector<16x128xf32>
    %6 = tpu.matmul %4, %5, %cst {dimension_numbers = #tpu.dot_dimension_numbers<[1], [0], [0], [1], [0, 0, 1, 1], [], []>} : vector<16x128xbf16>, vector<128x128xbf16>, vector<16x128xf32> -> vector<16x128xf32>
    %7 = arith.addf %3, %6 : vector<16x128xf32>
    %c0_6 = arith.constant 0 : index
    %c0_7 = arith.constant 0 : index
    %8 = vector.load %arg7[%c0_6, %c0_7] : memref<16x128xf32, #tpu.memory_space<vmem>>, vector<16x128xf32>
    tpu.vector_store %arg7[%c0_6, %c0_7], %7 {strides = array<i32>} : memref<16x128xf32, #tpu.memory_space<vmem>>, vector<16x128xf32>,
    %c0_i32_8 = arith.constant 0 : i32
    %9 = arith.cmpi eq, %arg2, %c0_i32_8 : i32
    %10 = arith.extui %9 : i1 to i32
    %c0_i32_9 = arith.constant 0 : i32
    %11 = arith.cmpi ne, %10, %c0_i32_9 : i32
    scf.if %11 {
      %c0_10 = arith.constant 0 : index
      %c0_11 = arith.constant 0 : index
      %12 = vector.load %arg7[%c0_10, %c0_11] : memref<16x128xf32, #tpu.memory_space<vmem>>, vector<16x128xf32>
      %c0_12 = arith.constant 0 : index
      %c0_13 = arith.constant 0 : index
      %13 = vector.load %arg5[%c0_12, %c0_13] : memref<1x128xf32, #tpu.memory_space<vmem>>, vector<1x128xf32>
      %14 = vector.broadcast %13 : vector<1x128xf32> to vector<16x128xf32>
      %15 = arith.addf %12, %14 : vector<16x128xf32>
      %16 = arith.truncf %15 : vector<16x128xf32> to vector<16x128xbf16>
      %c0_14 = arith.constant 0 : index
      %c0_15 = arith.constant 0 : index
      %17 = vector.load %arg6[%c0_14, %c0_15] : memref<16x128xbf16, #tpu.memory_space<vmem>>, vector<16x128xbf16>
      tpu.vector_store %arg6[%c0_14, %c0_15], %16 {strides = array<i32>} : memref<16x128xbf16, #tpu.memory_space<vmem>>, vector<16x128xbf16>,
    } else {
    }
    return
  }
  func.func @transform_0(%arg0: i32, %arg1: i32, %arg2: i32) -> (i32, i32) {
    %c0_i32 = arith.constant 0 : i32
    return %arg0, %arg2 : i32, i32
  }
  func.func @transform_1(%arg0: i32, %arg1: i32, %arg2: i32) -> (i32, i32) {
    %c0_i32 = arith.constant 0 : i32
    return %arg2, %arg1 : i32, i32
  }
  func.func @transform_2(%arg0: i32, %arg1: i32, %arg2: i32) -> (i32, i32) {
    %c0_i32 = arith.constant 0 : i32
    %c0_i32_0 = arith.constant 0 : i32
    return %c0_i32, %arg1 : i32, i32
  }
  func.func @transform_3(%arg0: i32, %arg1: i32, %arg2: i32) -> (i32, i32) {
    %c0_i32 = arith.constant 0 : i32
    return %arg0, %arg1 : i32, i32
  }
}

module attributes {stable_mosaic.version = 11 : i64} {
  func.func @_attn_kernel(%arg0: i32, %arg1: memref<1x4x8x8xbf16, #tpu.memory_space<vmem>>, %arg2: memref<1x4x8x8xbf16, #tpu.memory_space<vmem>>, %arg3: memref<1x4x8x8xbf16, #tpu.memory_space<vmem>>, %arg4: memref<1x8x8xf32, #tpu.memory_space<vmem>>, %arg5: memref<1x4x8x8xf32, #tpu.memory_space<vmem>>) attributes {dimension_semantics = [#tpu.dimension_semantics<parallel>], iteration_bounds = array<i64: 2>, scalar_prefetch = 0 : i64, scratch_operands = 0 : i64, tpu.core_type = #tpu.core_type<tc>, window_params = [{transform_indices = @transform_0, window_bounds = array<i64: 1, 4, 8, 8>}, {transform_indices = @transform_1, window_bounds = array<i64: 1, 4, 8, 8>}, {transform_indices = @transform_2, window_bounds = array<i64: 1, 4, 8, 8>}, {transform_indices = @transform_3, window_bounds = array<i64: 1, 8, 8>}, {transform_indices = @transform_4, window_bounds = array<i64: 1, 4, 8, 8>}]} {
    %c0 = arith.constant 0 : index
    %c0_0 = arith.constant 0 : index
    %c0_1 = arith.constant 0 : index
    %c0_2 = arith.constant 0 : index
    %0 = vector.load %arg1[%c0, %c0_0, %c0_1, %c0_2] : memref<1x4x8x8xbf16, #tpu.memory_space<vmem>>, vector<1x4x8x8xbf16>
    %1 = vector.shape_cast %0 : vector<1x4x8x8xbf16> to vector<4x8x8xbf16>
    %c0_3 = arith.constant 0 : index
    %c0_4 = arith.constant 0 : index
    %c0_5 = arith.constant 0 : index
    %c0_6 = arith.constant 0 : index
    %2 = vector.load %arg2[%c0_3, %c0_4, %c0_5, %c0_6] : memref<1x4x8x8xbf16, #tpu.memory_space<vmem>>, vector<1x4x8x8xbf16>
    %3 = vector.shape_cast %2 : vector<1x4x8x8xbf16> to vector<4x8x8xbf16>
    %c0_7 = arith.constant 0 : index
    %c0_8 = arith.constant 0 : index
    %c0_9 = arith.constant 0 : index
    %c0_10 = arith.constant 0 : index
    %4 = vector.load %arg3[%c0_7, %c0_8, %c0_9, %c0_10] : memref<1x4x8x8xbf16, #tpu.memory_space<vmem>>, vector<1x4x8x8xbf16>
    %5 = vector.shape_cast %4 : vector<1x4x8x8xbf16> to vector<4x8x8xbf16>
    "tpu.trace_start"() <{level = 10 : i32, message = "hqd,hkd->hqk"}> : () -> ()
    %cst = arith.constant dense<0.000000e+00> : vector<4x8x8xf32>
    %6 = tpu.matmul %1, %3, %cst {dimension_numbers = #tpu.dot_dimension_numbers<[2], [2], [1], [1], [0, 0, 0, 1, 1, 1], [0], [0]>} : vector<4x8x8xbf16>, vector<4x8x8xbf16>, vector<4x8x8xf32> -> vector<4x8x8xf32>
    "tpu.trace_stop"() : () -> ()
    %cst_11 = arith.constant 0.353553385 : f32
    %7 = vector.broadcast %cst_11 : f32 to vector<4x8x8xf32>
    %8 = arith.mulf %6, %7 : vector<4x8x8xf32>
    %c0_12 = arith.constant 0 : index
    %c0_13 = arith.constant 0 : index
    %c0_14 = arith.constant 0 : index
    %9 = vector.load %arg4[%c0_12, %c0_13, %c0_14] : memref<1x8x8xf32, #tpu.memory_space<vmem>>, vector<1x8x8xf32>
    %10 = vector.shape_cast %9 : vector<1x8x8xf32> to vector<8x8xf32>
    %11 = vector.shape_cast %10 : vector<8x8xf32> to vector<1x8x8xf32>
    %12 = vector.broadcast %11 : vector<1x8x8xf32> to vector<4x8x8xf32>
    %13 = arith.addf %8, %12 : vector<4x8x8xf32>
    %cst_15 = arith.constant dense<0xFF800000> : vector<4x8xf32>
    %14 = vector.multi_reduction <maximumf>, %13, %cst_15 [2] : vector<4x8x8xf32> to vector<4x8xf32>
    %15 = vector.shape_cast %14 : vector<4x8xf32> to vector<4x8x1xf32>
    %16 = vector.broadcast %15 : vector<4x8x1xf32> to vector<4x8x8xf32>
    %17 = arith.subf %13, %16 : vector<4x8x8xf32>
    %18 = math.exp %17 : vector<4x8x8xf32>
    %cst_16 = arith.constant dense<0.000000e+00> : vector<4x8xf32>
    %19 = vector.multi_reduction <add>, %18, %cst_16 [2] : vector<4x8x8xf32> to vector<4x8xf32>
    %20 = vector.shape_cast %19 : vector<4x8xf32> to vector<4x8x1xf32>
    %21 = tpu.reciprocal %20 {approx = true} : vector<4x8x1xf32> -> vector<4x8x1xf32>
    %22 = vector.broadcast %21 : vector<4x8x1xf32> to vector<4x8x8xf32>
    %23 = arith.mulf %18, %22 : vector<4x8x8xf32>
    %24 = arith.truncf %23 : vector<4x8x8xf32> to vector<4x8x8xbf16>
    "tpu.trace_start"() <{level = 10 : i32, message = "hqk,hkd->hqd"}> : () -> ()
    %cst_17 = arith.constant dense<0.000000e+00> : vector<4x8x8xf32>
    %25 = tpu.matmul %24, %5, %cst_17 {dimension_numbers = #tpu.dot_dimension_numbers<[2], [1], [1], [2], [0, 0, 0, 1, 1, 2], [0], [0]>} : vector<4x8x8xbf16>, vector<4x8x8xbf16>, vector<4x8x8xf32> -> vector<4x8x8xf32>
    "tpu.trace_stop"() : () -> ()
    %c0_18 = arith.constant 0 : index
    %c0_19 = arith.constant 0 : index
    %c0_20 = arith.constant 0 : index
    %c0_21 = arith.constant 0 : index
    %26 = vector.load %arg5[%c0_18, %c0_19, %c0_20, %c0_21] : memref<1x4x8x8xf32, #tpu.memory_space<vmem>>, vector<1x4x8x8xf32>
    %27 = vector.shape_cast %26 : vector<1x4x8x8xf32> to vector<4x8x8xf32>
    %28 = vector.shape_cast %25 : vector<4x8x8xf32> to vector<1x4x8x8xf32>
    tpu.vector_store %arg5[%c0_18, %c0_19, %c0_20, %c0_21], %28 {strides = array<i32>} : memref<1x4x8x8xf32, #tpu.memory_space<vmem>>, vector<1x4x8x8xf32>,
    return
  }
  func.func @transform_0(%arg0: i32) -> (i32, i32, i32, i32) {
    %c0_i32 = arith.constant 0 : i32
    %c0_i32_0 = arith.constant 0 : i32
    %c0_i32_1 = arith.constant 0 : i32
    %c0_i32_2 = arith.constant 0 : i32
    return %arg0, %c0_i32, %c0_i32_0, %c0_i32_1 : i32, i32, i32, i32
  }
  func.func @transform_1(%arg0: i32) -> (i32, i32, i32, i32) {
    %c0_i32 = arith.constant 0 : i32
    %c0_i32_0 = arith.constant 0 : i32
    %c0_i32_1 = arith.constant 0 : i32
    %c0_i32_2 = arith.constant 0 : i32
    return %arg0, %c0_i32, %c0_i32_0, %c0_i32_1 : i32, i32, i32, i32
  }
  func.func @transform_2(%arg0: i32) -> (i32, i32, i32, i32) {
    %c0_i32 = arith.constant 0 : i32
    %c0_i32_0 = arith.constant 0 : i32
    %c0_i32_1 = arith.constant 0 : i32
    %c0_i32_2 = arith.constant 0 : i32
    return %arg0, %c0_i32, %c0_i32_0, %c0_i32_1 : i32, i32, i32, i32
  }
  func.func @transform_3(%arg0: i32) -> (i32, i32, i32) {
    %c0_i32 = arith.constant 0 : i32
    %c0_i32_0 = arith.constant 0 : i32
    %c0_i32_1 = arith.constant 0 : i32
    return %arg0, %c0_i32, %c0_i32_0 : i32, i32, i32
  }
  func.func @transform_4(%arg0: i32) -> (i32, i32, i32, i32) {
    %c0_i32 = arith.constant 0 : i32
    %c0_i32_0 = arith.constant 0 : i32
    %c0_i32_1 = arith.constant 0 : i32
    %c0_i32_2 = arith.constant 0 : i32
    return %arg0, %c0_i32, %c0_i32_0, %c0_i32_1 : i32, i32, i32, i32
  }
}

module attributes {stable_mosaic.version = 11 : i64} {
  func.func @_linear_kernel(%arg0: i32, %arg1: i32, %arg2: i32, %arg3: memref<16x128xbf16, #tpu.memory_space<vmem>>, %arg4: memref<128x128xbf16, #tpu.memory_space<vmem>>, %arg5: memref<1x128xf32, #tpu.memory_space<vmem>>, %arg6: memref<16x128xf32, #tpu.memory_space<vmem>>, %arg7: memref<16x128xf32, #tpu.memory_space<vmem>>) attributes {dimension_semantics = [#tpu.dimension_semantics<parallel>, #tpu.dimension_semantics<parallel>, #tpu.dimension_semantics<arbitrary>], iteration_bounds = array<i64: 1, 1, 1>, scalar_prefetch = 0 : i64, scratch_operands = 1 : i64, tpu.core_type = #tpu.core_type<tc>, window_params = [{transform_indices = @transform_0, window_bounds = array<i64: 16, 128>}, {transform_indices = @transform_1, window_bounds = array<i64: 128, 128>}, {transform_indices = @transform_2, window_bounds = array<i64: 1, 128>}, {transform_indices = @transform_3, window_bounds = array<i64: 16, 128>}]} {
    %c0_i32 = arith.constant 0 : i32
    %0 = arith.cmpi eq, %arg2, %c0_i32 : i32
    %1 = arith.extui %0 : i1 to i32
    %c0_i32_0 = arith.constant 0 : i32
    %2 = arith.cmpi ne, %1, %c0_i32_0 : i32
    scf.if %2 {
      %cst_10 = arith.constant 0.000000e+00 : f32
      %12 = vector.broadcast %cst_10 : f32 to vector<16x128xf32>
      %c0_11 = arith.constant 0 : index
      %c0_12 = arith.constant 0 : index
      %13 = vector.load %arg7[%c0_11, %c0_12] : memref<16x128xf32, #tpu.memory_space<vmem>>, vector<16x128xf32>
      tpu.vector_store %arg7[%c0_11, %c0_12], %12 {strides = array<i32>} : memref<16x128xf32, #tpu.memory_space<vmem>>, vector<16x128xf32>,
    } else {
    }
    %c0 = arith.constant 0 : index
    %c0_1 = arith.constant 0 : index
    %3 = vector.load %arg7[%c0, %c0_1] : memref<16x128xf32, #tpu.memory_space<vmem>>, vector<16x128xf32>
    %c0_2 = arith.constant 0 : index
    %c0_3 = arith.constant 0 : index
    %4 = vector.load %arg3[%c0_2, %c0_3] : memref<16x128xbf16, #tpu.memory_space<vmem>>, vector<16x128xbf16>
    %c0_4 = arith.constant 0 : index
    %c0_5 = arith.constant 0 : index
    %5 = vector.load %arg4[%c0_4, %c0_5] : memref<128x128xbf16, #tpu.memory_space<vmem>>, vector<128x128xbf16>
    %cst = arith.constant dense<0.000000e+00> : vector<16x128xf32>
    %6 = tpu.matmul %4, %5, %cst {dimension_numbers = #tpu.dot_dimension_numbers<[1], [0], [0], [1], [0, 0, 1, 1], [], []>} : vector<16x128xbf16>, vector<128x128xbf16>, vector<16x128xf32> -> vector<16x128xf32>
    %7 = arith.addf %3, %6 : vector<16x128xf32>
    %c0_6 = arith.constant 0 : index
    %c0_7 = arith.constant 0 : index
    %8 = vector.load %arg7[%c0_6, %c0_7] : memref<16x128xf32, #tpu.memory_space<vmem>>, vector<16x128xf32>
    tpu.vector_store %arg7[%c0_6, %c0_7], %7 {strides = array<i32>} : memref<16x128xf32, #tpu.memory_space<vmem>>, vector<16x128xf32>,
    %c0_i32_8 = arith.constant 0 : i32
    %9 = arith.cmpi eq, %arg2, %c0_i32_8 : i32
    %10 = arith.extui %9 : i1 to i32
    %c0_i32_9 = arith.constant 0 : i32
    %11 = arith.cmpi ne, %10, %c0_i32_9 : i32
    scf.if %11 {
      %c0_10 = arith.constant 0 : index
      %c0_11 = arith.constant 0 : index
      %12 = vector.load %arg7[%c0_10, %c0_11] : memref<16x128xf32, #tpu.memory_space<vmem>>, vector<16x128xf32>
      %c0_12 = arith.constant 0 : index
      %c0_13 = arith.constant 0 : index
      %13 = vector.load %arg5[%c0_12, %c0_13] : memref<1x128xf32, #tpu.memory_space<vmem>>, vector<1x128xf32>
      %14 = vector.broadcast %13 : vector<1x128xf32> to vector<16x128xf32>
      %15 = arith.addf %12, %14 : vector<16x128xf32>
      %c0_14 = arith.constant 0 : index
      %c0_15 = arith.constant 0 : index
      %16 = vector.load %arg6[%c0_14, %c0_15] : memref<16x128xf32, #tpu.memory_space<vmem>>, vector<16x128xf32>
      tpu.vector_store %arg6[%c0_14, %c0_15], %15 {strides = array<i32>} : memref<16x128xf32, #tpu.memory_space<vmem>>, vector<16x128xf32>,
    } else {
    }
    return
  }
  func.func @transform_0(%arg0: i32, %arg1: i32, %arg2: i32) -> (i32, i32) {
    %c0_i32 = arith.constant 0 : i32
    return %arg0, %arg2 : i32, i32
  }
  func.func @transform_1(%arg0: i32, %arg1: i32, %arg2: i32) -> (i32, i32) {
    %c0_i32 = arith.constant 0 : i32
    return %arg2, %arg1 : i32, i32
  }
  func.func @transform_2(%arg0: i32, %arg1: i32, %arg2: i32) -> (i32, i32) {
    %c0_i32 = arith.constant 0 : i32
    %c0_i32_0 = arith.constant 0 : i32
    return %c0_i32, %arg1 : i32, i32
  }
  func.func @transform_3(%arg0: i32, %arg1: i32, %arg2: i32) -> (i32, i32) {
    %c0_i32 = arith.constant 0 : i32
    return %arg0, %arg1 : i32, i32
  }
}

module attributes {stable_mosaic.version = 11 : i64} {
  func.func @_attn_prob_kernel(%arg0: i32, %arg1: memref<1x4x8x8xbf16, #tpu.memory_space<vmem>>, %arg2: memref<1x4x8x8xbf16, #tpu.memory_space<vmem>>, %arg3: memref<1x4x8x8xbf16, #tpu.memory_space<vmem>>, %arg4: memref<1x8x8xf32, #tpu.memory_space<vmem>>, %arg5: memref<1x4x8x8xf32, #tpu.memory_space<vmem>>, %arg6: memref<1x4x8x8xf32, #tpu.memory_space<vmem>>) attributes {dimension_semantics = [#tpu.dimension_semantics<parallel>], iteration_bounds = array<i64: 2>, scalar_prefetch = 0 : i64, scratch_operands = 0 : i64, tpu.core_type = #tpu.core_type<tc>, window_params = [{transform_indices = @transform_0, window_bounds = array<i64: 1, 4, 8, 8>}, {transform_indices = @transform_1, window_bounds = array<i64: 1, 4, 8, 8>}, {transform_indices = @transform_2, window_bounds = array<i64: 1, 4, 8, 8>}, {transform_indices = @transform_3, window_bounds = array<i64: 1, 8, 8>}, {transform_indices = @transform_4, window_bounds = array<i64: 1, 4, 8, 8>}, {transform_indices = @transform_5, window_bounds = array<i64: 1, 4, 8, 8>}]} {
    %c0 = arith.constant 0 : index
    %c0_0 = arith.constant 0 : index
    %c0_1 = arith.constant 0 : index
    %c0_2 = arith.constant 0 : index
    %0 = vector.load %arg1[%c0, %c0_0, %c0_1, %c0_2] : memref<1x4x8x8xbf16, #tpu.memory_space<vmem>>, vector<1x4x8x8xbf16>
    %1 = vector.shape_cast %0 : vector<1x4x8x8xbf16> to vector<4x8x8xbf16>
    %c0_3 = arith.constant 0 : index
    %c0_4 = arith.constant 0 : index
    %c0_5 = arith.constant 0 : index
    %c0_6 = arith.constant 0 : index
    %2 = vector.load %arg2[%c0_3, %c0_4, %c0_5, %c0_6] : memref<1x4x8x8xbf16, #tpu.memory_space<vmem>>, vector<1x4x8x8xbf16>
    %3 = vector.shape_cast %2 : vector<1x4x8x8xbf16> to vector<4x8x8xbf16>
    %c0_7 = arith.constant 0 : index
    %c0_8 = arith.constant 0 : index
    %c0_9 = arith.constant 0 : index
    %c0_10 = arith.constant 0 : index
    %4 = vector.load %arg3[%c0_7, %c0_8, %c0_9, %c0_10] : memref<1x4x8x8xbf16, #tpu.memory_space<vmem>>, vector<1x4x8x8xbf16>
    %5 = vector.shape_cast %4 : vector<1x4x8x8xbf16> to vector<4x8x8xbf16>
    "tpu.trace_start"() <{level = 10 : i32, message = "hqd,hkd->hqk"}> : () -> ()
    %cst = arith.constant dense<0.000000e+00> : vector<4x8x8xf32>
    %6 = tpu.matmul %1, %3, %cst {dimension_numbers = #tpu.dot_dimension_numbers<[2], [2], [1], [1], [0, 0, 0, 1, 1, 1], [0], [0]>} : vector<4x8x8xbf16>, vector<4x8x8xbf16>, vector<4x8x8xf32> -> vector<4x8x8xf32>
    "tpu.trace_stop"() : () -> ()
    %cst_11 = arith.constant 0.353553385 : f32
    %7 = vector.broadcast %cst_11 : f32 to vector<4x8x8xf32>
    %8 = arith.mulf %6, %7 : vector<4x8x8xf32>
    %c0_12 = arith.constant 0 : index
    %c0_13 = arith.constant 0 : index
    %c0_14 = arith.constant 0 : index
    %9 = vector.load %arg4[%c0_12, %c0_13, %c0_14] : memref<1x8x8xf32, #tpu.memory_space<vmem>>, vector<1x8x8xf32>
    %10 = vector.shape_cast %9 : vector<1x8x8xf32> to vector<8x8xf32>
    %11 = vector.shape_cast %10 : vector<8x8xf32> to vector<1x8x8xf32>
    %12 = vector.broadcast %11 : vector<1x8x8xf32> to vector<4x8x8xf32>
    %13 = arith.addf %8, %12 : vector<4x8x8xf32>
    %cst_15 = arith.constant dense<0xFF800000> : vector<4x8xf32>
    %14 = vector.multi_reduction <maximumf>, %13, %cst_15 [2] : vector<4x8x8xf32> to vector<4x8xf32>
    %15 = vector.shape_cast %14 : vector<4x8xf32> to vector<4x8x1xf32>
    %16 = vector.broadcast %15 : vector<4x8x1xf32> to vector<4x8x8xf32>
    %17 = arith.subf %13, %16 : vector<4x8x8xf32>
    %18 = math.exp %17 : vector<4x8x8xf32>
    %cst_16 = arith.constant dense<0.000000e+00> : vector<4x8xf32>
    %19 = vector.multi_reduction <add>, %18, %cst_16 [2] : vector<4x8x8xf32> to vector<4x8xf32>
    %20 = vector.shape_cast %19 : vector<4x8xf32> to vector<4x8x1xf32>
    %21 = tpu.reciprocal %20 {approx = true} : vector<4x8x1xf32> -> vector<4x8x1xf32>
    %22 = vector.broadcast %21 : vector<4x8x1xf32> to vector<4x8x8xf32>
    %23 = arith.mulf %18, %22 : vector<4x8x8xf32>
    %24 = arith.truncf %23 : vector<4x8x8xf32> to vector<4x8x8xbf16>
    "tpu.trace_start"() <{level = 10 : i32, message = "hqk,hkd->hqd"}> : () -> ()
    %cst_17 = arith.constant dense<0.000000e+00> : vector<4x8x8xf32>
    %25 = tpu.matmul %24, %5, %cst_17 {dimension_numbers = #tpu.dot_dimension_numbers<[2], [1], [1], [2], [0, 0, 0, 1, 1, 2], [0], [0]>} : vector<4x8x8xbf16>, vector<4x8x8xbf16>, vector<4x8x8xf32> -> vector<4x8x8xf32>
    "tpu.trace_stop"() : () -> ()
    %c0_18 = arith.constant 0 : index
    %c0_19 = arith.constant 0 : index
    %c0_20 = arith.constant 0 : index
    %c0_21 = arith.constant 0 : index
    %26 = vector.load %arg5[%c0_18, %c0_19, %c0_20, %c0_21] : memref<1x4x8x8xf32, #tpu.memory_space<vmem>>, vector<1x4x8x8xf32>
    %27 = vector.shape_cast %26 : vector<1x4x8x8xf32> to vector<4x8x8xf32>
    %28 = vector.shape_cast %25 : vector<4x8x8xf32> to vector<1x4x8x8xf32>
    tpu.vector_store %arg5[%c0_18, %c0_19, %c0_20, %c0_21], %28 {strides = array<i32>} : memref<1x4x8x8xf32, #tpu.memory_space<vmem>>, vector<1x4x8x8xf32>,
    %c0_22 = arith.constant 0 : index
    %c0_23 = arith.constant 0 : index
    %c0_24 = arith.constant 0 : index
    %c0_25 = arith.constant 0 : index
    %29 = vector.load %arg6[%c0_22, %c0_23, %c0_24, %c0_25] : memref<1x4x8x8xf32, #tpu.memory_space<vmem>>, vector<1x4x8x8xf32>
    %30 = vector.shape_cast %29 : vector<1x4x8x8xf32> to vector<4x8x8xf32>
    %31 = vector.shape_cast %23 : vector<4x8x8xf32> to vector<1x4x8x8xf32>
    tpu.vector_store %arg6[%c0_22, %c0_23, %c0_24, %c0_25], %31 {strides = array<i32>} : memref<1x4x8x8xf32, #tpu.memory_space<vmem>>, vector<1x4x8x8xf32>,
    return
  }
  func.func @transform_0(%arg0: i32) -> (i32, i32, i32, i32) {
    %c0_i32 = arith.constant 0 : i32
    %c0_i32_0 = arith.constant 0 : i32
    %c0_i32_1 = arith.constant 0 : i32
    %c0_i32_2 = arith.constant 0 : i32
    return %arg0, %c0_i32, %c0_i32_0, %c0_i32_1 : i32, i32, i32, i32
  }
  func.func @transform_1(%arg0: i32) -> (i32, i32, i32, i32) {
    %c0_i32 = arith.constant 0 : i32
    %c0_i32_0 = arith.constant 0 : i32
    %c0_i32_1 = arith.constant 0 : i32
    %c0_i32_2 = arith.constant 0 : i32
    return %arg0, %c0_i32, %c0_i32_0, %c0_i32_1 : i32, i32, i32, i32
  }
  func.func @transform_2(%arg0: i32) -> (i32, i32, i32, i32) {
    %c0_i32 = arith.constant 0 : i32
    %c0_i32_0 = arith.constant 0 : i32
    %c0_i32_1 = arith.constant 0 : i32
    %c0_i32_2 = arith.constant 0 : i32
    return %arg0, %c0_i32, %c0_i32_0, %c0_i32_1 : i32, i32, i32, i32
  }
  func.func @transform_3(%arg0: i32) -> (i32, i32, i32) {
    %c0_i32 = arith.constant 0 : i32
    %c0_i32_0 = arith.constant 0 : i32
    %c0_i32_1 = arith.constant 0 : i32
    return %arg0, %c0_i32, %c0_i32_0 : i32, i32, i32
  }
  func.func @transform_4(%arg0: i32) -> (i32, i32, i32, i32) {
    %c0_i32 = arith.constant 0 : i32
    %c0_i32_0 = arith.constant 0 : i32
    %c0_i32_1 = arith.constant 0 : i32
    %c0_i32_2 = arith.constant 0 : i32
    return %arg0, %c0_i32, %c0_i32_0, %c0_i32_1 : i32, i32, i32, i32
  }
  func.func @transform_5(%arg0: i32) -> (i32, i32, i32, i32) {
    %c0_i32 = arith.constant 0 : i32
    %c0_i32_0 = arith.constant 0 : i32
    %c0_i32_1 = arith.constant 0 : i32
    %c0_i32_2 = arith.constant 0 : i32
    return %arg0, %c0_i32, %c0_i32_0, %c0_i32_1 : i32, i32, i32, i32
  }
}

module attributes {stable_mosaic.version = 11 : i64} {
  func.func @_ce_kernel(%arg0: i32, %arg1: memref<16x128xf32, #tpu.memory_space<vmem>>, %arg2: memref<16x1xi32, #tpu.memory_space<vmem>>, %arg3: memref<1x1xf32, #tpu.memory_space<vmem>>, %arg4: memref<1x1xf32, #tpu.memory_space<vmem>>, %arg5: memref<1x1xf32, #tpu.memory_space<vmem>>) attributes {dimension_semantics = [#tpu.dimension_semantics<arbitrary>], iteration_bounds = array<i64: 1>, scalar_prefetch = 0 : i64, scratch_operands = 2 : i64, tpu.core_type = #tpu.core_type<tc>, window_params = [{transform_indices = @transform_0, window_bounds = array<i64: 16, 128>}, {transform_indices = @transform_1, window_bounds = array<i64: 16, 1>}, {pipeline_mode = #tpu.pipeline_mode<synchronous>, transform_indices = @transform_2, window_bounds = array<i64: 1, 1>}]} {
    %c0_i32 = arith.constant 0 : i32
    %0 = arith.cmpi eq, %arg0, %c0_i32 : i32
    %1 = arith.extui %0 : i1 to i32
    %c0_i32_0 = arith.constant 0 : i32
    %2 = arith.cmpi ne, %1, %c0_i32_0 : i32
    scf.if %2 {
      %cst_18 = arith.constant 0.000000e+00 : f32
      %47 = vector.broadcast %cst_18 : f32 to vector<1x1xf32>
      %c0_19 = arith.constant 0 : index
      %c0_20 = arith.constant 0 : index
      %48 = vector.load %arg4[%c0_19, %c0_20] : memref<1x1xf32, #tpu.memory_space<vmem>>, vector<1x1xf32>
      tpu.vector_store %arg4[%c0_19, %c0_20], %47 {strides = array<i32>} : memref<1x1xf32, #tpu.memory_space<vmem>>, vector<1x1xf32>,
      %cst_21 = arith.constant 0.000000e+00 : f32
      %49 = vector.broadcast %cst_21 : f32 to vector<1x1xf32>
      %c0_22 = arith.constant 0 : index
      %c0_23 = arith.constant 0 : index
      %50 = vector.load %arg5[%c0_22, %c0_23] : memref<1x1xf32, #tpu.memory_space<vmem>>, vector<1x1xf32>
      tpu.vector_store %arg5[%c0_22, %c0_23], %49 {strides = array<i32>} : memref<1x1xf32, #tpu.memory_space<vmem>>, vector<1x1xf32>,
    } else {
    }
    %c0 = arith.constant 0 : index
    %c0_1 = arith.constant 0 : index
    %3 = vector.load %arg1[%c0, %c0_1] : memref<16x128xf32, #tpu.memory_space<vmem>>, vector<16x128xf32>
    %c0_2 = arith.constant 0 : index
    %c0_3 = arith.constant 0 : index
    %4 = vector.load %arg2[%c0_2, %c0_3] : memref<16x1xi32, #tpu.memory_space<vmem>>, vector<16x1xi32>
    %cst = arith.constant dense<0xFF800000> : vector<16xf32>
    %5 = vector.multi_reduction <maximumf>, %3, %cst [1] : vector<16x128xf32> to vector<16xf32>
    %6 = vector.shape_cast %5 : vector<16xf32> to vector<16x1xf32>
    %7 = vector.broadcast %6 : vector<16x1xf32> to vector<16x128xf32>
    %8 = arith.subf %3, %7 : vector<16x128xf32>
    %9 = math.exp %8 : vector<16x128xf32>
    %cst_4 = arith.constant dense<0.000000e+00> : vector<16xf32>
    %10 = vector.multi_reduction <add>, %9, %cst_4 [1] : vector<16x128xf32> to vector<16xf32>
    %11 = vector.shape_cast %10 : vector<16xf32> to vector<16x1xf32>
    %12 = math.log %11 : vector<16x1xf32>
    %13 = arith.addf %12, %6 : vector<16x1xf32>
    %14 = tpu.iota {dimensions = array<i32: 1>} : vector<16x128xi32>
    %15 = vector.broadcast %4 : vector<16x1xi32> to vector<16x128xi32>
    %16 = arith.cmpi eq, %14, %15 : vector<16x128xi32>
    %17 = arith.extui %16 : vector<16x128xi1> to vector<16x128xi32>
    %18 = arith.sitofp %17 : vector<16x128xi32> to vector<16x128xf32>
    %19 = arith.mulf %18, %3 : vector<16x128xf32>
    %cst_5 = arith.constant dense<0.000000e+00> : vector<16xf32>
    %20 = vector.multi_reduction <add>, %19, %cst_5 [1] : vector<16x128xf32> to vector<16xf32>
    %21 = vector.shape_cast %20 : vector<16xf32> to vector<16x1xf32>
    %c-100_i32 = arith.constant -100 : i32
    %22 = vector.broadcast %c-100_i32 : i32 to vector<16x1xi32>
    %23 = arith.cmpi ne, %4, %22 : vector<16x1xi32>
    %24 = arith.extui %23 : vector<16x1xi1> to vector<16x1xi32>
    %25 = arith.sitofp %24 : vector<16x1xi32> to vector<16x1xf32>
    %c0_6 = arith.constant 0 : index
    %c0_7 = arith.constant 0 : index
    %26 = vector.load %arg4[%c0_6, %c0_7] : memref<1x1xf32, #tpu.memory_space<vmem>>, vector<1x1xf32>
    %27 = arith.subf %13, %21 : vector<16x1xf32>
    %28 = arith.mulf %27, %25 : vector<16x1xf32>
    %29 = vector.shape_cast %28 : vector<16x1xf32> to vector<1x16x1xf32>
    %cst_8 = arith.constant dense<0.000000e+00> : vector<1xf32>
    %30 = vector.multi_reduction <add>, %29, %cst_8 [1, 2] : vector<1x16x1xf32> to vector<1xf32>
    %31 = vector.shape_cast %30 : vector<1xf32> to vector<1x1x1xf32>
    %32 = vector.extract %31[0, 0, 0] : f32 from vector<1x1x1xf32>
    %33 = vector.broadcast %32 : f32 to vector<1x1xf32>
    %34 = arith.addf %26, %33 : vector<1x1xf32>
    %c0_9 = arith.constant 0 : index
    %c0_10 = arith.constant 0 : index
    %35 = vector.load %arg4[%c0_9, %c0_10] : memref<1x1xf32, #tpu.memory_space<vmem>>, vector<1x1xf32>
    tpu.vector_store %arg4[%c0_9, %c0_10], %34 {strides = array<i32>} : memref<1x1xf32, #tpu.memory_space<vmem>>, vector<1x1xf32>,
    %c0_11 = arith.constant 0 : index
    %c0_12 = arith.constant 0 : index
    %36 = vector.load %arg5[%c0_11, %c0_12] : memref<1x1xf32, #tpu.memory_space<vmem>>, vector<1x1xf32>
    %37 = vector.shape_cast %25 : vector<16x1xf32> to vector<1x16x1xf32>
    %cst_13 = arith.constant dense<0.000000e+00> : vector<1xf32>
    %38 = vector.multi_reduction <add>, %37, %cst_13 [1, 2] : vector<1x16x1xf32> to vector<1xf32>
    %39 = vector.shape_cast %38 : vector<1xf32> to vector<1x1x1xf32>
    %40 = vector.extract %39[0, 0, 0] : f32 from vector<1x1x1xf32>
    %41 = vector.broadcast %40 : f32 to vector<1x1xf32>
    %42 = arith.addf %36, %41 : vector<1x1xf32>
    %c0_14 = arith.constant 0 : index
    %c0_15 = arith.constant 0 : index
    %43 = vector.load %arg5[%c0_14, %c0_15] : memref<1x1xf32, #tpu.memory_space<vmem>>, vector<1x1xf32>
    tpu.vector_store %arg5[%c0_14, %c0_15], %42 {strides = array<i32>} : memref<1x1xf32, #tpu.memory_space<vmem>>, vector<1x1xf32>,
    %c0_i32_16 = arith.constant 0 : i32
    %44 = arith.cmpi eq, %arg0, %c0_i32_16 : i32
    %45 = arith.extui %44 : i1 to i32
    %c0_i32_17 = arith.constant 0 : i32
    %46 = arith.cmpi ne, %45, %c0_i32_17 : i32
    scf.if %46 {
      %c0_18 = arith.constant 0 : index
      %c0_19 = arith.constant 0 : index
      %47 = vector.load %arg4[%c0_18, %c0_19] : memref<1x1xf32, #tpu.memory_space<vmem>>, vector<1x1xf32>
      %c0_20 = arith.constant 0 : index
      %c0_21 = arith.constant 0 : index
      %48 = vector.load %arg5[%c0_20, %c0_21] : memref<1x1xf32, #tpu.memory_space<vmem>>, vector<1x1xf32>
      %49 = arith.divf %47, %48 : vector<1x1xf32>
      %c0_22 = arith.constant 0 : index
      %c0_23 = arith.constant 0 : index
      %50 = vector.load %arg3[%c0_22, %c0_23] : memref<1x1xf32, #tpu.memory_space<vmem>>, vector<1x1xf32>
      tpu.vector_store %arg3[%c0_22, %c0_23], %49 {strides = array<i32>} : memref<1x1xf32, #tpu.memory_space<vmem>>, vector<1x1xf32>,
    } else {
    }
    return
  }
  func.func @transform_0(%arg0: i32) -> (i32, i32) {
    %c0_i32 = arith.constant 0 : i32
    %c0_i32_0 = arith.constant 0 : i32
    return %arg0, %c0_i32 : i32, i32
  }
  func.func @transform_1(%arg0: i32) -> (i32, i32) {
    %c0_i32 = arith.constant 0 : i32
    %c0_i32_0 = arith.constant 0 : i32
    return %arg0, %c0_i32 : i32, i32
  }
  func.func @transform_2(%arg0: i32) -> (i32, i32) {
    %c0_i32 = arith.constant 0 : i32
    %c0_i32_0 = arith.constant 0 : i32
    %c0_i32_1 = arith.constant 0 : i32
    return %c0_i32, %c0_i32_0 : i32, i32
  }
}

module attributes {stable_mosaic.version = 11 : i64} {
  func.func @_coverage_kernel(%arg0: i32, %arg1: memref<1x2x4x8x8xf32, #tpu.memory_space<vmem>>, %arg2: memref<1x1xf32, #tpu.memory_space<vmem>>, %arg3: memref<2x2x8x8xf32, #tpu.memory_space<vmem>>, %arg4: memref<2x2x8x8xf32, #tpu.memory_space<vmem>>, %arg5: memref<1x1xf32, #tpu.memory_space<vmem>>) attributes {dimension_semantics = [#tpu.dimension_semantics<arbitrary>], iteration_bounds = array<i64: 2>, scalar_prefetch = 0 : i64, scratch_operands = 2 : i64, tpu.core_type = #tpu.core_type<tc>, window_params = [{transform_indices = @transform_0, window_bounds = array<i64: 1, 2, 4, 8, 8>}, {pipeline_mode = #tpu.pipeline_mode<synchronous>, transform_indices = @transform_1, window_bounds = array<i64: 1, 1>}, {pipeline_mode = #tpu.pipeline_mode<synchronous>, transform_indices = @transform_2, window_bounds = array<i64: 2, 2, 8, 8>}]} {
    %c0_i32 = arith.constant 0 : i32
    %0 = arith.cmpi eq, %arg0, %c0_i32 : i32
    %1 = arith.extui %0 : i1 to i32
    %c0_i32_0 = arith.constant 0 : i32
    %2 = arith.cmpi ne, %1, %c0_i32_0 : i32
    scf.if %2 {
      %cst_21 = arith.constant 0.000000e+00 : f32
      %28 = vector.broadcast %cst_21 : f32 to vector<2x2x8x8xf32>
      %c0_22 = arith.constant 0 : index
      %c0_23 = arith.constant 0 : index
      %c0_24 = arith.constant 0 : index
      %c0_25 = arith.constant 0 : index
      %29 = vector.load %arg4[%c0_22, %c0_23, %c0_24, %c0_25] : memref<2x2x8x8xf32, #tpu.memory_space<vmem>>, vector<2x2x8x8xf32>
      tpu.vector_store %arg4[%c0_22, %c0_23, %c0_24, %c0_25], %28 {strides = array<i32>} : memref<2x2x8x8xf32, #tpu.memory_space<vmem>>, vector<2x2x8x8xf32>,
      %cst_26 = arith.constant 0.000000e+00 : f32
      %30 = vector.broadcast %cst_26 : f32 to vector<1x1xf32>
      %c0_27 = arith.constant 0 : index
      %c0_28 = arith.constant 0 : index
      %31 = vector.load %arg5[%c0_27, %c0_28] : memref<1x1xf32, #tpu.memory_space<vmem>>, vector<1x1xf32>
      tpu.vector_store %arg5[%c0_27, %c0_28], %30 {strides = array<i32>} : memref<1x1xf32, #tpu.memory_space<vmem>>, vector<1x1xf32>,
    } else {
    }
    %c0 = arith.constant 0 : index
    %c0_1 = arith.constant 0 : index
    %c0_2 = arith.constant 0 : index
    %c0_3 = arith.constant 0 : index
    %c0_4 = arith.constant 0 : index
    %3 = vector.load %arg1[%c0, %c0_1, %c0_2, %c0_3, %c0_4] : memref<1x2x4x8x8xf32, #tpu.memory_space<vmem>>, vector<1x2x4x8x8xf32>
    %4 = vector.shape_cast %3 : vector<1x2x4x8x8xf32> to vector<2x4x8x8xf32>
    %cst = arith.constant dense<0.000000e+00> : vector<2x8x8xf32>
    %5 = vector.multi_reduction <add>, %4, %cst [1] : vector<2x4x8x8xf32> to vector<2x8x8xf32>
    %cst_5 = arith.constant 4.000000e+00 : f32
    %6 = vector.broadcast %cst_5 : f32 to vector<2x8x8xf32>
    %7 = arith.divf %5, %6 : vector<2x8x8xf32>
    %c0_6 = arith.constant 0 : index
    %c0_7 = arith.constant 0 : index
    %c0_8 = arith.constant 0 : index
    %c0_9 = arith.constant 0 : index
    %8 = vector.load %arg4[%c0_6, %c0_7, %c0_8, %c0_9] : memref<2x2x8x8xf32, #tpu.memory_space<vmem>>, vector<2x2x8x8xf32>
    %9 = vector.shape_cast %7 : vector<2x8x8xf32> to vector<1x2x8x8xf32>
    %10 = vector.broadcast %9 : vector<1x2x8x8xf32> to vector<2x2x8x8xf32>
    %11 = arith.minimumf %8, %10 : vector<2x2x8x8xf32>
    %c0_10 = arith.constant 0 : index
    %c0_11 = arith.constant 0 : index
    %12 = vector.load %arg5[%c0_10, %c0_11] : memref<1x1xf32, #tpu.memory_space<vmem>>, vector<1x1xf32>
    %13 = vector.shape_cast %11 : vector<2x2x8x8xf32> to vector<1x2x2x8x8xf32>
    %cst_12 = arith.constant dense<0.000000e+00> : vector<1xf32>
    %14 = vector.multi_reduction <add>, %13, %cst_12 [1, 2, 3, 4] : vector<1x2x2x8x8xf32> to vector<1xf32>
    %15 = vector.shape_cast %14 : vector<1xf32> to vector<1x1x1x1x1xf32>
    %16 = vector.extract %15[0, 0, 0, 0, 0] : f32 from vector<1x1x1x1x1xf32>
    %cst_13 = arith.constant 3.200000e+01 : f32
    %17 = arith.divf %16, %cst_13 : f32
    %18 = vector.broadcast %17 : f32 to vector<1x1xf32>
    %19 = arith.addf %12, %18 : vector<1x1xf32>
    %c0_14 = arith.constant 0 : index
    %c0_15 = arith.constant 0 : index
    %20 = vector.load %arg5[%c0_14, %c0_15] : memref<1x1xf32, #tpu.memory_space<vmem>>, vector<1x1xf32>
    tpu.vector_store %arg5[%c0_14, %c0_15], %19 {strides = array<i32>} : memref<1x1xf32, #tpu.memory_space<vmem>>, vector<1x1xf32>,
    %21 = vector.shape_cast %7 : vector<2x8x8xf32> to vector<2x1x8x8xf32>
    %22 = vector.broadcast %21 : vector<2x1x8x8xf32> to vector<2x2x8x8xf32>
    %23 = arith.addf %8, %22 : vector<2x2x8x8xf32>
    %c0_16 = arith.constant 0 : index
    %c0_17 = arith.constant 0 : index
    %c0_18 = arith.constant 0 : index
    %c0_19 = arith.constant 0 : index
    %24 = vector.load %arg4[%c0_16, %c0_17, %c0_18, %c0_19] : memref<2x2x8x8xf32, #tpu.memory_space<vmem>>, vector<2x2x8x8xf32>
    tpu.vector_store %arg4[%c0_16, %c0_17, %c0_18, %c0_19], %23 {strides = array<i32>} : memref<2x2x8x8xf32, #tpu.memory_space<vmem>>, vector<2x2x8x8xf32>,
    %c1_i32 = arith.constant 1 : i32
    %25 = arith.cmpi eq, %arg0, %c1_i32 : i32
    %26 = arith.extui %25 : i1 to i32
    %c0_i32_20 = arith.constant 0 : i32
    %27 = arith.cmpi ne, %26, %c0_i32_20 : i32
    scf.if %27 {
      %c0_21 = arith.constant 0 : index
      %c0_22 = arith.constant 0 : index
      %28 = vector.load %arg5[%c0_21, %c0_22] : memref<1x1xf32, #tpu.memory_space<vmem>>, vector<1x1xf32>
      %c0_23 = arith.constant 0 : index
      %c0_24 = arith.constant 0 : index
      %29 = vector.load %arg2[%c0_23, %c0_24] : memref<1x1xf32, #tpu.memory_space<vmem>>, vector<1x1xf32>
      tpu.vector_store %arg2[%c0_23, %c0_24], %28 {strides = array<i32>} : memref<1x1xf32, #tpu.memory_space<vmem>>, vector<1x1xf32>,
      %c0_25 = arith.constant 0 : index
      %c0_26 = arith.constant 0 : index
      %c0_27 = arith.constant 0 : index
      %c0_28 = arith.constant 0 : index
      %30 = vector.load %arg4[%c0_25, %c0_26, %c0_27, %c0_28] : memref<2x2x8x8xf32, #tpu.memory_space<vmem>>, vector<2x2x8x8xf32>
      %c0_29 = arith.constant 0 : index
      %c0_30 = arith.constant 0 : index
      %c0_31 = arith.constant 0 : index
      %c0_32 = arith.constant 0 : index
      %31 = vector.load %arg3[%c0_29, %c0_30, %c0_31, %c0_32] : memref<2x2x8x8xf32, #tpu.memory_space<vmem>>, vector<2x2x8x8xf32>
      tpu.vector_store %arg3[%c0_29, %c0_30, %c0_31, %c0_32], %30 {strides = array<i32>} : memref<2x2x8x8xf32, #tpu.memory_space<vmem>>, vector<2x2x8x8xf32>,
    } else {
    }
    return
  }
  func.func @transform_0(%arg0: i32) -> (i32, i32, i32, i32, i32) {
    %c0_i32 = arith.constant 0 : i32
    %c0_i32_0 = arith.constant 0 : i32
    %c0_i32_1 = arith.constant 0 : i32
    %c0_i32_2 = arith.constant 0 : i32
    %c0_i32_3 = arith.constant 0 : i32
    return %arg0, %c0_i32, %c0_i32_0, %c0_i32_1, %c0_i32_2 : i32, i32, i32, i32, i32
  }
  func.func @transform_1(%arg0: i32) -> (i32, i32) {
    %c0_i32 = arith.constant 0 : i32
    %c0_i32_0 = arith.constant 0 : i32
    %c0_i32_1 = arith.constant 0 : i32
    return %c0_i32, %c0_i32_0 : i32, i32
  }
  func.func @transform_2(%arg0: i32) -> (i32, i32, i32, i32) {
    %c0_i32 = arith.constant 0 : i32
    %c0_i32_0 = arith.constant 0 : i32
    %c0_i32_1 = arith.constant 0 : i32
    %c0_i32_2 = arith.constant 0 : i32
    %c0_i32_3 = arith.constant 0 : i32
    return %c0_i32, %c0_i32_0, %c0_i32_1, %c0_i32_2 : i32, i32, i32, i32
  }
}

</mosaic_0001>

<llo_original>
// kernel: enhanced_bart_forward.33
$region0: #{enhanced_bart_forward.33}
  #allocation0 [shape = 'u32[]', space=smem, size = 0x4, offset = 0x4, fixed_abs, tag = 'smem constant byte address 0x4 - core index']
  #allocation1 [shape = 'u32[144,128]{1,0:T(1,128)}', space=vmem, size = 0x12000, scoped, tag = 'internal scratch']
  #allocation2 [shape = 'f32[16,128]{1,0:T(8,128)}', space=vmem, size = 0x2000, scoped, tag = 'scratch operand']
  %s0 = inlined_call_operand.hbm [shape: bf16[16,128], index: 0, kind: input, shape index: {}]
  %s1 = inlined_call_operand.hbm [shape: bf16[128,128], index: 1, kind: input, shape index: {}]
  %s2 = inlined_call_operand.hbm [shape: f32[1,128], index: 2, kind: input, shape index: {}]
  %s3 = inlined_call_operand.hbm [shape: f32[16,128], index: 3, kind: output, shape index: {}]
  %s4 = sld [smem:[#allocation0]]
  $region42: #{enhanced_bart_forward.33} parent=0
    _
  %s6 = ssub.s32 1, %s4
  %s7 = scalar_select 0, %s6, %s4
  $region1: #{enhanced_bart_forward.33} parent=0
    #allocation3 [shape = 'u8[4096]{0}', space=vmem, size = 0x1000, scoped, tag = 'input window, operand 0, single buffered']
    #allocation4 [shape = 's32[1]{0}', space=sflag, size = 0x4, scoped, tag = 'scoped memory for enhanced_bart_forward.33']
    #allocation5 [shape = 's32[1]{0}', space=sflag, size = 0x4, scoped, tag = 'scoped memory for enhanced_bart_forward.33']
    #allocation6 [shape = 'u8[32768]{0}', space=vmem, size = 0x8000, scoped, tag = 'input window, operand 1, single buffered']
    #allocation7 [shape = 's32[1]{0}', space=sflag, size = 0x4, scoped, tag = 'scoped memory for enhanced_bart_forward.33']
    #allocation8 [shape = 'u8[512]{0}', space=vmem, size = 0x400, scoped, tag = 'input window, operand 2, single buffered']
    #allocation9 [shape = 'u8[8192]{0}', space=vmem, size = 0x2000, scoped, tag = 'output window, operand 0, single buffered']
    %8 = vsyncpa [#allocation4], 0
    %9 = vsyncpa [#allocation7], 0
    %10 = vsyncpa [#allocation5], 0
    // Predicated region
    $region2: #{enhanced_bart_forward.33} parent=1 // pred_check
      _
    $region3: #{enhanced_bart_forward.33} parent=1 // pred_check_branch
      %12 = sbr.rel (0) target = $region5
    $region4: #{enhanced_bart_forward.33} parent=1 // pred_region
      %s14 = ssub.s32 128, 128
      %15 = vsyncadd [#allocation4], %s14
      %s16 = sshll.u32 [#allocation3], 4
      %s17 = int_to_ptr.vmem [resolvable:$true] %s16
      %22 = dma.hbm_to_vmem [thread:$0]  %s0, 128, %s17, [#allocation4], 64, 64, 4
    $region5: #{enhanced_bart_forward.33} parent=1 // pred_fallthru
      _
    // Predicated region
    $region6: #{enhanced_bart_forward.33} parent=1 // pred_check
      _
    $region7: #{enhanced_bart_forward.33} parent=1 // pred_check_branch
      %24 = sbr.rel (0) target = $region9
    $region8: #{enhanced_bart_forward.33} parent=1 // pred_region
      %s26 = ssub.s32 1024, 1024
      %27 = vsyncadd [#allocation7], %s26
      %s28 = sshll.u32 [#allocation6], 4
      %s29 = int_to_ptr.vmem [resolvable:$true] %s28
      %34 = dma.hbm_to_vmem [thread:$0]  %s1, 1024, %s29, [#allocation7], 64, 64, 4
    $region9: #{enhanced_bart_forward.33} parent=1 // pred_fallthru
      _
    // Predicated region
    $region10: #{enhanced_bart_forward.33} parent=1 // pred_check
      _
    $region11: #{enhanced_bart_forward.33} parent=1 // pred_check_branch
      %36 = sbr.rel (0) target = $region13
    $region12: #{enhanced_bart_forward.33} parent=1 // pred_region
      %s38 = ssub.s32 16, 16
      %39 = vsyncadd [#allocation7], %s38
      %s41 = sshll.u32 [#allocation8], 4
      %s42 = int_to_ptr.vmem [resolvable:$true] %s41
      %44 = dma.hbm_to_vmem [thread:$0]  %s2, 16, %s42, [#allocation7]
    $region13: #{enhanced_bart_forward.33} parent=1 // pred_fallthru
      _
    // Predicated region
    $region14: #{enhanced_bart_forward.33} parent=1 // pred_check
      _
    $region15: #{enhanced_bart_forward.33} parent=1 // pred_check_branch
      %46 = sbr.rel (0) target = $region17
    $region16: #{enhanced_bart_forward.33} parent=1 // pred_region
      %47 = dma.done [#allocation4], 128
    $region17: #{enhanced_bart_forward.33} parent=1 // pred_fallthru
      _
    // Predicated region
    $region18: #{enhanced_bart_forward.33} parent=1 // pred_check
      _
    $region19: #{enhanced_bart_forward.33} parent=1 // pred_check_branch
      %49 = sbr.rel (0) target = $region21
    $region20: #{enhanced_bart_forward.33} parent=1 // pred_region
      %50 = dma.done [#allocation7], 1024
    $region21: #{enhanced_bart_forward.33} parent=1 // pred_fallthru
      _
    // Predicated region
    $region22: #{enhanced_bart_forward.33} parent=1 // pred_check
      _
    $region23: #{enhanced_bart_forward.33} parent=1 // pred_check_branch
      %52 = sbr.rel (0) target = $region25
    $region24: #{enhanced_bart_forward.33} parent=1 // pred_region
      %53 = dma.done [#allocation7], 16
    $region25: #{enhanced_bart_forward.33} parent=1 // pred_fallthru
      _
    %p55 = scmp.eq.s32.totalorder 0, 0
    // Predicated region
    $region26: #{enhanced_bart_forward.33} parent=1 // pred_check
      %p56 = pneg %p55
    $region27: #{enhanced_bart_forward.33} parent=1 // pred_check_branch
      %58 = sbr.rel (%p56) target = $region29
    $region28: #{enhanced_bart_forward.33} parent=1 // pred_region
      %59 = vst [vmem:[#allocation2] sm:$0xff] 0.0
      %60 = vst [vmem:[#allocation2 + $0x8] sm:$0xff] 0.0
    $region29: #{enhanced_bart_forward.33} parent=1 // pred_fallthru
      _
    %v61 = vld [vmem:[#allocation2] sm:$0xff]
    %v62 = vld [vmem:[#allocation2 + $0x8] sm:$0xff]
    %v63 = vld [vmem:[#allocation3] sm:$0xf]
    %v64 = vld [vmem:[#allocation3 + $0x4] sm:$0xf]
    %v65 = vld [vmem:[#allocation6] sm:$0xf]
    %v66 = vld [vmem:[#allocation6 + $0x4] sm:$0xf]
    %v67 = vld [vmem:[#allocation6 + $0x8] sm:$0xf]
    %v68 = vld [vmem:[#allocation6 + $0xc] sm:$0xf]
    %v69 = vld [vmem:[#allocation6 + $0x10] sm:$0xf]
    %v70 = vld [vmem:[#allocation6 + $0x14] sm:$0xf]
    %v71 = vld [vmem:[#allocation6 + $0x18] sm:$0xf]
    %v72 = vld [vmem:[#allocation6 + $0x1c] sm:$0xf]
    %v73 = vld [vmem:[#allocation6 + $0x20] sm:$0xf]
    %v74 = vld [vmem:[#allocation6 + $0x24] sm:$0xf]
    %v75 = vld [vmem:[#allocation6 + $0x28] sm:$0xf]
    %v76 = vld [vmem:[#allocation6 + $0x2c] sm:$0xf]
    %v77 = vld [vmem:[#allocation6 + $0x30] sm:$0xf]
    %v78 = vld [vmem:[#allocation6 + $0x34] sm:$0xf]
    %v79 = vld [vmem:[#allocation6 + $0x38] sm:$0xf]
    %v80 = vld [vmem:[#allocation6 + $0x3c] sm:$0xf]
    %v83 = vunpack.c.l.b16 %v63
    %v84 = vunpack.c.l.b16 %v64
    %v85 = vpack.c.b16 %v84, %v83
    %v103 = vunpack.c.l.b16 %v65
    %v104 = vunpack.c.l.b16 %v66
    %v105 = vunpack.c.l.b16 %v67
    %v106 = vunpack.c.l.b16 %v68
    %v107 = vunpack.c.l.b16 %v69
    %v108 = vunpack.c.l.b16 %v70
    %v109 = vunpack.c.l.b16 %v71
    %v110 = vunpack.c.l.b16 %v72
    %v111 = vunpack.c.l.b16 %v73
    %v112 = vunpack.c.l.b16 %v74
    %v113 = vunpack.c.l.b16 %v75
    %v114 = vunpack.c.l.b16 %v76
    %v115 = vunpack.c.l.b16 %v77
    %v116 = vunpack.c.l.b16 %v78
    %v117 = vunpack.c.l.b16 %v79
    %v118 = vunpack.c.l.b16 %v80
    %v119 = vpack.c.b16 %v104, %v103
    %v120 = vpack.c.b16 %v106, %v105
    %v121 = vpack.c.b16 %v108, %v107
    %v122 = vpack.c.b16 %v110, %v109
    %v123 = vpack.c.b16 %v112, %v111
    %v124 = vpack.c.b16 %v114, %v113
    %v125 = vpack.c.b16 %v116, %v115
    %v126 = vpack.c.b16 %v118, %v117
    %135 = vmatprep.subr.bf16.mxu0 0
    %136 = vmatpush1.bf16.msra.mxu0 %v119
    %137 = vmatprep.subr.bf16.mxu0 0
    %138 = vmatpush1.bf16.msra.mxu0 %v120
    %139 = vmatprep.subr.bf16.mxu0 0
    %140 = vmatpush1.bf16.msra.mxu0 %v121
    %141 = vmatprep.subr.bf16.mxu0 0
    %142 = vmatpush1.bf16.msra.mxu0 %v122
    %143 = vmatprep.subr.bf16.mxu0 0
    %144 = vmatpush1.bf16.msra.mxu0 %v123
    %145 = vmatprep.subr.bf16.mxu0 0
    %146 = vmatpush1.bf16.msra.mxu0 %v124
    %147 = vmatprep.subr.bf16.mxu0 0
    %148 = vmatpush1.bf16.msra.mxu0 %v125
    %149 = vmatprep.subr.bf16.mxu0 0
    %150 = vmatpush1.bf16.msra.mxu0 %v126
    %151 = vmatprep.subr.bf16.mxu0 0
    %152 = vmatpush1.bf16.msra.mxu0 0
    %153 = vmatprep.subr.bf16.mxu0 0
    %154 = vmatpush1.bf16.msra.mxu0 0
    %155 = vmatprep.subr.bf16.mxu0 0
    %156 = vmatpush1.bf16.msra.mxu0 0
    %157 = vmatprep.subr.bf16.mxu0 0
    %158 = vmatpush1.bf16.msra.mxu0 0
    %159 = vmatprep.subr.bf16.mxu0 0
    %160 = vmatpush1.bf16.msra.mxu0 0
    %161 = vmatprep.subr.bf16.mxu0 0
    %162 = vmatpush1.bf16.msra.mxu0 0
    %163 = vmatprep.subr.bf16.mxu0 0
    %164 = vmatpush1.bf16.msra.mxu0 0
    %165 = vmatprep.subr.bf16.mxu0 0
    %166 = vmatpush1.bf16.msra.mxu0 0
    %167 = vmatprep.mubr.bf16.mxu0 0
    %168 = vmatmul.mubr.bf16.gmra.mrb[0].mxu0 %v85
    %v169 = vpop.f32.mrb[0].mxu0
    %v170 = vadd.f32 0.0, %v169
    %v171 = vpop.f32.mrb[0].mxu0
    %v172 = vpop.f32.mrb[0].mxu0
    %v173 = vadd.f32 0.0, %v172
    %v174 = vpop.f32.mrb[0].mxu0
    %175 = vdwg.mxu0
    %v176 = vadd.f32 %v61, %v170
    %v177 = vadd.f32 %v62, %v173
    %178 = vst [vmem:[#allocation2] sm:$0xff] %v176
    %179 = vst [vmem:[#allocation2 + $0x8] sm:$0xff] %v177
    // Predicated region
    $region30: #{enhanced_bart_forward.33} parent=1 // pred_check
      %p180 = pneg %p55
    $region31: #{enhanced_bart_forward.33} parent=1 // pred_check_branch
      %182 = sbr.rel (%p180) target = $region33
    $region32: #{enhanced_bart_forward.33} parent=1 // pred_region
      %v183 = vld [vmem:[#allocation2] sm:$0xff]
      %v184 = vld [vmem:[#allocation2 + $0x8] sm:$0xff]
      %v185 = vld [vmem:[#allocation8] sm:$0x1]
      %v187 = vlaneseq
      %v188 = vshrl.u32 %v187, 7
      %v189 = vsub.s32 0, %v188
      %v190 = vrot.slane %v185, %v189
      %v192 = vadd.f32 %v183, %v190
      %v193 = vadd.f32 %v184, %v190
      %194 = vst [vmem:[#allocation9] sm:$0xff] %v192
      %195 = vst [vmem:[#allocation9 + $0x8] sm:$0xff] %v193
    $region33: #{enhanced_bart_forward.33} parent=1 // pred_fallthru
      _
    // Predicated region
    $region34: #{enhanced_bart_forward.33} parent=1 // pred_check
      _
    $region35: #{enhanced_bart_forward.33} parent=1 // pred_check_branch
      %197 = sbr.rel (0) target = $region37
    $region36: #{enhanced_bart_forward.33} parent=1 // pred_region
      %s199 = ssub.s32 256, 256
      %200 = vsyncadd [#allocation5], %s199
      %s201 = sshll.u32 [#allocation9], 4
      %s202 = int_to_ptr.vmem [resolvable:$true] %s201
      %207 = dma.vmem_to_hbm [thread:$0]  %s202, 256, %s3, [#allocation5], 128, 128, 8
    $region37: #{enhanced_bart_forward.33} parent=1 // pred_fallthru
      _
    // Predicated region
    $region38: #{enhanced_bart_forward.33} parent=1 // pred_check
      _
    $region39: #{enhanced_bart_forward.33} parent=1 // pred_check_branch
      %209 = sbr.rel (0) target = $region41
    $region40: #{enhanced_bart_forward.33} parent=1 // pred_region
      %210 = dma.done [#allocation5], 256
    $region41: #{enhanced_bart_forward.33} parent=1 // pred_fallthru
      _
    %211 = vsyncpa [#allocation4], 1
    %212 = vsyncpa [#allocation7], 1
    %213 = vsyncpa [#allocation5], 1

// kernel: enhanced_bart_forward.31
$region0: #{enhanced_bart_forward.31}
  #allocation0 [shape = 'u32[]', space=smem, size = 0x4, offset = 0x4, fixed_abs, tag = 'smem constant byte address 0x4 - core index']
  #allocation1 [shape = 'u32[144,128]{1,0:T(1,128)}', space=vmem, size = 0x12000, scoped, tag = 'internal scratch']
  #allocation2 [shape = 'f32[16,128]{1,0:T(8,128)}', space=vmem, size = 0x2000, scoped, tag = 'scratch operand']
  %s0 = inlined_call_operand.hbm [shape: bf16[16,128], index: 0, kind: input, shape index: {}]
  %s1 = inlined_call_operand.hbm [shape: bf16[128,128], index: 1, kind: input, shape index: {}]
  %s2 = inlined_call_operand.hbm [shape: f32[1,128], index: 2, kind: input, shape index: {}]
  %s3 = inlined_call_operand.hbm [shape: bf16[16,128], index: 3, kind: output, shape index: {}]
  %s4 = sld [smem:[#allocation0]]
  $region42: #{enhanced_bart_forward.31} parent=0
    _
  %s6 = ssub.s32 1, %s4
  %s7 = scalar_select 0, %s6, %s4
  $region1: #{enhanced_bart_forward.31} parent=0
    #allocation3 [shape = 'u8[4096]{0}', space=vmem, size = 0x1000, scoped, tag = 'input window, operand 0, single buffered']
    #allocation4 [shape = 's32[1]{0}', space=sflag, size = 0x4, scoped, tag = 'scoped memory for enhanced_bart_forward.31']
    #allocation5 [shape = 's32[1]{0}', space=sflag, size = 0x4, scoped, tag = 'scoped memory for enhanced_bart_forward.31']
    #allocation6 [shape = 'u8[32768]{0}', space=vmem, size = 0x8000, scoped, tag = 'input window, operand 1, single buffered']
    #allocation7 [shape = 's32[1]{0}', space=sflag, size = 0x4, scoped, tag = 'scoped memory for enhanced_bart_forward.31']
    #allocation8 [shape = 'u8[512]{0}', space=vmem, size = 0x400, scoped, tag = 'input window, operand 2, single buffered']
    #allocation9 [shape = 'u8[4096]{0}', space=vmem, size = 0x1000, scoped, tag = 'output window, operand 0, single buffered']
    %8 = vsyncpa [#allocation4], 0
    %9 = vsyncpa [#allocation7], 0
    %10 = vsyncpa [#allocation5], 0
    // Predicated region
    $region2: #{enhanced_bart_forward.31} parent=1 // pred_check
      _
    $region3: #{enhanced_bart_forward.31} parent=1 // pred_check_branch
      %12 = sbr.rel (0) target = $region5
    $region4: #{enhanced_bart_forward.31} parent=1 // pred_region
      %s14 = ssub.s32 128, 128
      %15 = vsyncadd [#allocation4], %s14
      %s16 = sshll.u32 [#allocation3], 4
      %s17 = int_to_ptr.vmem [resolvable:$true] %s16
      %22 = dma.hbm_to_vmem [thread:$0]  %s0, 128, %s17, [#allocation4], 64, 64, 4
    $region5: #{enhanced_bart_forward.31} parent=1 // pred_fallthru
      _
    // Predicated region
    $region6: #{enhanced_bart_forward.31} parent=1 // pred_check
      _
    $region7: #{enhanced_bart_forward.31} parent=1 // pred_check_branch
      %24 = sbr.rel (0) target = $region9
    $region8: #{enhanced_bart_forward.31} parent=1 // pred_region
      %s26 = ssub.s32 1024, 1024
      %27 = vsyncadd [#allocation7], %s26
      %s28 = sshll.u32 [#allocation6], 4
      %s29 = int_to_ptr.vmem [resolvable:$true] %s28
      %34 = dma.hbm_to_vmem [thread:$0]  %s1, 1024, %s29, [#allocation7], 64, 64, 4
    $region9: #{enhanced_bart_forward.31} parent=1 // pred_fallthru
      _
    // Predicated region
    $region10: #{enhanced_bart_forward.31} parent=1 // pred_check
      _
    $region11: #{enhanced_bart_forward.31} parent=1 // pred_check_branch
      %36 = sbr.rel (0) target = $region13
    $region12: #{enhanced_bart_forward.31} parent=1 // pred_region
      %s38 = ssub.s32 16, 16
      %39 = vsyncadd [#allocation7], %s38
      %s41 = sshll.u32 [#allocation8], 4
      %s42 = int_to_ptr.vmem [resolvable:$true] %s41
      %44 = dma.hbm_to_vmem [thread:$0]  %s2, 16, %s42, [#allocation7]
    $region13: #{enhanced_bart_forward.31} parent=1 // pred_fallthru
      _
    // Predicated region
    $region14: #{enhanced_bart_forward.31} parent=1 // pred_check
      _
    $region15: #{enhanced_bart_forward.31} parent=1 // pred_check_branch
      %46 = sbr.rel (0) target = $region17
    $region16: #{enhanced_bart_forward.31} parent=1 // pred_region
      %47 = dma.done [#allocation4], 128
    $region17: #{enhanced_bart_forward.31} parent=1 // pred_fallthru
      _
    // Predicated region
    $region18: #{enhanced_bart_forward.31} parent=1 // pred_check
      _
    $region19: #{enhanced_bart_forward.31} parent=1 // pred_check_branch
      %49 = sbr.rel (0) target = $region21
    $region20: #{enhanced_bart_forward.31} parent=1 // pred_region
      %50 = dma.done [#allocation7], 1024
    $region21: #{enhanced_bart_forward.31} parent=1 // pred_fallthru
      _
    // Predicated region
    $region22: #{enhanced_bart_forward.31} parent=1 // pred_check
      _
    $region23: #{enhanced_bart_forward.31} parent=1 // pred_check_branch
      %52 = sbr.rel (0) target = $region25
    $region24: #{enhanced_bart_forward.31} parent=1 // pred_region
      %53 = dma.done [#allocation7], 16
    $region25: #{enhanced_bart_forward.31} parent=1 // pred_fallthru
      _
    %p55 = scmp.eq.s32.totalorder 0, 0
    // Predicated region
    $region26: #{enhanced_bart_forward.31} parent=1 // pred_check
      %p56 = pneg %p55
    $region27: #{enhanced_bart_forward.31} parent=1 // pred_check_branch
      %58 = sbr.rel (%p56) target = $region29
    $region28: #{enhanced_bart_forward.31} parent=1 // pred_region
      %59 = vst [vmem:[#allocation2] sm:$0xff] 0.0
      %60 = vst [vmem:[#allocation2 + $0x8] sm:$0xff] 0.0
    $region29: #{enhanced_bart_forward.31} parent=1 // pred_fallthru
      _
    %v61 = vld [vmem:[#allocation2] sm:$0xff]
    %v62 = vld [vmem:[#allocation2 + $0x8] sm:$0xff]
    %v63 = vld [vmem:[#allocation3] sm:$0xf]
    %v64 = vld [vmem:[#allocation3 + $0x4] sm:$0xf]
    %v65 = vld [vmem:[#allocation6] sm:$0xf]
    %v66 = vld [vmem:[#allocation6 + $0x4] sm:$0xf]
    %v67 = vld [vmem:[#allocation6 + $0x8] sm:$0xf]
    %v68 = vld [vmem:[#allocation6 + $0xc] sm:$0xf]
    %v69 = vld [vmem:[#allocation6 + $0x10] sm:$0xf]
    %v70 = vld [vmem:[#allocation6 + $0x14] sm:$0xf]
    %v71 = vld [vmem:[#allocation6 + $0x18] sm:$0xf]
    %v72 = vld [vmem:[#allocation6 + $0x1c] sm:$0xf]
    %v73 = vld [vmem:[#allocation6 + $0x20] sm:$0xf]
    %v74 = vld [vmem:[#allocation6 + $0x24] sm:$0xf]
    %v75 = vld [vmem:[#allocation6 + $0x28] sm:$0xf]
    %v76 = vld [vmem:[#allocation6 + $0x2c] sm:$0xf]
    %v77 = vld [vmem:[#allocation6 + $0x30] sm:$0xf]
    %v78 = vld [vmem:[#allocation6 + $0x34] sm:$0xf]
    %v79 = vld [vmem:[#allocation6 + $0x38] sm:$0xf]
    %v80 = vld [vmem:[#allocation6 + $0x3c] sm:$0xf]
    %v83 = vunpack.c.l.b16 %v63
    %v84 = vunpack.c.l.b16 %v64
    %v85 = vpack.c.b16 %v84, %v83
    %v103 = vunpack.c.l.b16 %v65
    %v104 = vunpack.c.l.b16 %v66
    %v105 = vunpack.c.l.b16 %v67
    %v106 = vunpack.c.l.b16 %v68
    %v107 = vunpack.c.l.b16 %v69
    %v108 = vunpack.c.l.b16 %v70
    %v109 = vunpack.c.l.b16 %v71
    %v110 = vunpack.c.l.b16 %v72
    %v111 = vunpack.c.l.b16 %v73
    %v112 = vunpack.c.l.b16 %v74
    %v113 = vunpack.c.l.b16 %v75
    %v114 = vunpack.c.l.b16 %v76
    %v115 = vunpack.c.l.b16 %v77
    %v116 = vunpack.c.l.b16 %v78
    %v117 = vunpack.c.l.b16 %v79
    %v118 = vunpack.c.l.b16 %v80
    %v119 = vpack.c.b16 %v104, %v103
    %v120 = vpack.c.b16 %v106, %v105
    %v121 = vpack.c.b16 %v108, %v107
    %v122 = vpack.c.b16 %v110, %v109
    %v123 = vpack.c.b16 %v112, %v111
    %v124 = vpack.c.b16 %v114, %v113
    %v125 = vpack.c.b16 %v116, %v115
    %v126 = vpack.c.b16 %v118, %v117
    %135 = vmatprep.subr.bf16.mxu0 0
    %136 = vmatpush1.bf16.msra.mxu0 %v119
    %137 = vmatprep.subr.bf16.mxu0 0
    %138 = vmatpush1.bf16.msra.mxu0 %v120
    %139 = vmatprep.subr.bf16.mxu0 0
    %140 = vmatpush1.bf16.msra.mxu0 %v121
    %141 = vmatprep.subr.bf16.mxu0 0
    %142 = vmatpush1.bf16.msra.mxu0 %v122
    %143 = vmatprep.subr.bf16.mxu0 0
    %144 = vmatpush1.bf16.msra.mxu0 %v123
    %145 = vmatprep.subr.bf16.mxu0 0
    %146 = vmatpush1.bf16.msra.mxu0 %v124
    %147 = vmatprep.subr.bf16.mxu0 0
    %148 = vmatpush1.bf16.msra.mxu0 %v125
    %149 = vmatprep.subr.bf16.mxu0 0
    %150 = vmatpush1.bf16.msra.mxu0 %v126
    %151 = vmatprep.subr.bf16.mxu0 0
    %152 = vmatpush1.bf16.msra.mxu0 0
    %153 = vmatprep.subr.bf16.mxu0 0
    %154 = vmatpush1.bf16.msra.mxu0 0
    %155 = vmatprep.subr.bf16.mxu0 0
    %156 = vmatpush1.bf16.msra.mxu0 0
    %157 = vmatprep.subr.bf16.mxu0 0
    %158 = vmatpush1.bf16.msra.mxu0 0
    %159 = vmatprep.subr.bf16.mxu0 0
    %160 = vmatpush1.bf16.msra.mxu0 0
    %161 = vmatprep.subr.bf16.mxu0 0
    %162 = vmatpush1.bf16.msra.mxu0 0
    %163 = vmatprep.subr.bf16.mxu0 0
    %164 = vmatpush1.bf16.msra.mxu0 0
    %165 = vmatprep.subr.bf16.mxu0 0
    %166 = vmatpush1.bf16.msra.mxu0 0
    %167 = vmatprep.mubr.bf16.mxu0 0
    %168 = vmatmul.mubr.bf16.gmra.mrb[0].mxu0 %v85
    %v169 = vpop.f32.mrb[0].mxu0
    %v170 = vadd.f32 0.0, %v169
    %v171 = vpop.f32.mrb[0].mxu0
    %v172 = vpop.f32.mrb[0].mxu0
    %v173 = vadd.f32 0.0, %v172
    %v174 = vpop.f32.mrb[0].mxu0
    %175 = vdwg.mxu0
    %v176 = vadd.f32 %v61, %v170
    %v177 = vadd.f32 %v62, %v173
    %178 = vst [vmem:[#allocation2] sm:$0xff] %v176
    %179 = vst [vmem:[#allocation2 + $0x8] sm:$0xff] %v177
    // Predicated region
    $region30: #{enhanced_bart_forward.31} parent=1 // pred_check
      %p180 = pneg %p55
    $region31: #{enhanced_bart_forward.31} parent=1 // pred_check_branch
      %182 = sbr.rel (%p180) target = $region33
    $region32: #{enhanced_bart_forward.31} parent=1 // pred_region
      %v183 = vld [vmem:[#allocation2] sm:$0xff]
      %v184 = vld [vmem:[#allocation2 + $0x8] sm:$0xff]
      %v185 = vld [vmem:[#allocation8] sm:$0x1]
      %v187 = vlaneseq
      %v188 = vshrl.u32 %v187, 7
      %v189 = vsub.s32 0, %v188
      %v190 = vrot.slane %v185, %v189
      %v192 = vadd.f32 %v183, %v190
      %v193 = vadd.f32 %v184, %v190
      %v194 = vpack.c.bf16 %v193, %v192
      %v196 = vunpack.c.l.b16 %v194
      %v197 = vunpack.c.h.b16 %v194
      %v198 = vpack.c.b16 %v196, %v196
      %v199 = vpack.c.b16 %v197, %v197
      %202 = vst [vmem:[#allocation9] sm:$0xf] %v198
      %203 = vst [vmem:[#allocation9 + $0x4] sm:$0xf] %v199
    $region33: #{enhanced_bart_forward.31} parent=1 // pred_fallthru
      _
    // Predicated region
    $region34: #{enhanced_bart_forward.31} parent=1 // pred_check
      _
    $region35: #{enhanced_bart_forward.31} parent=1 // pred_check_branch
      %205 = sbr.rel (0) target = $region37
    $region36: #{enhanced_bart_forward.31} parent=1 // pred_region
      %s207 = ssub.s32 128, 128
      %208 = vsyncadd [#allocation5], %s207
      %s209 = sshll.u32 [#allocation9], 4
      %s210 = int_to_ptr.vmem [resolvable:$true] %s209
      %215 = dma.vmem_to_hbm [thread:$0]  %s210, 128, %s3, [#allocation5], 64, 64, 4
    $region37: #{enhanced_bart_forward.31} parent=1 // pred_fallthru
      _
    // Predicated region
    $region38: #{enhanced_bart_forward.31} parent=1 // pred_check
      _
    $region39: #{enhanced_bart_forward.31} parent=1 // pred_check_branch
      %217 = sbr.rel (0) target = $region41
    $region40: #{enhanced_bart_forward.31} parent=1 // pred_region
      %218 = dma.done [#allocation5], 128
    $region41: #{enhanced_bart_forward.31} parent=1 // pred_fallthru
      _
    %219 = vsyncpa [#allocation4], 1
    %220 = vsyncpa [#allocation7], 1
    %221 = vsyncpa [#allocation5], 1

// kernel: enhanced_bart_forward.32
$region0: #{enhanced_bart_forward.32}
  #allocation0 [shape = 'u32[]', space=smem, size = 0x4, offset = 0x4, fixed_abs, tag = 'smem constant byte address 0x4 - core index']
  #allocation1 [shape = 'u32[144,128]{1,0:T(1,128)}', space=vmem, size = 0x12000, scoped, tag = 'internal scratch']
  %s0 = inlined_call_operand.vmem [shape: bf16[2,4,8,8], index: 0, kind: input, shape index: {}]
  %s1 = inlined_call_operand.vmem [shape: bf16[2,4,8,8], index: 1, kind: input, shape index: {}]
  %s2 = inlined_call_operand.vmem [shape: bf16[2,4,8,8], index: 2, kind: input, shape index: {}]
  %s3 = inlined_call_operand.vmem [shape: f32[2,8,8], index: 3, kind: input, shape index: {}]
  %s4 = inlined_call_operand.vmem [shape: f32[2,4,8,8], index: 4, kind: output, shape index: {}]
  %s5 = sld [smem:[#allocation0]]
  $region49: #{enhanced_bart_forward.32} parent=0
    _
  %s7 = ssub.s32 1, %s5
  %s8 = scalar_select 0, %s7, %s5
  loop: start=0, step=1, limit=4
  $region2: #{enhanced_bart_forward.32} parent=0 // loop_pre_header
    _
  $region3: #{enhanced_bart_forward.32} parent=0 // loop_header
    %s10 = sphi 0, %s14
    %p11 = scmp.ge.s32.totalorder %s10, 4
    %s20 = sphi 0, %s22
    %s23 = sphi 0, %s20
    %s24 = sphi 0, %s23
    %s40 = sphi 0, %s24
    %s46 = sphi 0, %s48
    %s49 = sphi 0, %s46
    %s50 = sphi 0, %s49
    %s66 = sphi 0, %s50
    %s72 = sphi 0, %s74
    %s75 = sphi 0, %s72
    %s76 = sphi 0, %s75
    %s92 = sphi 0, %s76
    %s98 = sphi 0, %s100
    %s101 = sphi 0, %s98
    %s102 = sphi 0, %s101
    %s118 = sphi 0, %s102
    %s124 = sphi 0, %s126
    %s127 = sphi 0, %s124
    %s128 = sphi 0, %s127
    %s144 = sphi 0, %s128
  $region4: #{enhanced_bart_forward.32} parent=0 // loop_header_branch
    %13 = sbr.rel (%p11) target = $region8
  $region5: #{enhanced_bart_forward.32} parent=0 // loop_body
    %s15 = ssub.s32 %s10, 1
    %s16 = ssub.s32 %s10, 2
    %s17 = sadd.s32 %s10, 1
    %s18 = ssub.s32 %s10, %s17
    %p19 = scmp.eq.s32.totalorder %s18, 0
    %s21 = sadd.s32 %s20, 1
    %s22 = scalar_select %p19, %s20, %s21
    %p25 = pneg %p19
    %p26 = scmp.eq.s32.totalorder %s10, 1
    %p27 = por %p25, %p26
    %p28 = scmp.ne.s32.totalorder %s20, %s23
    %p29 = scmp.eq.s32.totalorder %s10, 0
    %p30 = por %p28, %p29
    %p31 = scmp.ne.s32.totalorder %s20, %s23
    %p32 = scmp.eq.s32.totalorder %s15, 1
    %p33 = por %p31, %p32
    %p34 = scmp.ne.s32.totalorder %s23, %s24
    %p35 = scmp.eq.s32.totalorder %s15, 0
    %p36 = por %p34, %p35
    %p37 = scmp.ne.s32.totalorder %s23, %s24
    %p38 = scmp.eq.s32.totalorder %s16, 1
    %p39 = por %p37, %p38
    %p41 = scmp.ne.s32.totalorder %s24, %s40
    %p42 = scmp.eq.s32.totalorder %s16, 0
    %p43 = por %p41, %p42
    %s44 = ssub.s32 %s10, %s17
    %p45 = scmp.eq.s32.totalorder %s44, 0
    %s47 = sadd.s32 %s46, 1
    %s48 = scalar_select %p45, %s46, %s47
    %p51 = pneg %p45
    %p52 = scmp.eq.s32.totalorder %s10, 1
    %p53 = por %p51, %p52
    %p54 = scmp.ne.s32.totalorder %s46, %s49
    %p55 = scmp.eq.s32.totalorder %s10, 0
    %p56 = por %p54, %p55
    %p57 = scmp.ne.s32.totalorder %s46, %s49
    %p58 = scmp.eq.s32.totalorder %s15, 1
    %p59 = por %p57, %p58
    %p60 = scmp.ne.s32.totalorder %s49, %s50
    %p61 = scmp.eq.s32.totalorder %s15, 0
    %p62 = por %p60, %p61
    %p63 = scmp.ne.s32.totalorder %s49, %s50
    %p64 = scmp.eq.s32.totalorder %s16, 1
    %p65 = por %p63, %p64
    %p67 = scmp.ne.s32.totalorder %s50, %s66
    %p68 = scmp.eq.s32.totalorder %s16, 0
    %p69 = por %p67, %p68
    %s70 = ssub.s32 %s10, %s17
    %p71 = scmp.eq.s32.totalorder %s70, 0
    %s73 = sadd.s32 %s72, 1
    %s74 = scalar_select %p71, %s72, %s73
    %p77 = pneg %p71
    %p78 = scmp.eq.s32.totalorder %s10, 1
    %p79 = por %p77, %p78
    %p80 = scmp.ne.s32.totalorder %s72, %s75
    %p81 = scmp.eq.s32.totalorder %s10, 0
    %p82 = por %p80, %p81
    %p83 = scmp.ne.s32.totalorder %s72, %s75
    %p84 = scmp.eq.s32.totalorder %s15, 1
    %p85 = por %p83, %p84
    %p86 = scmp.ne.s32.totalorder %s75, %s76
    %p87 = scmp.eq.s32.totalorder %s15, 0
    %p88 = por %p86, %p87
    %p89 = scmp.ne.s32.totalorder %s75, %s76
    %p90 = scmp.eq.s32.totalorder %s16, 1
    %p91 = por %p89, %p90
    %p93 = scmp.ne.s32.totalorder %s76, %s92
    %p94 = scmp.eq.s32.totalorder %s16, 0
    %p95 = por %p93, %p94
    %s96 = ssub.s32 %s10, %s17
    %p97 = scmp.eq.s32.totalorder %s96, 0
    %s99 = sadd.s32 %s98, 1
    %s100 = scalar_select %p97, %s98, %s99
    %p103 = pneg %p97
    %p104 = scmp.eq.s32.totalorder %s10, 1
    %p105 = por %p103, %p104
    %p106 = scmp.ne.s32.totalorder %s98, %s101
    %p107 = scmp.eq.s32.totalorder %s10, 0
    %p108 = por %p106, %p107
    %p109 = scmp.ne.s32.totalorder %s98, %s101
    %p110 = scmp.eq.s32.totalorder %s15, 1
    %p111 = por %p109, %p110
    %p112 = scmp.ne.s32.totalorder %s101, %s102
    %p113 = scmp.eq.s32.totalorder %s15, 0
    %p114 = por %p112, %p113
    %p115 = scmp.ne.s32.totalorder %s101, %s102
    %p116 = scmp.eq.s32.totalorder %s16, 1
    %p117 = por %p115, %p116
    %p119 = scmp.ne.s32.totalorder %s102, %s118
    %p120 = scmp.eq.s32.totalorder %s16, 0
    %p121 = por %p119, %p120
    %s122 = ssub.s32 %s10, %s17
    %p123 = scmp.eq.s32.totalorder %s122, 0
    %s125 = sadd.s32 %s124, 1
    %s126 = scalar_select %p123, %s124, %s125
    %p129 = pneg %p123
    %p130 = scmp.eq.s32.totalorder %s10, 1
    %p131 = por %p129, %p130
    %p132 = scmp.ne.s32.totalorder %s124, %s127
    %p133 = scmp.eq.s32.totalorder %s10, 0
    %p134 = por %p132, %p133
    %p135 = scmp.ne.s32.totalorder %s124, %s127
    %p136 = scmp.eq.s32.totalorder %s15, 1
    %p137 = por %p135, %p136
    %p138 = scmp.ne.s32.totalorder %s127, %s128
    %p139 = scmp.eq.s32.totalorder %s15, 0
    %p140 = por %p138, %p139
    %p141 = scmp.ne.s32.totalorder %s127, %s128
    %p142 = scmp.eq.s32.totalorder %s16, 1
    %p143 = por %p141, %p142
    %p145 = scmp.ne.s32.totalorder %s128, %s144
    %p146 = scmp.eq.s32.totalorder %s16, 0
    %p147 = por %p145, %p146
    %p148 = scmp.le.s32.totalorder 1, %s10
    %p149 = scmp.lt.s32.totalorder %s10, 3
    %p150 = pnand %p148, %p149
    %p151 = pneg %p150
    // Predicated region
    $region9: #{enhanced_bart_forward.32} parent=5 // pred_check
      _
    $region10: #{enhanced_bart_forward.32} parent=5 // pred_check_branch
      %153 = sbr.rel (%p150) target = $region12
    $region11: #{enhanced_bart_forward.32} parent=5 // pred_region
      %s154 = ssub.s32 %s10, 1
    $region12: #{enhanced_bart_forward.32} parent=5 // pred_fallthru
      _
    %p155 = scmp.lt.s32.totalorder %s10, 2
    // Predicated region
    $region13: #{enhanced_bart_forward.32} parent=5 // pred_check
      %p156 = pneg %p155
    $region14: #{enhanced_bart_forward.32} parent=5 // pred_check_branch
      %158 = sbr.rel (%p156) target = $region16
    $region15: #{enhanced_bart_forward.32} parent=5 // pred_region
      // Predicated region
      $region17: #{enhanced_bart_forward.32} parent=15 // pred_check
        %p159 = pneg %p30
      $region18: #{enhanced_bart_forward.32} parent=15 // pred_check_branch
        %161 = sbr.rel (%p159) target = $region20
      $region19: #{enhanced_bart_forward.32} parent=15 // pred_region
        %p162 = scmp.lt.s32.totalorder %s10, 1
        %s163 = scalar_select %p162, %s10, 1
        %s164 = smul.addr %s163, 4
        %s165 = smul.addr %s164, 4
        %s166 = scalar_lea.vmem %s0, %s165
      $region20: #{enhanced_bart_forward.32} parent=15 // pred_fallthru
        _
      // Predicated region
      $region21: #{enhanced_bart_forward.32} parent=15 // pred_check
        %p167 = pneg %p56
      $region22: #{enhanced_bart_forward.32} parent=15 // pred_check_branch
        %169 = sbr.rel (%p167) target = $region24
      $region23: #{enhanced_bart_forward.32} parent=15 // pred_region
        %p170 = scmp.lt.s32.totalorder %s10, 1
        %s171 = scalar_select %p170, %s10, 1
        %s172 = smul.addr %s171, 4
        %s173 = smul.addr %s172, 4
        %s174 = scalar_lea.vmem %s1, %s173
      $region24: #{enhanced_bart_forward.32} parent=15 // pred_fallthru
        _
      // Predicated region
      $region25: #{enhanced_bart_forward.32} parent=15 // pred_check
        %p175 = pneg %p82
      $region26: #{enhanced_bart_forward.32} parent=15 // pred_check_branch
        %177 = sbr.rel (%p175) target = $region28
      $region27: #{enhanced_bart_forward.32} parent=15 // pred_region
        %p178 = scmp.lt.s32.totalorder %s10, 1
        %s179 = scalar_select %p178, %s10, 1
        %s180 = smul.addr %s179, 4
        %s181 = smul.addr %s180, 4
        %s182 = scalar_lea.vmem %s2, %s181
      $region28: #{enhanced_bart_forward.32} parent=15 // pred_fallthru
        _
      // Predicated region
      $region29: #{enhanced_bart_forward.32} parent=15 // pred_check
        %p183 = pneg %p108
      $region30: #{enhanced_bart_forward.32} parent=15 // pred_check_branch
        %185 = sbr.rel (%p183) target = $region32
      $region31: #{enhanced_bart_forward.32} parent=15 // pred_region
        %p186 = scmp.lt.s32.totalorder %s10, 1
        %s187 = scalar_select %p186, %s10, 1
        %s188 = smul.addr %s187, 8
        %s189 = scalar_lea.vmem %s3, %s188
      $region32: #{enhanced_bart_forward.32} parent=15 // pred_fallthru
        _
    $region16: #{enhanced_bart_forward.32} parent=5 // pred_fallthru
      _
    %p190 = scmp.le.s32.totalorder 1, %s10
    %p191 = scmp.lt.s32.totalorder %s10, 3
    %p192 = pnand %p190, %p191
    %p193 = pneg %p192
    // Predicated region
    $region33: #{enhanced_bart_forward.32} parent=5 // pred_check
      _
    $region34: #{enhanced_bart_forward.32} parent=5 // pred_check_branch
      %195 = sbr.rel (%p192) target = $region36
    $region35: #{enhanced_bart_forward.32} parent=5 // pred_region
      %s196 = ssub.s32 %s10, 1
      %p197 = scmp.lt.s32.totalorder %s15, 1
      %s198 = scalar_select %p197, %s15, 1
      %s199 = smul.addr %s198, 4
      %s200 = smul.addr %s199, 4
      %s201 = scalar_lea.vmem %s0, %s200
      %p202 = pneg %p36
      %p203 = pneg %p33
      %p204 = scmp.lt.s32.totalorder %s15, 1
      %s205 = scalar_select %p204, %s15, 1
      %s206 = smul.addr %s205, 4
      %s207 = smul.addr %s206, 4
      %s208 = scalar_lea.vmem %s1, %s207
      %p209 = pneg %p62
      %p210 = pneg %p59
      %p211 = scmp.lt.s32.totalorder %s15, 1
      %s212 = scalar_select %p211, %s15, 1
      %s213 = smul.addr %s212, 4
      %s214 = smul.addr %s213, 4
      %s215 = scalar_lea.vmem %s2, %s214
      %p216 = pneg %p88
      %p217 = pneg %p85
      %p218 = scmp.lt.s32.totalorder %s15, 1
      %s219 = scalar_select %p218, %s15, 1
      %s220 = smul.addr %s219, 8
      %s221 = scalar_lea.vmem %s3, %s220
      %p222 = pneg %p114
      %p223 = pneg %p111
      %p224 = pneg %p140
      %p225 = pneg %p137
      %p226 = scmp.lt.s32.totalorder %s15, 1
      %s227 = scalar_select %p226, %s15, 1
      %s228 = smul.addr %s227, 4
      %s229 = smul.addr %s228, 8
      %s230 = scalar_lea.vmem %s4, %s229
      %p231 = scmp.lt.s32.totalorder %s15, 1
      %s232 = scalar_select %p231, %s15, 1
      %s233 = smul.addr %s232, 4
      %s234 = smul.addr %s233, 4
      %s235 = scalar_lea.vmem %s0, %s234
      %p236 = scmp.lt.s32.totalorder %s15, 1
      %s237 = scalar_select %p236, %s15, 1
      %s238 = smul.addr %s237, 4
      %s239 = smul.addr %s238, 4
      %s240 = scalar_lea.vmem %s1, %s239
      %p241 = scmp.lt.s32.totalorder %s15, 1
      %s242 = scalar_select %p241, %s15, 1
      %s243 = smul.addr %s242, 4
      %s244 = smul.addr %s243, 4
      %s245 = scalar_lea.vmem %s2, %s244
      %p246 = scmp.lt.s32.totalorder %s15, 1
      %s247 = scalar_select %p246, %s15, 1
      %s248 = smul.addr %s247, 8
      %s249 = scalar_lea.vmem %s3, %s248
      %p250 = scmp.lt.s32.totalorder %s15, 1
      %s251 = scalar_select %p250, %s15, 1
      %s252 = smul.addr %s251, 4
      %s253 = smul.addr %s252, 8
      %s254 = scalar_lea.vmem %s4, %s253
      %v256 = vld [vmem:[%s235] sm:$0xf]
      %v257 = vld [vmem:[%s235 + $0x4] sm:$0xf]
      %v258 = vld [vmem:[%s235 + $0x8] sm:$0xf]
      %v259 = vld [vmem:[%s235 + $0xc] sm:$0xf]
      %v260 = vld [vmem:[%s240] sm:$0xf]
      %v261 = vld [vmem:[%s240 + $0x4] sm:$0xf]
      %v262 = vld [vmem:[%s240 + $0x8] sm:$0xf]
      %v263 = vld [vmem:[%s240 + $0xc] sm:$0xf]
      %v264 = vld [vmem:[%s245] sm:$0xf]
      %v265 = vld [vmem:[%s245 + $0x4] sm:$0xf]
      %v266 = vld [vmem:[%s245 + $0x8] sm:$0xf]
      %v267 = vld [vmem:[%s245 + $0xc] sm:$0xf]
      %vm268 = vcmask 64512
      %v270 = vsel %vm268, %v256, 0
      %v273 = vsel %vm268, %v260, 0
      %275 = vmatprep.subr.bf16.mxu0 0
      %276 = vmatpush1.bf16.xpose.msra.mxu0 %v273
      %277 = vmatprep.subr.bf16.mxu0 0
      %278 = vmatpush1.bf16.xpose.msra.mxu0 0
      %279 = vmatprep.subr.bf16.mxu0 0
      %280 = vmatpush1.bf16.xpose.msra.mxu0 0
      %281 = vmatprep.subr.bf16.mxu0 0
      %282 = vmatpush1.bf16.xpose.msra.mxu0 0
      %283 = vmatprep.subr.bf16.mxu0 0
      %284 = vmatpush1.bf16.xpose.msra.mxu0 0
      %285 = vmatprep.subr.bf16.mxu0 0
      %286 = vmatpush1.bf16.xpose.msra.mxu0 0
      %287 = vmatprep.subr.bf16.mxu0 0
      %288 = vmatpush1.bf16.xpose.msra.mxu0 0
      %289 = vmatprep.subr.bf16.mxu0 0
      %290 = vmatpush1.bf16.xpose.msra.mxu0 0
      %291 = vmatprep.subr.bf16.mxu0 0
      %292 = vmatpush1.bf16.xpose.msra.mxu0 0
      %293 = vmatprep.subr.bf16.mxu0 0
      %294 = vmatpush1.bf16.xpose.msra.mxu0 0
      %295 = vmatprep.subr.bf16.mxu0 0
      %296 = vmatpush1.bf16.xpose.msra.mxu0 0
      %297 = vmatprep.subr.bf16.mxu0 0
      %298 = vmatpush1.bf16.xpose.msra.mxu0 0
      %299 = vmatprep.subr.bf16.mxu0 0
      %300 = vmatpush1.bf16.xpose.msra.mxu0 0
      %301 = vmatprep.subr.bf16.mxu0 0
      %302 = vmatpush1.bf16.xpose.msra.mxu0 0
      %303 = vmatprep.subr.bf16.mxu0 0
      %304 = vmatpush1.bf16.xpose.msra.mxu0 0
      %305 = vmatprep.subr.bf16.mxu0 0
      %306 = vmatpush1.bf16.xpose.msra.mxu0 0
      %307 = vmatprep.mubr.bf16.mxu0 0
      %308 = vmatmul.mubr.bf16.gmra.mrb[0].mxu0 %v270
      %v309 = vpop.f32.mrb[0].mxu0
      %v310 = vadd.f32 0.0, %v309
      %v311 = vpop.f32.mrb[0].mxu0
      %v312 = vpop.f32.mrb[0].mxu0
      %v313 = vpop.f32.mrb[0].mxu0
      %314 = vdwg.mxu0
      %v316 = vsel %vm268, %v257, 0
      %v319 = vsel %vm268, %v261, 0
      %321 = vmatprep.subr.bf16.mxu0 0
      %322 = vmatpush1.bf16.xpose.msra.mxu0 %v319
      %323 = vmatprep.subr.bf16.mxu0 0
      %324 = vmatpush1.bf16.xpose.msra.mxu0 0
      %325 = vmatprep.subr.bf16.mxu0 0
      %326 = vmatpush1.bf16.xpose.msra.mxu0 0
      %327 = vmatprep.subr.bf16.mxu0 0
      %328 = vmatpush1.bf16.xpose.msra.mxu0 0
      %329 = vmatprep.subr.bf16.mxu0 0
      %330 = vmatpush1.bf16.xpose.msra.mxu0 0
      %331 = vmatprep.subr.bf16.mxu0 0
      %332 = vmatpush1.bf16.xpose.msra.mxu0 0
      %333 = vmatprep.subr.bf16.mxu0 0
      %334 = vmatpush1.bf16.xpose.msra.mxu0 0
      %335 = vmatprep.subr.bf16.mxu0 0
      %336 = vmatpush1.bf16.xpose.msra.mxu0 0
      %337 = vmatprep.subr.bf16.mxu0 0
      %338 = vmatpush1.bf16.xpose.msra.mxu0 0
      %339 = vmatprep.subr.bf16.mxu0 0
      %340 = vmatpush1.bf16.xpose.msra.mxu0 0
      %341 = vmatprep.subr.bf16.mxu0 0
      %342 = vmatpush1.bf16.xpose.msra.mxu0 0
      %343 = vmatprep.subr.bf16.mxu0 0
      %344 = vmatpush1.bf16.xpose.msra.mxu0 0
      %345 = vmatprep.subr.bf16.mxu0 0
      %346 = vmatpush1.bf16.xpose.msra.mxu0 0
      %347 = vmatprep.subr.bf16.mxu0 0
      %348 = vmatpush1.bf16.xpose.msra.mxu0 0
      %349 = vmatprep.subr.bf16.mxu0 0
      %350 = vmatpush1.bf16.xpose.msra.mxu0 0
      %351 = vmatprep.subr.bf16.mxu0 0
      %352 = vmatpush1.bf16.xpose.msra.mxu0 0
      %353 = vmatprep.mubr.bf16.mxu0 0
      %354 = vmatmul.mubr.bf16.gmra.mrb[0].mxu0 %v316
      %v355 = vpop.f32.mrb[0].mxu0
      %v356 = vadd.f32 0.0, %v355
      %v357 = vpop.f32.mrb[0].mxu0
      %v358 = vpop.f32.mrb[0].mxu0
      %v359 = vpop.f32.mrb[0].mxu0
      %360 = vdwg.mxu0
      %v362 = vsel %vm268, %v258, 0
      %v365 = vsel %vm268, %v262, 0
      %367 = vmatprep.subr.bf16.mxu0 0
      %368 = vmatpush1.bf16.xpose.msra.mxu0 %v365
      %369 = vmatprep.subr.bf16.mxu0 0
      %370 = vmatpush1.bf16.xpose.msra.mxu0 0
      %371 = vmatprep.subr.bf16.mxu0 0
      %372 = vmatpush1.bf16.xpose.msra.mxu0 0
      %373 = vmatprep.subr.bf16.mxu0 0
      %374 = vmatpush1.bf16.xpose.msra.mxu0 0
      %375 = vmatprep.subr.bf16.mxu0 0
      %376 = vmatpush1.bf16.xpose.msra.mxu0 0
      %377 = vmatprep.subr.bf16.mxu0 0
      %378 = vmatpush1.bf16.xpose.msra.mxu0 0
      %379 = vmatprep.subr.bf16.mxu0 0
      %380 = vmatpush1.bf16.xpose.msra.mxu0 0
      %381 = vmatprep.subr.bf16.mxu0 0
      %382 = vmatpush1.bf16.xpose.msra.mxu0 0
      %383 = vmatprep.subr.bf16.mxu0 0
      %384 = vmatpush1.bf16.xpose.msra.mxu0 0
      %385 = vmatprep.subr.bf16.mxu0 0
      %386 = vmatpush1.bf16.xpose.msra.mxu0 0
      %387 = vmatprep.subr.bf16.mxu0 0
      %388 = vmatpush1.bf16.xpose.msra.mxu0 0
      %389 = vmatprep.subr.bf16.mxu0 0
      %390 = vmatpush1.bf16.xpose.msra.mxu0 0
      %391 = vmatprep.subr.bf16.mxu0 0
      %392 = vmatpush1.bf16.xpose.msra.mxu0 0
      %393 = vmatprep.subr.bf16.mxu0 0
      %394 = vmatpush1.bf16.xpose.msra.mxu0 0
      %395 = vmatprep.subr.bf16.mxu0 0
      %396 = vmatpush1.bf16.xpose.msra.mxu0 0
      %397 = vmatprep.subr.bf16.mxu0 0
      %398 = vmatpush1.bf16.xpose.msra.mxu0 0
      %399 = vmatprep.mubr.bf16.mxu0 0
      %400 = vmatmul.mubr.bf16.gmra.mrb[0].mxu0 %v362
      %v401 = vpop.f32.mrb[0].mxu0
      %v402 = vadd.f32 0.0, %v401
      %v403 = vpop.f32.mrb[0].mxu0
      %v404 = vpop.f32.mrb[0].mxu0
      %v405 = vpop.f32.mrb[0].mxu0
      %406 = vdwg.mxu0
      %v408 = vsel %vm268, %v259, 0
      %v411 = vsel %vm268, %v263, 0
      %413 = vmatprep.subr.bf16.mxu0 0
      %414 = vmatpush1.bf16.xpose.msra.mxu0 %v411
      %415 = vmatprep.subr.bf16.mxu0 0
      %416 = vmatpush1.bf16.xpose.msra.mxu0 0
      %417 = vmatprep.subr.bf16.mxu0 0
      %418 = vmatpush1.bf16.xpose.msra.mxu0 0
      %419 = vmatprep.subr.bf16.mxu0 0
      %420 = vmatpush1.bf16.xpose.msra.mxu0 0
      %421 = vmatprep.subr.bf16.mxu0 0
      %422 = vmatpush1.bf16.xpose.msra.mxu0 0
      %423 = vmatprep.subr.bf16.mxu0 0
      %424 = vmatpush1.bf16.xpose.msra.mxu0 0
      %425 = vmatprep.subr.bf16.mxu0 0
      %426 = vmatpush1.bf16.xpose.msra.mxu0 0
      %427 = vmatprep.subr.bf16.mxu0 0
      %428 = vmatpush1.bf16.xpose.msra.mxu0 0
      %429 = vmatprep.subr.bf16.mxu0 0
      %430 = vmatpush1.bf16.xpose.msra.mxu0 0
      %431 = vmatprep.subr.bf16.mxu0 0
      %432 = vmatpush1.bf16.xpose.msra.mxu0 0
      %433 = vmatprep.subr.bf16.mxu0 0
      %434 = vmatpush1.bf16.xpose.msra.mxu0 0
      %435 = vmatprep.subr.bf16.mxu0 0
      %436 = vmatpush1.bf16.xpose.msra.mxu0 0
      %437 = vmatprep.subr.bf16.mxu0 0
      %438 = vmatpush1.bf16.xpose.msra.mxu0 0
      %439 = vmatprep.subr.bf16.mxu0 0
      %440 = vmatpush1.bf16.xpose.msra.mxu0 0
      %441 = vmatprep.subr.bf16.mxu0 0
      %442 = vmatpush1.bf16.xpose.msra.mxu0 0
      %443 = vmatprep.subr.bf16.mxu0 0
      %444 = vmatpush1.bf16.xpose.msra.mxu0 0
      %445 = vmatprep.mubr.bf16.mxu0 0
      %446 = vmatmul.mubr.bf16.gmra.mrb[0].mxu0 %v408
      %v447 = vpop.f32.mrb[0].mxu0
      %v448 = vadd.f32 0.0, %v447
      %v449 = vpop.f32.mrb[0].mxu0
      %v450 = vpop.f32.mrb[0].mxu0
      %v451 = vpop.f32.mrb[0].mxu0
      %452 = vdwg.mxu0
      %v453 = vmul.f32 %v310, 0.35355338
      %v454 = vmul.f32 %v356, 0.35355338
      %v455 = vmul.f32 %v402, 0.35355338
      %v456 = vmul.f32 %v448, 0.35355338
      %v457 = vld [vmem:[%s249] sm:$0xff]
      %v458 = vadd.f32 %v453, %v457
      %v459 = vadd.f32 %v454, %v457
      %v460 = vadd.f32 %v455, %v457
      %v461 = vadd.f32 %v456, %v457
      %v462 = vsel %vm268, %v458, -inf
      %463 = vmax.xlane.f32.xlu0 %v462
      %v464 = vpop.xlane.xlu0 %463
      %v465 = vsel %vm268, %v459, -inf
      %466 = vmax.xlane.f32.xlu0 %v465
      %v467 = vpop.xlane.xlu0 %466
      %v468 = vsel %vm268, %v460, -inf
      %469 = vmax.xlane.f32.xlu0 %v468
      %v470 = vpop.xlane.xlu0 %469
      %v471 = vsel %vm268, %v461, -inf
      %472 = vmax.xlane.f32.xlu0 %v471
      %v473 = vpop.xlane.xlu0 %472
      %v474 = vsub.f32 %v458, %v464
      %v475 = vsub.f32 %v459, %v467
      %v476 = vsub.f32 %v460, %v470
      %v477 = vsub.f32 %v461, %v473
      %v478 = vmul.f32 %v474, 1.442695
      %v479 = vpow.pop %v478
      %v480 = vmul.f32 %v475, 1.442695
      %v481 = vpow.pop %v480
      %v482 = vmul.f32 %v476, 1.442695
      %v483 = vpow.pop %v482
      %v484 = vmul.f32 %v477, 1.442695
      %v485 = vpow.pop %v484
      %v486 = vsel %vm268, %v479, 0.0
      %487 = vadd.xlane.f32.xlu0 %v486
      %v488 = vpop.xlane.xlu0 %487
      %v489 = vsel %vm268, %v481, 0.0
      %490 = vadd.xlane.f32.xlu0 %v489
      %v491 = vpop.xlane.xlu0 %490
      %v492 = vsel %vm268, %v483, 0.0
      %493 = vadd.xlane.f32.xlu0 %v492
      %v494 = vpop.xlane.xlu0 %493
      %v495 = vsel %vm268, %v485, 0.0
      %496 = vadd.xlane.f32.xlu0 %v495
      %v497 = vpop.xlane.xlu0 %496
      %v498 = vrcp.pop %v488
      %v499 = vrcp.pop %v491
      %v500 = vrcp.pop %v494
      %v501 = vrcp.pop %v497
      %v502 = vmul.f32 %v479, %v498
      %v503 = vmul.f32 %v481, %v499
      %v504 = vmul.f32 %v483, %v500
      %v505 = vmul.f32 %v485, %v501
      %v506 = vpack.c.bf16 %v502, %v502
      %v507 = vpack.c.bf16 %v503, %v503
      %v508 = vpack.c.bf16 %v504, %v504
      %v509 = vpack.c.bf16 %v505, %v505
      %v511 = vsel %vm268, %v506, 0
      %vm513 = vcmask 1043456
      %v515 = vsel %vm513, %v264, 0
      %517 = vmatprep.subr.bf16.mxu0 0
      %518 = vmatpush1.bf16.msra.mxu0 %v515
      %519 = vmatprep.subr.bf16.mxu0 0
      %520 = vmatpush1.bf16.msra.mxu0 0
      %521 = vmatprep.subr.bf16.mxu0 0
      %522 = vmatpush1.bf16.msra.mxu0 0
      %523 = vmatprep.subr.bf16.mxu0 0
      %524 = vmatpush1.bf16.msra.mxu0 0
      %525 = vmatprep.subr.bf16.mxu0 0
      %526 = vmatpush1.bf16.msra.mxu0 0
      %527 = vmatprep.subr.bf16.mxu0 0
      %528 = vmatpush1.bf16.msra.mxu0 0
      %529 = vmatprep.subr.bf16.mxu0 0
      %530 = vmatpush1.bf16.msra.mxu0 0
      %531 = vmatprep.subr.bf16.mxu0 0
      %532 = vmatpush1.bf16.msra.mxu0 0
      %533 = vmatprep.subr.bf16.mxu0 0
      %534 = vmatpush1.bf16.msra.mxu0 0
      %535 = vmatprep.subr.bf16.mxu0 0
      %536 = vmatpush1.bf16.msra.mxu0 0
      %537 = vmatprep.subr.bf16.mxu0 0
      %538 = vmatpush1.bf16.msra.mxu0 0
      %539 = vmatprep.subr.bf16.mxu0 0
      %540 = vmatpush1.bf16.msra.mxu0 0
      %541 = vmatprep.subr.bf16.mxu0 0
      %542 = vmatpush1.bf16.msra.mxu0 0
      %543 = vmatprep.subr.bf16.mxu0 0
      %544 = vmatpush1.bf16.msra.mxu0 0
      %545 = vmatprep.subr.bf16.mxu0 0
      %546 = vmatpush1.bf16.msra.mxu0 0
      %547 = vmatprep.subr.bf16.mxu0 0
      %548 = vmatpush1.bf16.msra.mxu0 0
      %549 = vmatprep.mubr.bf16.mxu0 0
      %550 = vmatmul.mubr.bf16.gmra.mrb[0].mxu0 %v511
      %v551 = vpop.f32.mrb[0].mxu0
      %v552 = vadd.f32 0.0, %v551
      %v553 = vpop.f32.mrb[0].mxu0
      %v554 = vpop.f32.mrb[0].mxu0
      %v555 = vpop.f32.mrb[0].mxu0
      %556 = vdwg.mxu0
      %v558 = vsel %vm268, %v507, 0
      %v561 = vsel %vm513, %v265, 0
      %563 = vmatprep.subr.bf16.mxu0 0
      %564 = vmatpush1.bf16.msra.mxu0 %v561
      %565 = vmatprep.subr.bf16.mxu0 0
      %566 = vmatpush1.bf16.msra.mxu0 0
      %567 = vmatprep.subr.bf16.mxu0 0
      %568 = vmatpush1.bf16.msra.mxu0 0
      %569 = vmatprep.subr.bf16.mxu0 0
      %570 = vmatpush1.bf16.msra.mxu0 0
      %571 = vmatprep.subr.bf16.mxu0 0
      %572 = vmatpush1.bf16.msra.mxu0 0
      %573 = vmatprep.subr.bf16.mxu0 0
      %574 = vmatpush1.bf16.msra.mxu0 0
      %575 = vmatprep.subr.bf16.mxu0 0
      %576 = vmatpush1.bf16.msra.mxu0 0
      %577 = vmatprep.subr.bf16.mxu0 0
      %578 = vmatpush1.bf16.msra.mxu0 0
      %579 = vmatprep.subr.bf16.mxu0 0
      %580 = vmatpush1.bf16.msra.mxu0 0
      %581 = vmatprep.subr.bf16.mxu0 0
      %582 = vmatpush1.bf16.msra.mxu0 0
      %583 = vmatprep.subr.bf16.mxu0 0
      %584 = vmatpush1.bf16.msra.mxu0 0
      %585 = vmatprep.subr.bf16.mxu0 0
      %586 = vmatpush1.bf16.msra.mxu0 0
      %587 = vmatprep.subr.bf16.mxu0 0
      %588 = vmatpush1.bf16.msra.mxu0 0
      %589 = vmatprep.subr.bf16.mxu0 0
      %590 = vmatpush1.bf16.msra.mxu0 0
      %591 = vmatprep.subr.bf16.mxu0 0
      %592 = vmatpush1.bf16.msra.mxu0 0
      %593 = vmatprep.subr.bf16.mxu0 0
      %594 = vmatpush1.bf16.msra.mxu0 0
      %595 = vmatprep.mubr.bf16.mxu0 0
      %596 = vmatmul.mubr.bf16.gmra.mrb[0].mxu0 %v558
      %v597 = vpop.f32.mrb[0].mxu0
      %v598 = vadd.f32 0.0, %v597
      %v599 = vpop.f32.mrb[0].mxu0
      %v600 = vpop.f32.mrb[0].mxu0
      %v601 = vpop.f32.mrb[0].mxu0
      %602 = vdwg.mxu0
      %v604 = vsel %vm268, %v508, 0
      %v607 = vsel %vm513, %v266, 0
      %609 = vmatprep.subr.bf16.mxu0 0
      %610 = vmatpush1.bf16.msra.mxu0 %v607
      %611 = vmatprep.subr.bf16.mxu0 0
      %612 = vmatpush1.bf16.msra.mxu0 0
      %613 = vmatprep.subr.bf16.mxu0 0
      %614 = vmatpush1.bf16.msra.mxu0 0
      %615 = vmatprep.subr.bf16.mxu0 0
      %616 = vmatpush1.bf16.msra.mxu0 0
      %617 = vmatprep.subr.bf16.mxu0 0
      %618 = vmatpush1.bf16.msra.mxu0 0
      %619 = vmatprep.subr.bf16.mxu0 0
      %620 = vmatpush1.bf16.msra.mxu0 0
      %621 = vmatprep.subr.bf16.mxu0 0
      %622 = vmatpush1.bf16.msra.mxu0 0
      %623 = vmatprep.subr.bf16.mxu0 0
      %624 = vmatpush1.bf16.msra.mxu0 0
      %625 = vmatprep.subr.bf16.mxu0 0
      %626 = vmatpush1.bf16.msra.mxu0 0
      %627 = vmatprep.subr.bf16.mxu0 0
      %628 = vmatpush1.bf16.msra.mxu0 0
      %629 = vmatprep.subr.bf16.mxu0 0
      %630 = vmatpush1.bf16.msra.mxu0 0
      %631 = vmatprep.subr.bf16.mxu0 0
      %632 = vmatpush1.bf16.msra.mxu0 0
      %633 = vmatprep.subr.bf16.mxu0 0
      %634 = vmatpush1.bf16.msra.mxu0 0
      %635 = vmatprep.subr.bf16.mxu0 0
      %636 = vmatpush1.bf16.msra.mxu0 0
      %637 = vmatprep.subr.bf16.mxu0 0
      %638 = vmatpush1.bf16.msra.mxu0 0
      %639 = vmatprep.subr.bf16.mxu0 0
      %640 = vmatpush1.bf16.msra.mxu0 0
      %641 = vmatprep.mubr.bf16.mxu0 0
      %642 = vmatmul.mubr.bf16.gmra.mrb[0].mxu0 %v604
      %v643 = vpop.f32.mrb[0].mxu0
      %v644 = vadd.f32 0.0, %v643
      %v645 = vpop.f32.mrb[0].mxu0
      %v646 = vpop.f32.mrb[0].mxu0
      %v647 = vpop.f32.mrb[0].mxu0
      %648 = vdwg.mxu0
      %v650 = vsel %vm268, %v509, 0
      %v653 = vsel %vm513, %v267, 0
      %655 = vmatprep.subr.bf16.mxu0 0
      %656 = vmatpush1.bf16.msra.mxu0 %v653
      %657 = vmatprep.subr.bf16.mxu0 0
      %658 = vmatpush1.bf16.msra.mxu0 0
      %659 = vmatprep.subr.bf16.mxu0 0
      %660 = vmatpush1.bf16.msra.mxu0 0
      %661 = vmatprep.subr.bf16.mxu0 0
      %662 = vmatpush1.bf16.msra.mxu0 0
      %663 = vmatprep.subr.bf16.mxu0 0
      %664 = vmatpush1.bf16.msra.mxu0 0
      %665 = vmatprep.subr.bf16.mxu0 0
      %666 = vmatpush1.bf16.msra.mxu0 0
      %667 = vmatprep.subr.bf16.mxu0 0
      %668 = vmatpush1.bf16.msra.mxu0 0
      %669 = vmatprep.subr.bf16.mxu0 0
      %670 = vmatpush1.bf16.msra.mxu0 0
      %671 = vmatprep.subr.bf16.mxu0 0
      %672 = vmatpush1.bf16.msra.mxu0 0
      %673 = vmatprep.subr.bf16.mxu0 0
      %674 = vmatpush1.bf16.msra.mxu0 0
      %675 = vmatprep.subr.bf16.mxu0 0
      %676 = vmatpush1.bf16.msra.mxu0 0
      %677 = vmatprep.subr.bf16.mxu0 0
      %678 = vmatpush1.bf16.msra.mxu0 0
      %679 = vmatprep.subr.bf16.mxu0 0
      %680 = vmatpush1.bf16.msra.mxu0 0
      %681 = vmatprep.subr.bf16.mxu0 0
      %682 = vmatpush1.bf16.msra.mxu0 0
      %683 = vmatprep.subr.bf16.mxu0 0
      %684 = vmatpush1.bf16.msra.mxu0 0
      %685 = vmatprep.subr.bf16.mxu0 0
      %686 = vmatpush1.bf16.msra.mxu0 0
      %687 = vmatprep.mubr.bf16.mxu0 0
      %688 = vmatmul.mubr.bf16.gmra.mrb[0].mxu0 %v650
      %v689 = vpop.f32.mrb[0].mxu0
      %v690 = vadd.f32 0.0, %v689
      %v691 = vpop.f32.mrb[0].mxu0
      %v692 = vpop.f32.mrb[0].mxu0
      %v693 = vpop.f32.mrb[0].mxu0
      %694 = vdwg.mxu0
      %695 = vst.msk [vmem:[%s254] sm:$0xff] %vm268, %v552
      %696 = vst.msk [vmem:[%s254 + $0x8] sm:$0xff] %vm268, %v598
      %697 = vst.msk [vmem:[%s254 + $0x10] sm:$0xff] %vm268, %v644
      %698 = vst.msk [vmem:[%s254 + $0x18] sm:$0xff] %vm268, %v690
      %p699 = scmp.lt.s32.totalorder %s15, 1
      %s700 = scalar_select %p699, %s15, 1
      %s701 = smul.addr %s700, 4
      %s702 = smul.addr %s701, 8
      %s703 = scalar_lea.vmem %s4, %s702
      // Predicated region
      $region37: #{enhanced_bart_forward.32} parent=35 // pred_check
        %p704 = pneg %p137
      $region38: #{enhanced_bart_forward.32} parent=35 // pred_check_branch
        %706 = sbr.rel (%p704) target = $region40
      $region39: #{enhanced_bart_forward.32} parent=35 // pred_region
        _
      $region40: #{enhanced_bart_forward.32} parent=35 // pred_fallthru
        _
    $region36: #{enhanced_bart_forward.32} parent=5 // pred_fallthru
      _
    %p707 = scmp.le.s32.totalorder 2, %s10
    // Predicated region
    $region41: #{enhanced_bart_forward.32} parent=5 // pred_check
      %p708 = pneg %p707
    $region42: #{enhanced_bart_forward.32} parent=5 // pred_check_branch
      %710 = sbr.rel (%p708) target = $region44
    $region43: #{enhanced_bart_forward.32} parent=5 // pred_region
      %s711 = ssub.s32 %s10, 2
      // Predicated region
      $region45: #{enhanced_bart_forward.32} parent=43 // pred_check
        %p712 = pneg %p143
      $region46: #{enhanced_bart_forward.32} parent=43 // pred_check_branch
        %714 = sbr.rel (%p712) target = $region48
      $region47: #{enhanced_bart_forward.32} parent=43 // pred_region
        %p715 = scmp.lt.s32.totalorder %s16, 1
        %s716 = scalar_select %p715, %s16, 1
        %s717 = smul.addr %s716, 4
        %s718 = smul.addr %s717, 8
        %s719 = scalar_lea.vmem %s4, %s718
      $region48: #{enhanced_bart_forward.32} parent=43 // pred_fallthru
        _
    $region44: #{enhanced_bart_forward.32} parent=5 // pred_fallthru
      _
  $region6: #{enhanced_bart_forward.32} parent=0 // loop_footer
    %s14 = sadd.s32 1, %s10
  $region7: #{enhanced_bart_forward.32} parent=0 // loop_footer_branch
    %9 = sbr.rel target = $region3
  $region8: #{enhanced_bart_forward.32} parent=0 // loop_exit
    _

// kernel: enhanced_bart_forward.60
$region0: #{enhanced_bart_forward.60}
  #allocation0 [shape = 'u32[]', space=smem, size = 0x4, offset = 0x4, fixed_abs, tag = 'smem constant byte address 0x4 - core index']
  #allocation1 [shape = 'u32[144,128]{1,0:T(1,128)}', space=vmem, size = 0x12000, scoped, tag = 'internal scratch']
  #allocation2 [shape = 'f32[1,1]{1,0:T(1,128)}', space=vmem, size = 0x200, scoped, tag = 'scratch operand']
  #allocation3 [shape = 'f32[1,1]{1,0:T(1,128)}', space=vmem, size = 0x200, scoped, tag = 'scratch operand']
  %s0 = inlined_call_operand.vmem [shape: f32[16,128], index: 0, kind: input, shape index: {}]
  %s1 = inlined_call_operand.vmem [shape: s32[16,1], index: 1, kind: input, shape index: {}]
  %s2 = inlined_call_operand.hbm [shape: f32[1,1], index: 2, kind: output, shape index: {}]
  %s3 = sld [smem:[#allocation0]]
  $region26: #{enhanced_bart_forward.60} parent=0
    _
  %s5 = ssub.s32 1, %s3
  %s6 = scalar_select 0, %s5, %s3
  $region1: #{enhanced_bart_forward.60} parent=0
    #allocation4 [shape = 'u8[512]{0}', space=vmem, size = 0x400, scoped, tag = 'output window, operand 0, single buffered']
    #allocation5 [shape = 's32[1]{0}', space=sflag, size = 0x4, scoped, tag = 'scoped memory for enhanced_bart_forward.60']
    %7 = vsyncpa [#allocation5], 0
    // Predicated region
    $region2: #{enhanced_bart_forward.60} parent=1 // pred_check
      _
    $region3: #{enhanced_bart_forward.60} parent=1 // pred_check_branch
      %9 = sbr.rel (0) target = $region5
    $region4: #{enhanced_bart_forward.60} parent=1 // pred_region
      _
    $region5: #{enhanced_bart_forward.60} parent=1 // pred_fallthru
      _
    // Predicated region
    $region6: #{enhanced_bart_forward.60} parent=1 // pred_check
      _
    $region7: #{enhanced_bart_forward.60} parent=1 // pred_check_branch
      %11 = sbr.rel (0) target = $region9
    $region8: #{enhanced_bart_forward.60} parent=1 // pred_region
      _
    $region9: #{enhanced_bart_forward.60} parent=1 // pred_fallthru
      _
    %p12 = scmp.eq.s32.totalorder 0, 0
    // Predicated region
    $region10: #{enhanced_bart_forward.60} parent=1 // pred_check
      %p13 = pneg %p12
    $region11: #{enhanced_bart_forward.60} parent=1 // pred_check_branch
      %15 = sbr.rel (%p13) target = $region13
    $region12: #{enhanced_bart_forward.60} parent=1 // pred_region
      %vm16 = vcmask 0
      %17 = vst.msk [vmem:[#allocation2] sm:$0x1] %vm16, 0.0
      %18 = vst.msk [vmem:[#allocation3] sm:$0x1] %vm16, 0.0
    $region13: #{enhanced_bart_forward.60} parent=1 // pred_fallthru
      _
    %v19 = vld [vmem:[%s0] sm:$0xff]
    %v20 = vld [vmem:[%s0 + $0x8] sm:$0xff]
    %v21 = vld [vmem:[%s1] sm:$0xff]
    %v22 = vld [vmem:[%s1 + $0x8] sm:$0xff]
    %23 = vmax.xlane.f32.xlu0 %v19
    %v24 = vpop.xlane.xlu0 %23
    %25 = vmax.xlane.f32.xlu0 %v20
    %v26 = vpop.xlane.xlu0 %25
    %v27 = vsub.f32 %v19, %v24
    %v28 = vsub.f32 %v20, %v26
    %v29 = vmul.f32 %v27, 1.442695
    %v30 = vpow.pop %v29
    %v31 = vmul.f32 %v28, 1.442695
    %v32 = vpow.pop %v31
    %33 = vadd.xlane.f32.xlu0 %v30
    %v34 = vpop.xlane.xlu0 %33
    %35 = vadd.xlane.f32.xlu0 %v32
    %v36 = vpop.xlane.xlu0 %35
    %v37 = vlog2.pop %v34
    %v38 = vmul.f32 %v37, 0.6931472
    %v39 = vlog2.pop %v36
    %v40 = vmul.f32 %v39, 0.6931472
    %v41 = vadd.f32 %v38, %v24
    %v42 = vadd.f32 %v40, %v26
    %v43 = vlaneseq
    %v44 = vand.u32 %v43, 127
    %45 = vset.pattern.permute.xlu0 0
    %46 = vperm.xlu0 %45, %v21
    %v47 = vpop.permute.xlu0 %46
    %48 = vset.pattern.permute.xlu0 0
    %49 = vperm.xlu0 %48, %v22
    %v50 = vpop.permute.xlu0 %49
    %vm51 = vcmp.eq.s32.totalorder %v44, %v47
    %vm52 = vcmp.eq.s32.totalorder %v44, %v50
    %v53 = vsel %vm51, 1, 0
    %v54 = vsel %vm52, 1, 0
    %v55 = vcvt.s32.f32 %v53
    %v56 = vcvt.s32.f32 %v54
    %v57 = vmul.f32 %v55, %v19
    %v58 = vmul.f32 %v56, %v20
    %59 = vadd.xlane.f32.xlu0 %v57
    %v60 = vpop.xlane.xlu0 %59
    %61 = vadd.xlane.f32.xlu0 %v58
    %v62 = vpop.xlane.xlu0 %61
    %vm63 = vcmp.ne.s32.totalorder %v21, 4294967196
    %vm64 = vcmp.ne.s32.totalorder %v22, 4294967196
    %v65 = vsel %vm63, 1, 0
    %v66 = vsel %vm64, 1, 0
    %v67 = vcvt.s32.f32 %v65
    %v68 = vcvt.s32.f32 %v66
    %v69 = vld [vmem:[#allocation2] sm:$0x1]
    %v70 = vsub.f32 %v41, %v60
    %v71 = vsub.f32 %v42, %v62
    %v72 = vmul.f32 %v70, %v67
    %v73 = vmul.f32 %v71, %v68
    %vm74 = vcmask 7168
    %v75 = vsel %vm74, %v72, 0.0
    %v76 = vsel %vm74, %v73, 0.0
    %v77 = vadd.f32 %v75, %v76
    %78 = vadd.xlane.f32.xlu0 %v77
    %v79 = vpop.xlane.xlu0 %78
    %v80 = vrot.slane %v79, 4
    %v81 = vadd.f32 %v79, %v80
    %v82 = vrot.slane %v81, 2
    %v83 = vadd.f32 %v81, %v82
    %v84 = vrot.slane %v83, 1
    %v85 = vadd.f32 %v83, %v84
    %s86 = vtos %v85
    %v87 = vstv %s86
    %v88 = vadd.f32 %v69, %v87
    %vm89 = vcmask 0
    %90 = vst.msk [vmem:[#allocation2] sm:$0x1] %vm89, %v88
    %v91 = vld [vmem:[#allocation3] sm:$0x1]
    %v92 = vsel %vm74, %v67, 0.0
    %v93 = vsel %vm74, %v68, 0.0
    %v94 = vadd.f32 %v92, %v93
    %95 = vadd.xlane.f32.xlu0 %v94
    %v96 = vpop.xlane.xlu0 %95
    %v97 = vrot.slane %v96, 4
    %v98 = vadd.f32 %v96, %v97
    %v99 = vrot.slane %v98, 2
    %v100 = vadd.f32 %v98, %v99
    %v101 = vrot.slane %v100, 1
    %v102 = vadd.f32 %v100, %v101
    %s103 = vtos %v102
    %v104 = vstv %s103
    %v105 = vadd.f32 %v91, %v104
    %106 = vst.msk [vmem:[#allocation3] sm:$0x1] %vm89, %v105
    // Predicated region
    $region14: #{enhanced_bart_forward.60} parent=1 // pred_check
      %p107 = pneg %p12
    $region15: #{enhanced_bart_forward.60} parent=1 // pred_check_branch
      %109 = sbr.rel (%p107) target = $region17
    $region16: #{enhanced_bart_forward.60} parent=1 // pred_region
      %v110 = vld [vmem:[#allocation2] sm:$0x1]
      %v111 = vld [vmem:[#allocation3] sm:$0x1]
      %v112 = vrcp.pop %v111
      %v113 = vmul.f32 %v110, %v112
      %114 = vst.msk [vmem:[#allocation4] sm:$0x1] %vm89, %v113
    $region17: #{enhanced_bart_forward.60} parent=1 // pred_fallthru
      _
    // Predicated region
    $region18: #{enhanced_bart_forward.60} parent=1 // pred_check
      _
    $region19: #{enhanced_bart_forward.60} parent=1 // pred_check_branch
      %116 = sbr.rel (0) target = $region21
    $region20: #{enhanced_bart_forward.60} parent=1 // pred_region
      %s118 = ssub.s32 16, 16
      %119 = vsyncadd [#allocation5], %s118
      %s121 = sshll.u32 [#allocation4], 4
      %s122 = int_to_ptr.vmem [resolvable:$true] %s121
      %124 = dma.vmem_to_hbm [thread:$0]  %s122, 16, %s2, [#allocation5]
    $region21: #{enhanced_bart_forward.60} parent=1 // pred_fallthru
      _
    // Predicated region
    $region22: #{enhanced_bart_forward.60} parent=1 // pred_check
      _
    $region23: #{enhanced_bart_forward.60} parent=1 // pred_check_branch
      %126 = sbr.rel (0) target = $region25
    $region24: #{enhanced_bart_forward.60} parent=1 // pred_region
      %127 = dma.done [#allocation5], 16
    $region25: #{enhanced_bart_forward.60} parent=1 // pred_fallthru
      _
    %128 = vsyncpa [#allocation5], 1

// kernel: enhanced_bart_forward.46
$region0: #{enhanced_bart_forward.46}
  #allocation0 [shape = 'u32[]', space=smem, size = 0x4, offset = 0x4, fixed_abs, tag = 'smem constant byte address 0x4 - core index']
  #allocation1 [shape = 'u32[144,128]{1,0:T(1,128)}', space=vmem, size = 0x12000, scoped, tag = 'internal scratch']
  %s0 = inlined_call_operand.vmem [shape: bf16[2,4,8,8], index: 0, kind: input, shape index: {}]
  %s1 = inlined_call_operand.vmem [shape: bf16[2,4,8,8], index: 1, kind: input, shape index: {}]
  %s2 = inlined_call_operand.vmem [shape: bf16[2,4,8,8], index: 2, kind: input, shape index: {}]
  %s3 = inlined_call_operand.vmem [shape: f32[2,8,8], index: 3, kind: input, shape index: {}]
  %s4 = inlined_call_operand.vmem [shape: f32[2,4,8,8], index: 4, kind: output, shape index: {0}]
  %s5 = inlined_call_operand.hbm [shape: f32[2,4,8,8], index: 5, kind: output, shape index: {1}]
  %6 = xla_tuple %s4, %s5
  %s7 = sld [smem:[#allocation0]]
  $region57: #{enhanced_bart_forward.46} parent=0
    _
  %s9 = ssub.s32 1, %s7
  %s10 = scalar_select 0, %s9, %s7
  $region1: #{enhanced_bart_forward.46} parent=0
    #allocation2 [shape = 'u8[32768]{0}', space=vmem, size = 0x8000, scoped, tag = 'output window, operand 1']
    #allocation3 [shape = 's32[2]{0}', space=sflag, size = 0x8, scoped, tag = 'scoped memory for enhanced_bart_forward.46']
    %11 = vsyncpa [#allocation3], 0
    %s12 = scalar_lea.sflag [#allocation3], 1
    %13 = vsyncpa %s12, 0
    loop: start=0, step=1, limit=4
    $region2: #{enhanced_bart_forward.46} parent=1 // loop_pre_header
      _
    $region3: #{enhanced_bart_forward.46} parent=1 // loop_header
      %s15 = sphi 0, %s19
      %p16 = scmp.ge.s32.totalorder %s15, 4
      %s25 = sphi 0, %s27
      %s28 = sphi 0, %s25
      %s29 = sphi 0, %s28
      %s45 = sphi 0, %s29
      %s51 = sphi 0, %s53
      %s54 = sphi 0, %s51
      %s55 = sphi 0, %s54
      %s71 = sphi 0, %s55
      %s77 = sphi 0, %s79
      %s80 = sphi 0, %s77
      %s81 = sphi 0, %s80
      %s97 = sphi 0, %s81
      %s103 = sphi 0, %s105
      %s106 = sphi 0, %s103
      %s107 = sphi 0, %s106
      %s123 = sphi 0, %s107
      %s129 = sphi 0, %s131
      %s132 = sphi 0, %s129
      %s133 = sphi 0, %s132
      %s149 = sphi 0, %s133
      %s155 = sphi 0, %s157
      %s158 = sphi 0, %s155
      %s159 = sphi 0, %s158
      %s175 = sphi 0, %s159
    $region4: #{enhanced_bart_forward.46} parent=1 // loop_header_branch
      %18 = sbr.rel (%p16) target = $region8
    $region5: #{enhanced_bart_forward.46} parent=1 // loop_body
      %s20 = ssub.s32 %s15, 1
      %s21 = ssub.s32 %s15, 2
      %s22 = sadd.s32 %s15, 1
      %s23 = ssub.s32 %s15, %s22
      %p24 = scmp.eq.s32.totalorder %s23, 0
      %s26 = sadd.s32 %s25, 1
      %s27 = scalar_select %p24, %s25, %s26
      %p30 = pneg %p24
      %p31 = scmp.eq.s32.totalorder %s15, 1
      %p32 = por %p30, %p31
      %p33 = scmp.ne.s32.totalorder %s25, %s28
      %p34 = scmp.eq.s32.totalorder %s15, 0
      %p35 = por %p33, %p34
      %p36 = scmp.ne.s32.totalorder %s25, %s28
      %p37 = scmp.eq.s32.totalorder %s20, 1
      %p38 = por %p36, %p37
      %p39 = scmp.ne.s32.totalorder %s28, %s29
      %p40 = scmp.eq.s32.totalorder %s20, 0
      %p41 = por %p39, %p40
      %p42 = scmp.ne.s32.totalorder %s28, %s29
      %p43 = scmp.eq.s32.totalorder %s21, 1
      %p44 = por %p42, %p43
      %p46 = scmp.ne.s32.totalorder %s29, %s45
      %p47 = scmp.eq.s32.totalorder %s21, 0
      %p48 = por %p46, %p47
      %s49 = ssub.s32 %s15, %s22
      %p50 = scmp.eq.s32.totalorder %s49, 0
      %s52 = sadd.s32 %s51, 1
      %s53 = scalar_select %p50, %s51, %s52
      %p56 = pneg %p50
      %p57 = scmp.eq.s32.totalorder %s15, 1
      %p58 = por %p56, %p57
      %p59 = scmp.ne.s32.totalorder %s51, %s54
      %p60 = scmp.eq.s32.totalorder %s15, 0
      %p61 = por %p59, %p60
      %p62 = scmp.ne.s32.totalorder %s51, %s54
      %p63 = scmp.eq.s32.totalorder %s20, 1
      %p64 = por %p62, %p63
      %p65 = scmp.ne.s32.totalorder %s54, %s55
      %p66 = scmp.eq.s32.totalorder %s20, 0
      %p67 = por %p65, %p66
      %p68 = scmp.ne.s32.totalorder %s54, %s55
      %p69 = scmp.eq.s32.totalorder %s21, 1
      %p70 = por %p68, %p69
      %p72 = scmp.ne.s32.totalorder %s55, %s71
      %p73 = scmp.eq.s32.totalorder %s21, 0
      %p74 = por %p72, %p73
      %s75 = ssub.s32 %s15, %s22
      %p76 = scmp.eq.s32.totalorder %s75, 0
      %s78 = sadd.s32 %s77, 1
      %s79 = scalar_select %p76, %s77, %s78
      %p82 = pneg %p76
      %p83 = scmp.eq.s32.totalorder %s15, 1
      %p84 = por %p82, %p83
      %p85 = scmp.ne.s32.totalorder %s77, %s80
      %p86 = scmp.eq.s32.totalorder %s15, 0
      %p87 = por %p85, %p86
      %p88 = scmp.ne.s32.totalorder %s77, %s80
      %p89 = scmp.eq.s32.totalorder %s20, 1
      %p90 = por %p88, %p89
      %p91 = scmp.ne.s32.totalorder %s80, %s81
      %p92 = scmp.eq.s32.totalorder %s20, 0
      %p93 = por %p91, %p92
      %p94 = scmp.ne.s32.totalorder %s80, %s81
      %p95 = scmp.eq.s32.totalorder %s21, 1
      %p96 = por %p94, %p95
      %p98 = scmp.ne.s32.totalorder %s81, %s97
      %p99 = scmp.eq.s32.totalorder %s21, 0
      %p100 = por %p98, %p99
      %s101 = ssub.s32 %s15, %s22
      %p102 = scmp.eq.s32.totalorder %s101, 0
      %s104 = sadd.s32 %s103, 1
      %s105 = scalar_select %p102, %s103, %s104
      %p108 = pneg %p102
      %p109 = scmp.eq.s32.totalorder %s15, 1
      %p110 = por %p108, %p109
      %p111 = scmp.ne.s32.totalorder %s103, %s106
      %p112 = scmp.eq.s32.totalorder %s15, 0
      %p113 = por %p111, %p112
      %p114 = scmp.ne.s32.totalorder %s103, %s106
      %p115 = scmp.eq.s32.totalorder %s20, 1
      %p116 = por %p114, %p115
      %p117 = scmp.ne.s32.totalorder %s106, %s107
      %p118 = scmp.eq.s32.totalorder %s20, 0
      %p119 = por %p117, %p118
      %p120 = scmp.ne.s32.totalorder %s106, %s107
      %p121 = scmp.eq.s32.totalorder %s21, 1
      %p122 = por %p120, %p121
      %p124 = scmp.ne.s32.totalorder %s107, %s123
      %p125 = scmp.eq.s32.totalorder %s21, 0
      %p126 = por %p124, %p125
      %s127 = ssub.s32 %s15, %s22
      %p128 = scmp.eq.s32.totalorder %s127, 0
      %s130 = sadd.s32 %s129, 1
      %s131 = scalar_select %p128, %s129, %s130
      %p134 = pneg %p128
      %p135 = scmp.eq.s32.totalorder %s15, 1
      %p136 = por %p134, %p135
      %p137 = scmp.ne.s32.totalorder %s129, %s132
      %p138 = scmp.eq.s32.totalorder %s15, 0
      %p139 = por %p137, %p138
      %p140 = scmp.ne.s32.totalorder %s129, %s132
      %p141 = scmp.eq.s32.totalorder %s20, 1
      %p142 = por %p140, %p141
      %p143 = scmp.ne.s32.totalorder %s132, %s133
      %p144 = scmp.eq.s32.totalorder %s20, 0
      %p145 = por %p143, %p144
      %p146 = scmp.ne.s32.totalorder %s132, %s133
      %p147 = scmp.eq.s32.totalorder %s21, 1
      %p148 = por %p146, %p147
      %p150 = scmp.ne.s32.totalorder %s133, %s149
      %p151 = scmp.eq.s32.totalorder %s21, 0
      %p152 = por %p150, %p151
      %s153 = ssub.s32 %s15, %s22
      %p154 = scmp.eq.s32.totalorder %s153, 0
      %s156 = sadd.s32 %s155, 1
      %s157 = scalar_select %p154, %s155, %s156
      %p160 = pneg %p154
      %p161 = scmp.eq.s32.totalorder %s15, 1
      %p162 = por %p160, %p161
      %p163 = scmp.ne.s32.totalorder %s155, %s158
      %p164 = scmp.eq.s32.totalorder %s15, 0
      %p165 = por %p163, %p164
      %p166 = scmp.ne.s32.totalorder %s155, %s158
      %p167 = scmp.eq.s32.totalorder %s20, 1
      %p168 = por %p166, %p167
      %p169 = scmp.ne.s32.totalorder %s158, %s159
      %p170 = scmp.eq.s32.totalorder %s20, 0
      %p171 = por %p169, %p170
      %p172 = scmp.ne.s32.totalorder %s158, %s159
      %p173 = scmp.eq.s32.totalorder %s21, 1
      %p174 = por %p172, %p173
      %p176 = scmp.ne.s32.totalorder %s159, %s175
      %p177 = scmp.eq.s32.totalorder %s21, 0
      %p178 = por %p176, %p177
      %p179 = scmp.le.s32.totalorder 1, %s15
      %p180 = scmp.lt.s32.totalorder %s15, 3
      %p181 = pnand %p179, %p180
      %p182 = pneg %p181
      // Predicated region
      $region9: #{enhanced_bart_forward.46} parent=5 // pred_check
        _
      $region10: #{enhanced_bart_forward.46} parent=5 // pred_check_branch
        %184 = sbr.rel (%p181) target = $region12
      $region11: #{enhanced_bart_forward.46} parent=5 // pred_region
        %s185 = ssub.s32 %s15, 1
      $region12: #{enhanced_bart_forward.46} parent=5 // pred_fallthru
        _
      %p186 = scmp.lt.s32.totalorder %s15, 2
      // Predicated region
      $region13: #{enhanced_bart_forward.46} parent=5 // pred_check
        %p187 = pneg %p186
      $region14: #{enhanced_bart_forward.46} parent=5 // pred_check_branch
        %189 = sbr.rel (%p187) target = $region16
      $region15: #{enhanced_bart_forward.46} parent=5 // pred_region
        // Predicated region
        $region17: #{enhanced_bart_forward.46} parent=15 // pred_check
          %p190 = pneg %p35
        $region18: #{enhanced_bart_forward.46} parent=15 // pred_check_branch
          %192 = sbr.rel (%p190) target = $region20
        $region19: #{enhanced_bart_forward.46} parent=15 // pred_region
          %p193 = scmp.lt.s32.totalorder %s15, 1
          %s194 = scalar_select %p193, %s15, 1
          %s195 = smul.addr %s194, 4
          %s196 = smul.addr %s195, 4
          %s197 = scalar_lea.vmem %s0, %s196
        $region20: #{enhanced_bart_forward.46} parent=15 // pred_fallthru
          _
        // Predicated region
        $region21: #{enhanced_bart_forward.46} parent=15 // pred_check
          %p198 = pneg %p61
        $region22: #{enhanced_bart_forward.46} parent=15 // pred_check_branch
          %200 = sbr.rel (%p198) target = $region24
        $region23: #{enhanced_bart_forward.46} parent=15 // pred_region
          %p201 = scmp.lt.s32.totalorder %s15, 1
          %s202 = scalar_select %p201, %s15, 1
          %s203 = smul.addr %s202, 4
          %s204 = smul.addr %s203, 4
          %s205 = scalar_lea.vmem %s1, %s204
        $region24: #{enhanced_bart_forward.46} parent=15 // pred_fallthru
          _
        // Predicated region
        $region25: #{enhanced_bart_forward.46} parent=15 // pred_check
          %p206 = pneg %p87
        $region26: #{enhanced_bart_forward.46} parent=15 // pred_check_branch
          %208 = sbr.rel (%p206) target = $region28
        $region27: #{enhanced_bart_forward.46} parent=15 // pred_region
          %p209 = scmp.lt.s32.totalorder %s15, 1
          %s210 = scalar_select %p209, %s15, 1
          %s211 = smul.addr %s210, 4
          %s212 = smul.addr %s211, 4
          %s213 = scalar_lea.vmem %s2, %s212
        $region28: #{enhanced_bart_forward.46} parent=15 // pred_fallthru
          _
        // Predicated region
        $region29: #{enhanced_bart_forward.46} parent=15 // pred_check
          %p214 = pneg %p113
        $region30: #{enhanced_bart_forward.46} parent=15 // pred_check_branch
          %216 = sbr.rel (%p214) target = $region32
        $region31: #{enhanced_bart_forward.46} parent=15 // pred_region
          %p217 = scmp.lt.s32.totalorder %s15, 1
          %s218 = scalar_select %p217, %s15, 1
          %s219 = smul.addr %s218, 8
          %s220 = scalar_lea.vmem %s3, %s219
        $region32: #{enhanced_bart_forward.46} parent=15 // pred_fallthru
          _
      $region16: #{enhanced_bart_forward.46} parent=5 // pred_fallthru
        _
      %p221 = scmp.le.s32.totalorder 1, %s15
      %p222 = scmp.lt.s32.totalorder %s15, 3
      %p223 = pnand %p221, %p222
      %p224 = pneg %p223
      // Predicated region
      $region33: #{enhanced_bart_forward.46} parent=5 // pred_check
        _
      $region34: #{enhanced_bart_forward.46} parent=5 // pred_check_branch
        %226 = sbr.rel (%p223) target = $region36
      $region35: #{enhanced_bart_forward.46} parent=5 // pred_region
        %s227 = ssub.s32 %s15, 1
        %p228 = scmp.lt.s32.totalorder %s20, 1
        %s229 = scalar_select %p228, %s20, 1
        %s230 = smul.addr %s229, 4
        %s231 = smul.addr %s230, 4
        %s232 = scalar_lea.vmem %s0, %s231
        %p233 = pneg %p41
        %p234 = pneg %p38
        %p235 = scmp.lt.s32.totalorder %s20, 1
        %s236 = scalar_select %p235, %s20, 1
        %s237 = smul.addr %s236, 4
        %s238 = smul.addr %s237, 4
        %s239 = scalar_lea.vmem %s1, %s238
        %p240 = pneg %p67
        %p241 = pneg %p64
        %p242 = scmp.lt.s32.totalorder %s20, 1
        %s243 = scalar_select %p242, %s20, 1
        %s244 = smul.addr %s243, 4
        %s245 = smul.addr %s244, 4
        %s246 = scalar_lea.vmem %s2, %s245
        %p247 = pneg %p93
        %p248 = pneg %p90
        %p249 = scmp.lt.s32.totalorder %s20, 1
        %s250 = scalar_select %p249, %s20, 1
        %s251 = smul.addr %s250, 8
        %s252 = scalar_lea.vmem %s3, %s251
        %p253 = pneg %p119
        %p254 = pneg %p116
        %p255 = pneg %p145
        %p256 = pneg %p142
        %p257 = scmp.lt.s32.totalorder %s20, 1
        %s258 = scalar_select %p257, %s20, 1
        %s259 = smul.addr %s258, 4
        %s260 = smul.addr %s259, 8
        %s261 = scalar_lea.vmem %s4, %s260
        %p262 = pneg %p171
        %p263 = pneg %p168
        %s264 = sand.u32 %s158, 1
        %s265 = scalar_lea.sflag [#allocation3], %s264
        %s266 = sand.u32 %s158, 1
        %s267 = smul.addr %s266, 32
        %s268 = scalar_lea.vmem [#allocation2], %s267
        %p269 = scmp.lt.s32.totalorder %s20, 1
        %s270 = scalar_select %p269, %s20, 1
        %s271 = smul.addr %s270, 4
        %s272 = smul.addr %s271, 4
        %s273 = scalar_lea.vmem %s0, %s272
        %p274 = scmp.lt.s32.totalorder %s20, 1
        %s275 = scalar_select %p274, %s20, 1
        %s276 = smul.addr %s275, 4
        %s277 = smul.addr %s276, 4
        %s278 = scalar_lea.vmem %s1, %s277
        %p279 = scmp.lt.s32.totalorder %s20, 1
        %s280 = scalar_select %p279, %s20, 1
        %s281 = smul.addr %s280, 4
        %s282 = smul.addr %s281, 4
        %s283 = scalar_lea.vmem %s2, %s282
        %p284 = scmp.lt.s32.totalorder %s20, 1
        %s285 = scalar_select %p284, %s20, 1
        %s286 = smul.addr %s285, 8
        %s287 = scalar_lea.vmem %s3, %s286
        %p288 = scmp.lt.s32.totalorder %s20, 1
        %s289 = scalar_select %p288, %s20, 1
        %s290 = smul.addr %s289, 4
        %s291 = smul.addr %s290, 8
        %s292 = scalar_lea.vmem %s4, %s291
        %v294 = vld [vmem:[%s273] sm:$0xf]
        %v295 = vld [vmem:[%s273 + $0x4] sm:$0xf]
        %v296 = vld [vmem:[%s273 + $0x8] sm:$0xf]
        %v297 = vld [vmem:[%s273 + $0xc] sm:$0xf]
        %v298 = vld [vmem:[%s278] sm:$0xf]
        %v299 = vld [vmem:[%s278 + $0x4] sm:$0xf]
        %v300 = vld [vmem:[%s278 + $0x8] sm:$0xf]
        %v301 = vld [vmem:[%s278 + $0xc] sm:$0xf]
        %v302 = vld [vmem:[%s283] sm:$0xf]
        %v303 = vld [vmem:[%s283 + $0x4] sm:$0xf]
        %v304 = vld [vmem:[%s283 + $0x8] sm:$0xf]
        %v305 = vld [vmem:[%s283 + $0xc] sm:$0xf]
        %vm306 = vcmask 64512
        %v308 = vsel %vm306, %v294, 0
        %v311 = vsel %vm306, %v298, 0
        %313 = vmatprep.subr.bf16.mxu0 0
        %314 = vmatpush1.bf16.xpose.msra.mxu0 %v311
        %315 = vmatprep.subr.bf16.mxu0 0
        %316 = vmatpush1.bf16.xpose.msra.mxu0 0
        %317 = vmatprep.subr.bf16.mxu0 0
        %318 = vmatpush1.bf16.xpose.msra.mxu0 0
        %319 = vmatprep.subr.bf16.mxu0 0
        %320 = vmatpush1.bf16.xpose.msra.mxu0 0
        %321 = vmatprep.subr.bf16.mxu0 0
        %322 = vmatpush1.bf16.xpose.msra.mxu0 0
        %323 = vmatprep.subr.bf16.mxu0 0
        %324 = vmatpush1.bf16.xpose.msra.mxu0 0
        %325 = vmatprep.subr.bf16.mxu0 0
        %326 = vmatpush1.bf16.xpose.msra.mxu0 0
        %327 = vmatprep.subr.bf16.mxu0 0
        %328 = vmatpush1.bf16.xpose.msra.mxu0 0
        %329 = vmatprep.subr.bf16.mxu0 0
        %330 = vmatpush1.bf16.xpose.msra.mxu0 0
        %331 = vmatprep.subr.bf16.mxu0 0
        %332 = vmatpush1.bf16.xpose.msra.mxu0 0
        %333 = vmatprep.subr.bf16.mxu0 0
        %334 = vmatpush1.bf16.xpose.msra.mxu0 0
        %335 = vmatprep.subr.bf16.mxu0 0
        %336 = vmatpush1.bf16.xpose.msra.mxu0 0
        %337 = vmatprep.subr.bf16.mxu0 0
        %338 = vmatpush1.bf16.xpose.msra.mxu0 0
        %339 = vmatprep.subr.bf16.mxu0 0
        %340 = vmatpush1.bf16.xpose.msra.mxu0 0
        %341 = vmatprep.subr.bf16.mxu0 0
        %342 = vmatpush1.bf16.xpose.msra.mxu0 0
        %343 = vmatprep.subr.bf16.mxu0 0
        %344 = vmatpush1.bf16.xpose.msra.mxu0 0
        %345 = vmatprep.mubr.bf16.mxu0 0
        %346 = vmatmul.mubr.bf16.gmra.mrb[0].mxu0 %v308
        %v347 = vpop.f32.mrb[0].mxu0
        %v348 = vadd.f32 0.0, %v347
        %v349 = vpop.f32.mrb[0].mxu0
        %v350 = vpop.f32.mrb[0].mxu0
        %v351 = vpop.f32.mrb[0].mxu0
        %352 = vdwg.mxu0
        %v354 = vsel %vm306, %v295, 0
        %v357 = vsel %vm306, %v299, 0
        %359 = vmatprep.subr.bf16.mxu0 0
        %360 = vmatpush1.bf16.xpose.msra.mxu0 %v357
        %361 = vmatprep.subr.bf16.mxu0 0
        %362 = vmatpush1.bf16.xpose.msra.mxu0 0
        %363 = vmatprep.subr.bf16.mxu0 0
        %364 = vmatpush1.bf16.xpose.msra.mxu0 0
        %365 = vmatprep.subr.bf16.mxu0 0
        %366 = vmatpush1.bf16.xpose.msra.mxu0 0
        %367 = vmatprep.subr.bf16.mxu0 0
        %368 = vmatpush1.bf16.xpose.msra.mxu0 0
        %369 = vmatprep.subr.bf16.mxu0 0
        %370 = vmatpush1.bf16.xpose.msra.mxu0 0
        %371 = vmatprep.subr.bf16.mxu0 0
        %372 = vmatpush1.bf16.xpose.msra.mxu0 0
        %373 = vmatprep.subr.bf16.mxu0 0
        %374 = vmatpush1.bf16.xpose.msra.mxu0 0
        %375 = vmatprep.subr.bf16.mxu0 0
        %376 = vmatpush1.bf16.xpose.msra.mxu0 0
        %377 = vmatprep.subr.bf16.mxu0 0
        %378 = vmatpush1.bf16.xpose.msra.mxu0 0
        %379 = vmatprep.subr.bf16.mxu0 0
        %380 = vmatpush1.bf16.xpose.msra.mxu0 0
        %381 = vmatprep.subr.bf16.mxu0 0
        %382 = vmatpush1.bf16.xpose.msra.mxu0 0
        %383 = vmatprep.subr.bf16.mxu0 0
        %384 = vmatpush1.bf16.xpose.msra.mxu0 0
        %385 = vmatprep.subr.bf16.mxu0 0
        %386 = vmatpush1.bf16.xpose.msra.mxu0 0
        %387 = vmatprep.subr.bf16.mxu0 0
        %388 = vmatpush1.bf16.xpose.msra.mxu0 0
        %389 = vmatprep.subr.bf16.mxu0 0
        %390 = vmatpush1.bf16.xpose.msra.mxu0 0
        %391 = vmatprep.mubr.bf16.mxu0 0
        %392 = vmatmul.mubr.bf16.gmra.mrb[0].mxu0 %v354
        %v393 = vpop.f32.mrb[0].mxu0
        %v394 = vadd.f32 0.0, %v393
        %v395 = vpop.f32.mrb[0].mxu0
        %v396 = vpop.f32.mrb[0].mxu0
        %v397 = vpop.f32.mrb[0].mxu0
        %398 = vdwg.mxu0
        %v400 = vsel %vm306, %v296, 0
        %v403 = vsel %vm306, %v300, 0
        %405 = vmatprep.subr.bf16.mxu0 0
        %406 = vmatpush1.bf16.xpose.msra.mxu0 %v403
        %407 = vmatprep.subr.bf16.mxu0 0
        %408 = vmatpush1.bf16.xpose.msra.mxu0 0
        %409 = vmatprep.subr.bf16.mxu0 0
        %410 = vmatpush1.bf16.xpose.msra.mxu0 0
        %411 = vmatprep.subr.bf16.mxu0 0
        %412 = vmatpush1.bf16.xpose.msra.mxu0 0
        %413 = vmatprep.subr.bf16.mxu0 0
        %414 = vmatpush1.bf16.xpose.msra.mxu0 0
        %415 = vmatprep.subr.bf16.mxu0 0
        %416 = vmatpush1.bf16.xpose.msra.mxu0 0
        %417 = vmatprep.subr.bf16.mxu0 0
        %418 = vmatpush1.bf16.xpose.msra.mxu0 0
        %419 = vmatprep.subr.bf16.mxu0 0
        %420 = vmatpush1.bf16.xpose.msra.mxu0 0
        %421 = vmatprep.subr.bf16.mxu0 0
        %422 = vmatpush1.bf16.xpose.msra.mxu0 0
        %423 = vmatprep.subr.bf16.mxu0 0
        %424 = vmatpush1.bf16.xpose.msra.mxu0 0
        %425 = vmatprep.subr.bf16.mxu0 0
        %426 = vmatpush1.bf16.xpose.msra.mxu0 0
        %427 = vmatprep.subr.bf16.mxu0 0
        %428 = vmatpush1.bf16.xpose.msra.mxu0 0
        %429 = vmatprep.subr.bf16.mxu0 0
        %430 = vmatpush1.bf16.xpose.msra.mxu0 0
        %431 = vmatprep.subr.bf16.mxu0 0
        %432 = vmatpush1.bf16.xpose.msra.mxu0 0
        %433 = vmatprep.subr.bf16.mxu0 0
        %434 = vmatpush1.bf16.xpose.msra.mxu0 0
        %435 = vmatprep.subr.bf16.mxu0 0
        %436 = vmatpush1.bf16.xpose.msra.mxu0 0
        %437 = vmatprep.mubr.bf16.mxu0 0
        %438 = vmatmul.mubr.bf16.gmra.mrb[0].mxu0 %v400
        %v439 = vpop.f32.mrb[0].mxu0
        %v440 = vadd.f32 0.0, %v439
        %v441 = vpop.f32.mrb[0].mxu0
        %v442 = vpop.f32.mrb[0].mxu0
        %v443 = vpop.f32.mrb[0].mxu0
        %444 = vdwg.mxu0
        %v446 = vsel %vm306, %v297, 0
        %v449 = vsel %vm306, %v301, 0
        %451 = vmatprep.subr.bf16.mxu0 0
        %452 = vmatpush1.bf16.xpose.msra.mxu0 %v449
        %453 = vmatprep.subr.bf16.mxu0 0
        %454 = vmatpush1.bf16.xpose.msra.mxu0 0
        %455 = vmatprep.subr.bf16.mxu0 0
        %456 = vmatpush1.bf16.xpose.msra.mxu0 0
        %457 = vmatprep.subr.bf16.mxu0 0
        %458 = vmatpush1.bf16.xpose.msra.mxu0 0
        %459 = vmatprep.subr.bf16.mxu0 0
        %460 = vmatpush1.bf16.xpose.msra.mxu0 0
        %461 = vmatprep.subr.bf16.mxu0 0
        %462 = vmatpush1.bf16.xpose.msra.mxu0 0
        %463 = vmatprep.subr.bf16.mxu0 0
        %464 = vmatpush1.bf16.xpose.msra.mxu0 0
        %465 = vmatprep.subr.bf16.mxu0 0
        %466 = vmatpush1.bf16.xpose.msra.mxu0 0
        %467 = vmatprep.subr.bf16.mxu0 0
        %468 = vmatpush1.bf16.xpose.msra.mxu0 0
        %469 = vmatprep.subr.bf16.mxu0 0
        %470 = vmatpush1.bf16.xpose.msra.mxu0 0
        %471 = vmatprep.subr.bf16.mxu0 0
        %472 = vmatpush1.bf16.xpose.msra.mxu0 0
        %473 = vmatprep.subr.bf16.mxu0 0
        %474 = vmatpush1.bf16.xpose.msra.mxu0 0
        %475 = vmatprep.subr.bf16.mxu0 0
        %476 = vmatpush1.bf16.xpose.msra.mxu0 0
        %477 = vmatprep.subr.bf16.mxu0 0
        %478 = vmatpush1.bf16.xpose.msra.mxu0 0
        %479 = vmatprep.subr.bf16.mxu0 0
        %480 = vmatpush1.bf16.xpose.msra.mxu0 0
        %481 = vmatprep.subr.bf16.mxu0 0
        %482 = vmatpush1.bf16.xpose.msra.mxu0 0
        %483 = vmatprep.mubr.bf16.mxu0 0
        %484 = vmatmul.mubr.bf16.gmra.mrb[0].mxu0 %v446
        %v485 = vpop.f32.mrb[0].mxu0
        %v486 = vadd.f32 0.0, %v485
        %v487 = vpop.f32.mrb[0].mxu0
        %v488 = vpop.f32.mrb[0].mxu0
        %v489 = vpop.f32.mrb[0].mxu0
        %490 = vdwg.mxu0
        %v491 = vmul.f32 %v348, 0.35355338
        %v492 = vmul.f32 %v394, 0.35355338
        %v493 = vmul.f32 %v440, 0.35355338
        %v494 = vmul.f32 %v486, 0.35355338
        %v495 = vld [vmem:[%s287] sm:$0xff]
        %v496 = vadd.f32 %v491, %v495
        %v497 = vadd.f32 %v492, %v495
        %v498 = vadd.f32 %v493, %v495
        %v499 = vadd.f32 %v494, %v495
        %v500 = vsel %vm306, %v496, -inf
        %501 = vmax.xlane.f32.xlu0 %v500
        %v502 = vpop.xlane.xlu0 %501
        %v503 = vsel %vm306, %v497, -inf
        %504 = vmax.xlane.f32.xlu0 %v503
        %v505 = vpop.xlane.xlu0 %504
        %v506 = vsel %vm306, %v498, -inf
        %507 = vmax.xlane.f32.xlu0 %v506
        %v508 = vpop.xlane.xlu0 %507
        %v509 = vsel %vm306, %v499, -inf
        %510 = vmax.xlane.f32.xlu0 %v509
        %v511 = vpop.xlane.xlu0 %510
        %v512 = vsub.f32 %v496, %v502
        %v513 = vsub.f32 %v497, %v505
        %v514 = vsub.f32 %v498, %v508
        %v515 = vsub.f32 %v499, %v511
        %v516 = vmul.f32 %v512, 1.442695
        %v517 = vpow.pop %v516
        %v518 = vmul.f32 %v513, 1.442695
        %v519 = vpow.pop %v518
        %v520 = vmul.f32 %v514, 1.442695
        %v521 = vpow.pop %v520
        %v522 = vmul.f32 %v515, 1.442695
        %v523 = vpow.pop %v522
        %v524 = vsel %vm306, %v517, 0.0
        %525 = vadd.xlane.f32.xlu0 %v524
        %v526 = vpop.xlane.xlu0 %525
        %v527 = vsel %vm306, %v519, 0.0
        %528 = vadd.xlane.f32.xlu0 %v527
        %v529 = vpop.xlane.xlu0 %528
        %v530 = vsel %vm306, %v521, 0.0
        %531 = vadd.xlane.f32.xlu0 %v530
        %v532 = vpop.xlane.xlu0 %531
        %v533 = vsel %vm306, %v523, 0.0
        %534 = vadd.xlane.f32.xlu0 %v533
        %v535 = vpop.xlane.xlu0 %534
        %v536 = vrcp.pop %v526
        %v537 = vrcp.pop %v529
        %v538 = vrcp.pop %v532
        %v539 = vrcp.pop %v535
        %v540 = vmul.f32 %v517, %v536
        %v541 = vmul.f32 %v519, %v537
        %v542 = vmul.f32 %v521, %v538
        %v543 = vmul.f32 %v523, %v539
        %v544 = vpack.c.bf16 %v540, %v540
        %v545 = vpack.c.bf16 %v541, %v541
        %v546 = vpack.c.bf16 %v542, %v542
        %v547 = vpack.c.bf16 %v543, %v543
        %v549 = vsel %vm306, %v544, 0
        %vm551 = vcmask 1043456
        %v553 = vsel %vm551, %v302, 0
        %555 = vmatprep.subr.bf16.mxu0 0
        %556 = vmatpush1.bf16.msra.mxu0 %v553
        %557 = vmatprep.subr.bf16.mxu0 0
        %558 = vmatpush1.bf16.msra.mxu0 0
        %559 = vmatprep.subr.bf16.mxu0 0
        %560 = vmatpush1.bf16.msra.mxu0 0
        %561 = vmatprep.subr.bf16.mxu0 0
        %562 = vmatpush1.bf16.msra.mxu0 0
        %563 = vmatprep.subr.bf16.mxu0 0
        %564 = vmatpush1.bf16.msra.mxu0 0
        %565 = vmatprep.subr.bf16.mxu0 0
        %566 = vmatpush1.bf16.msra.mxu0 0
        %567 = vmatprep.subr.bf16.mxu0 0
        %568 = vmatpush1.bf16.msra.mxu0 0
        %569 = vmatprep.subr.bf16.mxu0 0
        %570 = vmatpush1.bf16.msra.mxu0 0
        %571 = vmatprep.subr.bf16.mxu0 0
        %572 = vmatpush1.bf16.msra.mxu0 0
        %573 = vmatprep.subr.bf16.mxu0 0
        %574 = vmatpush1.bf16.msra.mxu0 0
        %575 = vmatprep.subr.bf16.mxu0 0
        %576 = vmatpush1.bf16.msra.mxu0 0
        %577 = vmatprep.subr.bf16.mxu0 0
        %578 = vmatpush1.bf16.msra.mxu0 0
        %579 = vmatprep.subr.bf16.mxu0 0
        %580 = vmatpush1.bf16.msra.mxu0 0
        %581 = vmatprep.subr.bf16.mxu0 0
        %582 = vmatpush1.bf16.msra.mxu0 0
        %583 = vmatprep.subr.bf16.mxu0 0
        %584 = vmatpush1.bf16.msra.mxu0 0
        %585 = vmatprep.subr.bf16.mxu0 0
        %586 = vmatpush1.bf16.msra.mxu0 0
        %587 = vmatprep.mubr.bf16.mxu0 0
        %588 = vmatmul.mubr.bf16.gmra.mrb[0].mxu0 %v549
        %v589 = vpop.f32.mrb[0].mxu0
        %v590 = vadd.f32 0.0, %v589
        %v591 = vpop.f32.mrb[0].mxu0
        %v592 = vpop.f32.mrb[0].mxu0
        %v593 = vpop.f32.mrb[0].mxu0
        %594 = vdwg.mxu0
        %v596 = vsel %vm306, %v545, 0
        %v599 = vsel %vm551, %v303, 0
        %601 = vmatprep.subr.bf16.mxu0 0
        %602 = vmatpush1.bf16.msra.mxu0 %v599
        %603 = vmatprep.subr.bf16.mxu0 0
        %604 = vmatpush1.bf16.msra.mxu0 0
        %605 = vmatprep.subr.bf16.mxu0 0
        %606 = vmatpush1.bf16.msra.mxu0 0
        %607 = vmatprep.subr.bf16.mxu0 0
        %608 = vmatpush1.bf16.msra.mxu0 0
        %609 = vmatprep.subr.bf16.mxu0 0
        %610 = vmatpush1.bf16.msra.mxu0 0
        %611 = vmatprep.subr.bf16.mxu0 0
        %612 = vmatpush1.bf16.msra.mxu0 0
        %613 = vmatprep.subr.bf16.mxu0 0
        %614 = vmatpush1.bf16.msra.mxu0 0
        %615 = vmatprep.subr.bf16.mxu0 0
        %616 = vmatpush1.bf16.msra.mxu0 0
        %617 = vmatprep.subr.bf16.mxu0 0
        %618 = vmatpush1.bf16.msra.mxu0 0
        %619 = vmatprep.subr.bf16.mxu0 0
        %620 = vmatpush1.bf16.msra.mxu0 0
        %621 = vmatprep.subr.bf16.mxu0 0
        %622 = vmatpush1.bf16.msra.mxu0 0
        %623 = vmatprep.subr.bf16.mxu0 0
        %624 = vmatpush1.bf16.msra.mxu0 0
        %625 = vmatprep.subr.bf16.mxu0 0
        %626 = vmatpush1.bf16.msra.mxu0 0
        %627 = vmatprep.subr.bf16.mxu0 0
        %628 = vmatpush1.bf16.msra.mxu0 0
        %629 = vmatprep.subr.bf16.mxu0 0
        %630 = vmatpush1.bf16.msra.mxu0 0
        %631 = vmatprep.subr.bf16.mxu0 0
        %632 = vmatpush1.bf16.msra.mxu0 0
        %633 = vmatprep.mubr.bf16.mxu0 0
        %634 = vmatmul.mubr.bf16.gmra.mrb[0].mxu0 %v596
        %v635 = vpop.f32.mrb[0].mxu0
        %v636 = vadd.f32 0.0, %v635
        %v637 = vpop.f32.mrb[0].mxu0
        %v638 = vpop.f32.mrb[0].mxu0
        %v639 = vpop.f32.mrb[0].mxu0
        %640 = vdwg.mxu0
        %v642 = vsel %vm306, %v546, 0
        %v645 = vsel %vm551, %v304, 0
        %647 = vmatprep.subr.bf16.mxu0 0
        %648 = vmatpush1.bf16.msra.mxu0 %v645
        %649 = vmatprep.subr.bf16.mxu0 0
        %650 = vmatpush1.bf16.msra.mxu0 0
        %651 = vmatprep.subr.bf16.mxu0 0
        %652 = vmatpush1.bf16.msra.mxu0 0
        %653 = vmatprep.subr.bf16.mxu0 0
        %654 = vmatpush1.bf16.msra.mxu0 0
        %655 = vmatprep.subr.bf16.mxu0 0
        %656 = vmatpush1.bf16.msra.mxu0 0
        %657 = vmatprep.subr.bf16.mxu0 0
        %658 = vmatpush1.bf16.msra.mxu0 0
        %659 = vmatprep.subr.bf16.mxu0 0
        %660 = vmatpush1.bf16.msra.mxu0 0
        %661 = vmatprep.subr.bf16.mxu0 0
        %662 = vmatpush1.bf16.msra.mxu0 0
        %663 = vmatprep.subr.bf16.mxu0 0
        %664 = vmatpush1.bf16.msra.mxu0 0
        %665 = vmatprep.subr.bf16.mxu0 0
        %666 = vmatpush1.bf16.msra.mxu0 0
        %667 = vmatprep.subr.bf16.mxu0 0
        %668 = vmatpush1.bf16.msra.mxu0 0
        %669 = vmatprep.subr.bf16.mxu0 0
        %670 = vmatpush1.bf16.msra.mxu0 0
        %671 = vmatprep.subr.bf16.mxu0 0
        %672 = vmatpush1.bf16.msra.mxu0 0
        %673 = vmatprep.subr.bf16.mxu0 0
        %674 = vmatpush1.bf16.msra.mxu0 0
        %675 = vmatprep.subr.bf16.mxu0 0
        %676 = vmatpush1.bf16.msra.mxu0 0
        %677 = vmatprep.subr.bf16.mxu0 0
        %678 = vmatpush1.bf16.msra.mxu0 0
        %679 = vmatprep.mubr.bf16.mxu0 0
        %680 = vmatmul.mubr.bf16.gmra.mrb[0].mxu0 %v642
        %v681 = vpop.f32.mrb[0].mxu0
        %v682 = vadd.f32 0.0, %v681
        %v683 = vpop.f32.mrb[0].mxu0
        %v684 = vpop.f32.mrb[0].mxu0
        %v685 = vpop.f32.mrb[0].mxu0
        %686 = vdwg.mxu0
        %v688 = vsel %vm306, %v547, 0
        %v691 = vsel %vm551, %v305, 0
        %693 = vmatprep.subr.bf16.mxu0 0
        %694 = vmatpush1.bf16.msra.mxu0 %v691
        %695 = vmatprep.subr.bf16.mxu0 0
        %696 = vmatpush1.bf16.msra.mxu0 0
        %697 = vmatprep.subr.bf16.mxu0 0
        %698 = vmatpush1.bf16.msra.mxu0 0
        %699 = vmatprep.subr.bf16.mxu0 0
        %700 = vmatpush1.bf16.msra.mxu0 0
        %701 = vmatprep.subr.bf16.mxu0 0
        %702 = vmatpush1.bf16.msra.mxu0 0
        %703 = vmatprep.subr.bf16.mxu0 0
        %704 = vmatpush1.bf16.msra.mxu0 0
        %705 = vmatprep.subr.bf16.mxu0 0
        %706 = vmatpush1.bf16.msra.mxu0 0
        %707 = vmatprep.subr.bf16.mxu0 0
        %708 = vmatpush1.bf16.msra.mxu0 0
        %709 = vmatprep.subr.bf16.mxu0 0
        %710 = vmatpush1.bf16.msra.mxu0 0
        %711 = vmatprep.subr.bf16.mxu0 0
        %712 = vmatpush1.bf16.msra.mxu0 0
        %713 = vmatprep.subr.bf16.mxu0 0
        %714 = vmatpush1.bf16.msra.mxu0 0
        %715 = vmatprep.subr.bf16.mxu0 0
        %716 = vmatpush1.bf16.msra.mxu0 0
        %717 = vmatprep.subr.bf16.mxu0 0
        %718 = vmatpush1.bf16.msra.mxu0 0
        %719 = vmatprep.subr.bf16.mxu0 0
        %720 = vmatpush1.bf16.msra.mxu0 0
        %721 = vmatprep.subr.bf16.mxu0 0
        %722 = vmatpush1.bf16.msra.mxu0 0
        %723 = vmatprep.subr.bf16.mxu0 0
        %724 = vmatpush1.bf16.msra.mxu0 0
        %725 = vmatprep.mubr.bf16.mxu0 0
        %726 = vmatmul.mubr.bf16.gmra.mrb[0].mxu0 %v688
        %v727 = vpop.f32.mrb[0].mxu0
        %v728 = vadd.f32 0.0, %v727
        %v729 = vpop.f32.mrb[0].mxu0
        %v730 = vpop.f32.mrb[0].mxu0
        %v731 = vpop.f32.mrb[0].mxu0
        %732 = vdwg.mxu0
        %733 = vst.msk [vmem:[%s292] sm:$0xff] %vm306, %v590
        %734 = vst.msk [vmem:[%s292 + $0x8] sm:$0xff] %vm306, %v636
        %735 = vst.msk [vmem:[%s292 + $0x10] sm:$0xff] %vm306, %v682
        %736 = vst.msk [vmem:[%s292 + $0x18] sm:$0xff] %vm306, %v728
        %737 = vst.msk [vmem:[%s268] sm:$0xff] %vm306, %v540
        %738 = vst.msk [vmem:[%s268 + $0x8] sm:$0xff] %vm306, %v541
        %739 = vst.msk [vmem:[%s268 + $0x10] sm:$0xff] %vm306, %v542
        %740 = vst.msk [vmem:[%s268 + $0x18] sm:$0xff] %vm306, %v543
        %p741 = scmp.lt.s32.totalorder %s20, 1
        %s742 = scalar_select %p741, %s20, 1
        %s743 = smul.addr %s742, 4
        %s744 = smul.addr %s743, 8
        %s745 = scalar_lea.vmem %s4, %s744
        %s746 = sand.u32 %s158, 1
        %s747 = scalar_lea.sflag [#allocation3], %s746
        %s748 = sand.u32 %s158, 1
        %s749 = smul.addr %s748, 32
        %s750 = scalar_lea.vmem [#allocation2], %s749
        // Predicated region
        $region37: #{enhanced_bart_forward.46} parent=35 // pred_check
          %p751 = pneg %p142
        $region38: #{enhanced_bart_forward.46} parent=35 // pred_check_branch
          %753 = sbr.rel (%p751) target = $region40
        $region39: #{enhanced_bart_forward.46} parent=35 // pred_region
          _
        $region40: #{enhanced_bart_forward.46} parent=35 // pred_fallthru
          _
        // Predicated region
        $region41: #{enhanced_bart_forward.46} parent=35 // pred_check
          %p754 = pneg %p168
        $region42: #{enhanced_bart_forward.46} parent=35 // pred_check_branch
          %756 = sbr.rel (%p754) target = $region44
        $region43: #{enhanced_bart_forward.46} parent=35 // pred_region
          %s758 = ssub.s32 512, 512
          %759 = vsyncadd %s747, %s758
          %s760 = smul.addr %s20, 4
          %s761 = smul.addr %s760, 128
          %s762 = scalar_lea.hbm %s5, %s761
          %s763 = sshll.u32 %s750, 4
          %s764 = int_to_ptr.vmem [resolvable:$true] %s763
          %769 = dma.vmem_to_hbm [thread:$0]  %s764, 512, %s762, %s747, 128, 128, 8
        $region44: #{enhanced_bart_forward.46} parent=35 // pred_fallthru
          _
      $region36: #{enhanced_bart_forward.46} parent=5 // pred_fallthru
        _
      %p770 = scmp.le.s32.totalorder 2, %s15
      // Predicated region
      $region45: #{enhanced_bart_forward.46} parent=5 // pred_check
        %p771 = pneg %p770
      $region46: #{enhanced_bart_forward.46} parent=5 // pred_check_branch
        %773 = sbr.rel (%p771) target = $region48
      $region47: #{enhanced_bart_forward.46} parent=5 // pred_region
        %s774 = ssub.s32 %s15, 2
        // Predicated region
        $region49: #{enhanced_bart_forward.46} parent=47 // pred_check
          %p775 = pneg %p148
        $region50: #{enhanced_bart_forward.46} parent=47 // pred_check_branch
          %777 = sbr.rel (%p775) target = $region52
        $region51: #{enhanced_bart_forward.46} parent=47 // pred_region
          %p778 = scmp.lt.s32.totalorder %s21, 1
          %s779 = scalar_select %p778, %s21, 1
          %s780 = smul.addr %s779, 4
          %s781 = smul.addr %s780, 8
          %s782 = scalar_lea.vmem %s4, %s781
        $region52: #{enhanced_bart_forward.46} parent=47 // pred_fallthru
          _
        // Predicated region
        $region53: #{enhanced_bart_forward.46} parent=47 // pred_check
          %p783 = pneg %p174
        $region54: #{enhanced_bart_forward.46} parent=47 // pred_check_branch
          %785 = sbr.rel (%p783) target = $region56
        $region55: #{enhanced_bart_forward.46} parent=47 // pred_region
          %s786 = sand.u32 %s159, 1
          %s787 = scalar_lea.sflag [#allocation3], %s786
          %s788 = sand.u32 %s159, 1
          %s789 = smul.addr %s788, 32
          %s790 = scalar_lea.vmem [#allocation2], %s789
          %791 = dma.done %s787, 512
        $region56: #{enhanced_bart_forward.46} parent=47 // pred_fallthru
          _
      $region48: #{enhanced_bart_forward.46} parent=5 // pred_fallthru
        _
    $region6: #{enhanced_bart_forward.46} parent=1 // loop_footer
      %s19 = sadd.s32 1, %s15
    $region7: #{enhanced_bart_forward.46} parent=1 // loop_footer_branch
      %14 = sbr.rel target = $region3
    $region8: #{enhanced_bart_forward.46} parent=1 // loop_exit
      _
    %792 = vsyncpa [#allocation3], 1
    %s793 = scalar_lea.sflag [#allocation3], 1
    %794 = vsyncpa %s793, 1

// kernel: enhanced_bart_forward.61
$region0: #{enhanced_bart_forward.61}
  #allocation0 [shape = 'u32[]', space=smem, size = 0x4, offset = 0x4, fixed_abs, tag = 'smem constant byte address 0x4 - core index']
  #allocation1 [shape = 'u32[144,128]{1,0:T(1,128)}', space=vmem, size = 0x12000, scoped, tag = 'internal scratch']
  #allocation2 [shape = 'f32[2,2,8,8]{3,2,1,0:T(8,128)}', space=vmem, size = 0x4000, scoped, tag = 'scratch operand']
  #allocation3 [shape = 'f32[1,1]{1,0:T(1,128)}', space=vmem, size = 0x200, scoped, tag = 'scratch operand']
  %s0 = inlined_call_operand.vmem [shape: f32[2,2,4,8,8], index: 0, kind: input, shape index: {}]
  %s1 = inlined_call_operand.hbm [shape: f32[1,1], index: 1, kind: output, shape index: {0}]
  %s2 = inlined_call_operand.hbm [shape: f32[2,2,8,8], index: 2, kind: output, shape index: {1}]
  %3 = xla_tuple %s1, %s2
  %s4 = sld [smem:[#allocation0]]
  $region53: #{enhanced_bart_forward.61} parent=0
    _
  %s6 = ssub.s32 1, %s4
  %s7 = scalar_select 0, %s6, %s4
  $region1: #{enhanced_bart_forward.61} parent=0
    #allocation4 [shape = 'u8[512]{0}', space=vmem, size = 0x400, scoped, tag = 'output window, operand 0, single buffered']
    #allocation5 [shape = 's32[2]{0}', space=sflag, size = 0x8, scoped, tag = 'scoped memory for enhanced_bart_forward.61']
    #allocation6 [shape = 'u8[16384]{0}', space=vmem, size = 0x4000, scoped, tag = 'output window, operand 1, single buffered']
    #allocation7 [shape = 's32[1]{0}', space=sflag, size = 0x4, scoped, tag = 'scoped memory for enhanced_bart_forward.61']
    %8 = vsyncpa [#allocation5], 0
    %9 = vsyncpa [#allocation7], 0
    loop: start=0, step=1, limit=4
    $region2: #{enhanced_bart_forward.61} parent=1 // loop_pre_header
      _
    $region3: #{enhanced_bart_forward.61} parent=1 // loop_header
      %s11 = sphi 0, %s15
      %p12 = scmp.ge.s32.totalorder %s11, 4
      %s21 = sphi 0, %s23
      %s24 = sphi 0, %s21
      %s25 = sphi 0, %s24
      %s41 = sphi 0, %s25
      %s45 = sphi 0, %s45
      %s47 = sphi 0, %s45
      %s48 = sphi 0, %s47
      %s62 = sphi 0, %s48
      %s66 = sphi 0, %s66
      %s68 = sphi 0, %s66
      %s69 = sphi 0, %s68
      %s83 = sphi 0, %s69
    $region4: #{enhanced_bart_forward.61} parent=1 // loop_header_branch
      %14 = sbr.rel (%p12) target = $region8
    $region5: #{enhanced_bart_forward.61} parent=1 // loop_body
      %s16 = ssub.s32 %s11, 1
      %s17 = ssub.s32 %s11, 2
      %s18 = sadd.s32 %s11, 1
      %s19 = ssub.s32 %s11, %s18
      %p20 = scmp.eq.s32.totalorder %s19, 0
      %s22 = sadd.s32 %s21, 1
      %s23 = scalar_select %p20, %s21, %s22
      %p26 = pneg %p20
      %p27 = scmp.eq.s32.totalorder %s11, 1
      %p28 = por %p26, %p27
      %p29 = scmp.ne.s32.totalorder %s21, %s24
      %p30 = scmp.eq.s32.totalorder %s11, 0
      %p31 = por %p29, %p30
      %p32 = scmp.ne.s32.totalorder %s21, %s24
      %p33 = scmp.eq.s32.totalorder %s16, 1
      %p34 = por %p32, %p33
      %p35 = scmp.ne.s32.totalorder %s24, %s25
      %p36 = scmp.eq.s32.totalorder %s16, 0
      %p37 = por %p35, %p36
      %p38 = scmp.ne.s32.totalorder %s24, %s25
      %p39 = scmp.eq.s32.totalorder %s17, 1
      %p40 = por %p38, %p39
      %p42 = scmp.ne.s32.totalorder %s25, %s41
      %p43 = scmp.eq.s32.totalorder %s17, 0
      %p44 = por %p42, %p43
      %s46 = sadd.s32 %s45, 1
      %p49 = scmp.eq.s32.totalorder %s11, 1
      %p50 = scmp.ne.s32.totalorder %s45, %s47
      %p51 = scmp.eq.s32.totalorder %s11, 0
      %p52 = por %p50, %p51
      %p53 = scmp.ne.s32.totalorder %s45, %s47
      %p54 = scmp.eq.s32.totalorder %s16, 1
      %p55 = por %p53, %p54
      %p56 = scmp.ne.s32.totalorder %s47, %s48
      %p57 = scmp.eq.s32.totalorder %s16, 0
      %p58 = por %p56, %p57
      %p59 = scmp.ne.s32.totalorder %s47, %s48
      %p60 = scmp.eq.s32.totalorder %s17, 1
      %p61 = por %p59, %p60
      %p63 = scmp.ne.s32.totalorder %s48, %s62
      %p64 = scmp.eq.s32.totalorder %s17, 0
      %p65 = por %p63, %p64
      %s67 = sadd.s32 %s66, 1
      %p70 = scmp.eq.s32.totalorder %s11, 1
      %p71 = scmp.ne.s32.totalorder %s66, %s68
      %p72 = scmp.eq.s32.totalorder %s11, 0
      %p73 = por %p71, %p72
      %p74 = scmp.ne.s32.totalorder %s66, %s68
      %p75 = scmp.eq.s32.totalorder %s16, 1
      %p76 = por %p74, %p75
      %p77 = scmp.ne.s32.totalorder %s68, %s69
      %p78 = scmp.eq.s32.totalorder %s16, 0
      %p79 = por %p77, %p78
      %p80 = scmp.ne.s32.totalorder %s68, %s69
      %p81 = scmp.eq.s32.totalorder %s17, 1
      %p82 = por %p80, %p81
      %p84 = scmp.ne.s32.totalorder %s69, %s83
      %p85 = scmp.eq.s32.totalorder %s17, 0
      %p86 = por %p84, %p85
      %p87 = scmp.le.s32.totalorder 1, %s11
      %p88 = scmp.lt.s32.totalorder %s11, 3
      %p89 = pnand %p87, %p88
      %p90 = pneg %p89
      // Predicated region
      $region9: #{enhanced_bart_forward.61} parent=5 // pred_check
        _
      $region10: #{enhanced_bart_forward.61} parent=5 // pred_check_branch
        %92 = sbr.rel (%p89) target = $region12
      $region11: #{enhanced_bart_forward.61} parent=5 // pred_region
        %s93 = ssub.s32 %s11, 1
      $region12: #{enhanced_bart_forward.61} parent=5 // pred_fallthru
        _
      %p94 = scmp.lt.s32.totalorder %s11, 2
      // Predicated region
      $region13: #{enhanced_bart_forward.61} parent=5 // pred_check
        %p95 = pneg %p94
      $region14: #{enhanced_bart_forward.61} parent=5 // pred_check_branch
        %97 = sbr.rel (%p95) target = $region16
      $region15: #{enhanced_bart_forward.61} parent=5 // pred_region
        // Predicated region
        $region17: #{enhanced_bart_forward.61} parent=15 // pred_check
          %p98 = pneg %p31
        $region18: #{enhanced_bart_forward.61} parent=15 // pred_check_branch
          %100 = sbr.rel (%p98) target = $region20
        $region19: #{enhanced_bart_forward.61} parent=15 // pred_region
          %p101 = scmp.lt.s32.totalorder %s11, 1
          %s102 = scalar_select %p101, %s11, 1
          %s103 = smul.addr %s102, 8
          %s104 = smul.addr %s103, 8
          %s105 = scalar_lea.vmem %s0, %s104
        $region20: #{enhanced_bart_forward.61} parent=15 // pred_fallthru
          _
      $region16: #{enhanced_bart_forward.61} parent=5 // pred_fallthru
        _
      %p106 = scmp.le.s32.totalorder 1, %s11
      %p107 = scmp.lt.s32.totalorder %s11, 3
      %p108 = pnand %p106, %p107
      %p109 = pneg %p108
      // Predicated region
      $region21: #{enhanced_bart_forward.61} parent=5 // pred_check
        _
      $region22: #{enhanced_bart_forward.61} parent=5 // pred_check_branch
        %111 = sbr.rel (%p108) target = $region24
      $region23: #{enhanced_bart_forward.61} parent=5 // pred_region
        %s112 = ssub.s32 %s11, 1
        %p113 = scmp.lt.s32.totalorder %s16, 1
        %s114 = scalar_select %p113, %s16, 1
        %s115 = smul.addr %s114, 8
        %s116 = smul.addr %s115, 8
        %s117 = scalar_lea.vmem %s0, %s116
        %p118 = pneg %p37
        %p119 = pneg %p34
        %p120 = pneg %p58
        %p121 = pneg %p55
        %p122 = pneg %p79
        %p123 = pneg %p76
        %p124 = scmp.lt.s32.totalorder %s16, 1
        %s125 = scalar_select %p124, %s16, 1
        %s126 = smul.addr %s125, 8
        %s127 = smul.addr %s126, 8
        %s128 = scalar_lea.vmem %s0, %s127
        %p129 = scmp.eq.s32.totalorder %s16, 0
        // Predicated region
        $region25: #{enhanced_bart_forward.61} parent=23 // pred_check
          %p130 = pneg %p129
        $region26: #{enhanced_bart_forward.61} parent=23 // pred_check_branch
          %132 = sbr.rel (%p130) target = $region28
        $region27: #{enhanced_bart_forward.61} parent=23 // pred_region
          %vm133 = vcmask 64512
          %134 = vst.msk [vmem:[#allocation2] sm:$0xff] %vm133, 0.0
          %135 = vst.msk [vmem:[#allocation2 + $0x8] sm:$0xff] %vm133, 0.0
          %136 = vst.msk [vmem:[#allocation2 + $0x10] sm:$0xff] %vm133, 0.0
          %137 = vst.msk [vmem:[#allocation2 + $0x18] sm:$0xff] %vm133, 0.0
          %vm138 = vcmask 0
          %139 = vst.msk [vmem:[#allocation3] sm:$0x1] %vm138, 0.0
        $region28: #{enhanced_bart_forward.61} parent=23 // pred_fallthru
          _
        %v140 = vld [vmem:[%s128] sm:$0xff]
        %v141 = vld [vmem:[%s128 + $0x8] sm:$0xff]
        %v142 = vld [vmem:[%s128 + $0x10] sm:$0xff]
        %v143 = vld [vmem:[%s128 + $0x18] sm:$0xff]
        %v144 = vld [vmem:[%s128 + $0x20] sm:$0xff]
        %v145 = vld [vmem:[%s128 + $0x28] sm:$0xff]
        %v146 = vld [vmem:[%s128 + $0x30] sm:$0xff]
        %v147 = vld [vmem:[%s128 + $0x38] sm:$0xff]
        %vm148 = vcmask 64512
        %v149 = vsel %vm148, %v140, 0.0
        %v150 = vsel %vm148, %v141, 0.0
        %v151 = vadd.f32 %v149, %v150
        %v152 = vsel %vm148, %v142, 0.0
        %v153 = vadd.f32 %v151, %v152
        %v154 = vsel %vm148, %v143, 0.0
        %v155 = vadd.f32 %v153, %v154
        %v156 = vsel %vm148, %v144, 0.0
        %v157 = vsel %vm148, %v145, 0.0
        %v158 = vadd.f32 %v156, %v157
        %v159 = vsel %vm148, %v146, 0.0
        %v160 = vadd.f32 %v158, %v159
        %v161 = vsel %vm148, %v147, 0.0
        %v162 = vadd.f32 %v160, %v161
        %v163 = vrcp.pop 4.0
        %v164 = vmul.f32 %v155, %v163
        %v165 = vmul.f32 %v162, %v163
        %v166 = vld [vmem:[#allocation2] sm:$0xff]
        %v167 = vld [vmem:[#allocation2 + $0x8] sm:$0xff]
        %v168 = vld [vmem:[#allocation2 + $0x10] sm:$0xff]
        %v169 = vld [vmem:[#allocation2 + $0x18] sm:$0xff]
        %v170 = vmin.f32 %v166, %v164
        %v171 = vmin.f32 %v167, %v165
        %v172 = vmin.f32 %v168, %v164
        %v173 = vmin.f32 %v169, %v165
        %v174 = vld [vmem:[#allocation3] sm:$0x1]
        %v175 = vsel %vm148, %v170, 0.0
        %v176 = vsel %vm148, %v171, 0.0
        %v177 = vadd.f32 %v175, %v176
        %v178 = vsel %vm148, %v172, 0.0
        %v179 = vadd.f32 %v177, %v178
        %v180 = vsel %vm148, %v173, 0.0
        %v181 = vadd.f32 %v179, %v180
        %182 = vadd.xlane.f32.xlu0 %v181
        %v183 = vpop.xlane.xlu0 %182
        %v184 = vrot.slane %v183, 4
        %v185 = vadd.f32 %v183, %v184
        %v186 = vrot.slane %v185, 2
        %v187 = vadd.f32 %v185, %v186
        %v188 = vrot.slane %v187, 1
        %v189 = vadd.f32 %v187, %v188
        %s190 = vtos %v189
        %v191 = vrcp.pop 32.0
        %s192 = vtos %v191
        %s193 = smul.f32 %s190, %s192
        %v194 = vstv %s193
        %v195 = vadd.f32 %v174, %v194
        %vm196 = vcmask 0
        %197 = vst.msk [vmem:[#allocation3] sm:$0x1] %vm196, %v195
        %v198 = vadd.f32 %v166, %v164
        %v199 = vadd.f32 %v167, %v164
        %v200 = vadd.f32 %v168, %v165
        %v201 = vadd.f32 %v169, %v165
        %202 = vst.msk [vmem:[#allocation2] sm:$0xff] %vm148, %v198
        %203 = vst.msk [vmem:[#allocation2 + $0x8] sm:$0xff] %vm148, %v199
        %204 = vst.msk [vmem:[#allocation2 + $0x10] sm:$0xff] %vm148, %v200
        %205 = vst.msk [vmem:[#allocation2 + $0x18] sm:$0xff] %vm148, %v201
        %p206 = scmp.eq.s32.totalorder %s16, 1
        // Predicated region
        $region29: #{enhanced_bart_forward.61} parent=23 // pred_check
          %p207 = pneg %p206
        $region30: #{enhanced_bart_forward.61} parent=23 // pred_check_branch
          %209 = sbr.rel (%p207) target = $region32
        $region31: #{enhanced_bart_forward.61} parent=23 // pred_region
          %v210 = vld [vmem:[#allocation3] sm:$0x1]
          %211 = vst.msk [vmem:[#allocation4] sm:$0x1] %vm196, %v210
          %v212 = vld [vmem:[#allocation2] sm:$0xff]
          %v213 = vld [vmem:[#allocation2 + $0x8] sm:$0xff]
          %v214 = vld [vmem:[#allocation2 + $0x10] sm:$0xff]
          %v215 = vld [vmem:[#allocation2 + $0x18] sm:$0xff]
          %216 = vst.msk [vmem:[#allocation6] sm:$0xff] %vm148, %v212
          %217 = vst.msk [vmem:[#allocation6 + $0x8] sm:$0xff] %vm148, %v213
          %218 = vst.msk [vmem:[#allocation6 + $0x10] sm:$0xff] %vm148, %v214
          %219 = vst.msk [vmem:[#allocation6 + $0x18] sm:$0xff] %vm148, %v215
        $region32: #{enhanced_bart_forward.61} parent=23 // pred_fallthru
          _
        // Predicated region
        $region33: #{enhanced_bart_forward.61} parent=23 // pred_check
          %p220 = pneg %p55
        $region34: #{enhanced_bart_forward.61} parent=23 // pred_check_branch
          %222 = sbr.rel (%p220) target = $region36
        $region35: #{enhanced_bart_forward.61} parent=23 // pred_region
          %s224 = ssub.s32 16, 16
          %225 = vsyncadd [#allocation5], %s224
          %s227 = sshll.u32 [#allocation4], 4
          %s228 = int_to_ptr.vmem [resolvable:$true] %s227
          %230 = dma.vmem_to_hbm [thread:$0]  %s228, 16, %s1, [#allocation5]
        $region36: #{enhanced_bart_forward.61} parent=23 // pred_fallthru
          _
        // Predicated region
        $region37: #{enhanced_bart_forward.61} parent=23 // pred_check
          %p231 = pneg %p76
        $region38: #{enhanced_bart_forward.61} parent=23 // pred_check_branch
          %233 = sbr.rel (%p231) target = $region40
        $region39: #{enhanced_bart_forward.61} parent=23 // pred_region
          %s235 = ssub.s32 512, 512
          %236 = vsyncadd [#allocation7], %s235
          %s237 = sshll.u32 [#allocation6], 4
          %s238 = int_to_ptr.vmem [resolvable:$true] %s237
          %243 = dma.vmem_to_hbm [thread:$0]  %s238, 512, %s2, [#allocation7], 128, 128, 8
        $region40: #{enhanced_bart_forward.61} parent=23 // pred_fallthru
          _
        // Predicated region
        $region41: #{enhanced_bart_forward.61} parent=23 // pred_check
          %p244 = pneg %p55
        $region42: #{enhanced_bart_forward.61} parent=23 // pred_check_branch
          %246 = sbr.rel (%p244) target = $region44
        $region43: #{enhanced_bart_forward.61} parent=23 // pred_region
          %247 = dma.done [#allocation5], 16
        $region44: #{enhanced_bart_forward.61} parent=23 // pred_fallthru
          _
        // Predicated region
        $region45: #{enhanced_bart_forward.61} parent=23 // pred_check
          %p248 = pneg %p76
        $region46: #{enhanced_bart_forward.61} parent=23 // pred_check_branch
          %250 = sbr.rel (%p248) target = $region48
        $region47: #{enhanced_bart_forward.61} parent=23 // pred_region
          %251 = dma.done [#allocation7], 512
        $region48: #{enhanced_bart_forward.61} parent=23 // pred_fallthru
          _
      $region24: #{enhanced_bart_forward.61} parent=5 // pred_fallthru
        _
      %p252 = scmp.le.s32.totalorder 2, %s11
      // Predicated region
      $region49: #{enhanced_bart_forward.61} parent=5 // pred_check
        %p253 = pneg %p252
      $region50: #{enhanced_bart_forward.61} parent=5 // pred_check_branch
        %255 = sbr.rel (%p253) target = $region52
      $region51: #{enhanced_bart_forward.61} parent=5 // pred_region
        %s256 = ssub.s32 %s11, 2
      $region52: #{enhanced_bart_forward.61} parent=5 // pred_fallthru
        _
    $region6: #{enhanced_bart_forward.61} parent=1 // loop_footer
      %s15 = sadd.s32 1, %s11
    $region7: #{enhanced_bart_forward.61} parent=1 // loop_footer_branch
      %10 = sbr.rel target = $region3
    $region8: #{enhanced_bart_forward.61} parent=1 // loop_exit
      _
    %257 = vsyncpa [#allocation5], 1
    %s258 = scalar_lea.sflag [#allocation5], 1
    %259 = vsyncpa %s258, 1
    %260 = vsyncpa [#allocation7], 1

</llo_original>
